<compile_context>
chip_gen: v5e
topology: v5e:2x2
jax: 0.10.0
libtpu: 0.0.40
codegen_flags: <defaults>
</compile_context>

<pallas_src>
import functools

import jax
import jax.numpy as jnp
from jax.experimental import pallas as pl
from jax.experimental.pallas import tpu as pltpu


def _round_up(x, m):
    return ((x + m - 1) // m) * m


def _vmem_capacity_bytes():
    """Per-core VMEM capacity; conservative fallback if the query is unavailable."""
    try:
        return int(pltpu.get_tpu_info().vmem_capacity_bytes)
    except Exception:
        return 64 << 20  # v7x per-TC VMEM (smallest across generations)


def _mlp_kernel(x_ref,
                w1_ref, b1_ref,
                w2_ref, b2_ref,
                w3_ref, b3_ref,
                w4_ref, b4_ref,
                o_ref):
    # x arrives f32 (no extra wrapper-side HBM cast pass); repack to bf16 for
    # the MXU here -- a free VPU op next to the matmuls.
    h = x_ref[...].astype(jnp.bfloat16)

    # Layer 1: (TB, F) @ (F, 512); f32 accumulate, f32 bias + ReLU.
    h = jnp.dot(h, w1_ref[...], preferred_element_type=jnp.float32)
    h = jnp.maximum(h + b1_ref[...], 0.0).astype(jnp.bfloat16)

    # Layer 2: (TB, 512) @ (512, 1024)
    h = jnp.dot(h, w2_ref[...], preferred_element_type=jnp.float32)
    h = jnp.maximum(h + b2_ref[...], 0.0).astype(jnp.bfloat16)

    # Layer 3: (TB, 1024) @ (1024, 512)
    h = jnp.dot(h, w3_ref[...], preferred_element_type=jnp.float32)
    h = jnp.maximum(h + b3_ref[...], 0.0).astype(jnp.bfloat16)

    # Layer 4 (head, zero-padded to 128 output lanes -> unmasked vst stores).
    h = jnp.dot(h, w4_ref[...], preferred_element_type=jnp.float32)
    o_ref[...] = (h + b4_ref[...]).astype(o_ref.dtype)


def prepare_params(params):
    """One-time per-model conversion: bf16 weights, f32 biases, lane-dense head.

    Hoisted out of the forward so the per-call path does no weight reads,
    casts, or padding. Returns (prepared_params, seq_len).
    """
    seq_len = params["w4"].shape[1]
    out_pad = _round_up(seq_len, 128)
    pad = ((0, 0), (0, out_pad - seq_len))
    prep = {
        "w1": params["w1"].astype(jnp.bfloat16),
        "w2": params["w2"].astype(jnp.bfloat16),
        "w3": params["w3"].astype(jnp.bfloat16),
        "w4": jnp.pad(params["w4"], pad).astype(jnp.bfloat16),
        "b1": params["b1"].astype(jnp.float32),
        "b2": params["b2"].astype(jnp.float32),
        "b3": params["b3"].astype(jnp.float32),
        "b4": jnp.pad(params["b4"], pad).astype(jnp.float32),
    }
    return prep, seq_len


def ann_forward(x, prep, *, seq_len, block_b=512):
    """x: (B, seq_len, input_size) float32 -> (B, seq_len) float32."""
    B = x.shape[0]
    F = prep["w1"].shape[0]
    OUT = prep["w4"].shape[1]          # lane-dense padded head width (>=128)

    x2d = x.reshape(B, -1).astype(jnp.float32)
    assert x2d.shape[1] == F, (x2d.shape, F)

    # ---- even batch split: <=7 padded rows per tile (no round_up(B, TB) waste) ----
    num_tiles = max(1, (B + block_b - 1) // block_b)
    TB = _round_up((B + num_tiles - 1) // num_tiles, 8)
    B_pad = TB * num_tiles
    if B_pad != B:
        x2d = jnp.pad(x2d, ((0, B_pad - B), (0, 0)))

    weights = (prep["w1"], prep["b1"], prep["w2"], prep["b2"],
               prep["w3"], prep["b3"], prep["w4"], prep["b4"])

    # x / out tiled over batch; weights constant index_map -> VMEM-resident.
    x_spec = pl.BlockSpec((TB, F), lambda i: (i, 0))
    w_specs = [pl.BlockSpec(w.shape, lambda i: (0, 0)) for w in weights]
    o_spec = pl.BlockSpec((TB, OUT), lambda i: (i, 0))

    weight_bytes = sum(int(w.size) * w.dtype.itemsize for w in weights)
    flops = 2 * B_pad * (F * 512 + 512 * 1024 + 1024 * 512 + 512 * OUT)
    bytes_accessed = int(weight_bytes + x2d.size * 4 + B_pad * OUT * 4)

    # VMEM need: (default-double-buffered) resident weights + pipelined x/out
    # tiles + f32 intermediates + compiler headroom; cap generation-aware at
    # ~75% of this chip's per-core VMEM.
    need = (2 * weight_bytes
            + 2 * (TB * F * 4 + TB * OUT * 4)
            + 4 * TB * (512 + 1024 + 512 + OUT)
            + (4 << 20))
    vmem_bytes = min(int(need), (3 * _vmem_capacity_bytes()) // 4)

    out_padded = pl.pallas_call(
        _mlp_kernel,
        out_shape=jax.ShapeDtypeStruct((B_pad, OUT), jnp.float32),
        grid_spec=pltpu.PrefetchScalarGridSpec(
            num_scalar_prefetch=0,
            grid=(B_pad // TB,),
            in_specs=[x_spec] + w_specs,
            out_specs=o_spec,
        ),
        compiler_params=pltpu.CompilerParams(
            dimension_semantics=("parallel",),
            vmem_limit_bytes=vmem_bytes,
        ),
        cost_estimate=pl.CostEstimate(
            flops=flops, transcendentals=0, bytes_accessed=bytes_accessed),
    )(x2d, *weights)

    return out_padded[:B, :seq_len]


def init_params(key, seq_len, input_size):
    """Deterministic init matching nn.Linear shapes (weights stored transposed)."""
    F = seq_len * input_size
    dims = [(F, 512), (512, 1024), (1024, 512), (512, seq_len)]
    params = {}
    for idx, (fan_in, fan_out) in enumerate(dims, start=1):
        key, kw, kb = jax.random.split(key, 3)
        bound = 1.0 / jnp.sqrt(fan_in)  # PyTorch default U(-1/sqrt(in), 1/sqrt(in))
        params[f"w{idx}"] = jax.random.uniform(
            kw, (fan_in, fan_out), jnp.float32, minval=-bound, maxval=bound)
        params[f"b{idx}"] = jax.random.uniform(
            kb, (1, fan_out), jnp.float32, minval=-bound, maxval=bound)
    return params


def _reference_forward_f32(x, params):
    """Full-f32 reference == the PyTorch module's semantics."""
    h = x.reshape(x.shape[0], -1)
    h = jnp.maximum(h @ params["w1"] + params["b1"], 0.0)
    h = jnp.maximum(h @ params["w2"] + params["b2"], 0.0)
    h = jnp.maximum(h @ params["w3"] + params["b3"], 0.0)
    return h @ params["w4"] + params["b4"]


def _reference_forward_mixed(x, params):
    """Plain-JAX reference with the same bf16/f32 mixed precision as the kernel."""
    h = x.reshape(x.shape[0], -1).astype(jnp.bfloat16)

    def layer(h, w, b, relu):
        y = jnp.dot(h, w.astype(jnp.bfloat16),
                    preferred_element_type=jnp.float32) + b
        if relu:
            y = jnp.maximum(y, 0.0).astype(jnp.bfloat16)
        return y

    h = layer(h, params["w1"], params["b1"], True)
    h = layer(h, params["w2"], params["b2"], True)
    h = layer(h, params["w3"], params["b3"], True)
    return layer(h, params["w4"], params["b4"], False)


if __name__ == "__main__":
    B, SEQ_LEN, INPUT_SIZE = 2, 8, 4

    key = jax.random.PRNGKey(0)
    key, kx = jax.random.split(key)
    x = jax.random.normal(kx, (B, SEQ_LEN, INPUT_SIZE), jnp.float32)
    params = init_params(key, SEQ_LEN, INPUT_SIZE)

    # One-time weight conversion; per-call path touches only x and the kernel.
    prep, seq_len = prepare_params(params)
    fwd = jax.jit(functools.partial(ann_forward, seq_len=seq_len))

    out = jax.block_until_ready(fwd(x, prep))
    assert out.shape == (B, SEQ_LEN), out.shape

    # Exact-precision check vs an identical mixed-precision JAX reference, and
    # a looser parity check vs the full-f32 (PyTorch-semantics) reference.
    ref_mixed = _reference_forward_mixed(x, params)
    ref_f32 = _reference_forward_f32(x, params)
    assert jnp.allclose(out, ref_mixed, atol=2e-3, rtol=2e-3), "mismatch vs mixed-precision reference"
    assert jnp.allclose(out, ref_f32, atol=5e-2, rtol=5e-2), "mismatch vs f32 reference"

    print("KERNEL_OK")
</pallas_src>

<mosaic_0001>
module attributes {stable_mosaic.version = 11 : i64} {
  func.func @_mlp_kernel(%arg0: i32, %arg1: memref<8x32xf32, #tpu.memory_space<vmem>>, %arg2: memref<32x512xbf16, #tpu.memory_space<vmem>>, %arg3: memref<1x512xf32, #tpu.memory_space<vmem>>, %arg4: memref<512x1024xbf16, #tpu.memory_space<vmem>>, %arg5: memref<1x1024xf32, #tpu.memory_space<vmem>>, %arg6: memref<1024x512xbf16, #tpu.memory_space<vmem>>, %arg7: memref<1x512xf32, #tpu.memory_space<vmem>>, %arg8: memref<512x128xbf16, #tpu.memory_space<vmem>>, %arg9: memref<1x128xf32, #tpu.memory_space<vmem>>, %arg10: memref<8x128xf32, #tpu.memory_space<vmem>>) attributes {dimension_semantics = [#tpu.dimension_semantics<parallel>], iteration_bounds = array<i64: 1>, scalar_prefetch = 0 : i64, scratch_operands = 0 : i64, tpu.core_type = #tpu.core_type<tc>, window_params = [{transform_indices = @transform_0, window_bounds = array<i64: 8, 32>}, {pipeline_mode = #tpu.pipeline_mode<synchronous>, transform_indices = @transform_1, window_bounds = array<i64: 32, 512>}, {pipeline_mode = #tpu.pipeline_mode<synchronous>, transform_indices = @transform_2, window_bounds = array<i64: 1, 512>}, {pipeline_mode = #tpu.pipeline_mode<synchronous>, transform_indices = @transform_3, window_bounds = array<i64: 512, 1024>}, {pipeline_mode = #tpu.pipeline_mode<synchronous>, transform_indices = @transform_4, window_bounds = array<i64: 1, 1024>}, {pipeline_mode = #tpu.pipeline_mode<synchronous>, transform_indices = @transform_5, window_bounds = array<i64: 1024, 512>}, {pipeline_mode = #tpu.pipeline_mode<synchronous>, transform_indices = @transform_6, window_bounds = array<i64: 1, 512>}, {pipeline_mode = #tpu.pipeline_mode<synchronous>, transform_indices = @transform_7, window_bounds = array<i64: 512, 128>}, {pipeline_mode = #tpu.pipeline_mode<synchronous>, transform_indices = @transform_8, window_bounds = array<i64: 1, 128>}, {transform_indices = @transform_9, window_bounds = array<i64: 8, 128>}]} {
    %c0 = arith.constant 0 : index
    %c0_0 = arith.constant 0 : index
    %0 = vector.load %arg1[%c0, %c0_0] : memref<8x32xf32, #tpu.memory_space<vmem>>, vector<8x32xf32>
    %1 = arith.truncf %0 : vector<8x32xf32> to vector<8x32xbf16>
    %c0_1 = arith.constant 0 : index
    %c0_2 = arith.constant 0 : index
    %2 = vector.load %arg2[%c0_1, %c0_2] : memref<32x512xbf16, #tpu.memory_space<vmem>>, vector<32x512xbf16>
    %cst = arith.constant dense<0.000000e+00> : vector<8x512xf32>
    %3 = tpu.matmul %1, %2, %cst {dimension_numbers = #tpu.dot_dimension_numbers<[1], [0], [0], [1], [0, 0, 1, 1], [], []>} : vector<8x32xbf16>, vector<32x512xbf16>, vector<8x512xf32> -> vector<8x512xf32>
    %c0_3 = arith.constant 0 : index
    %c0_4 = arith.constant 0 : index
    %4 = vector.load %arg3[%c0_3, %c0_4] : memref<1x512xf32, #tpu.memory_space<vmem>>, vector<1x512xf32>
    %5 = vector.broadcast %4 : vector<1x512xf32> to vector<8x512xf32>
    %6 = arith.addf %3, %5 : vector<8x512xf32>
    %cst_5 = arith.constant 0.000000e+00 : f32
    %7 = vector.broadcast %cst_5 : f32 to vector<8x512xf32>
    %8 = arith.maximumf %6, %7 : vector<8x512xf32>
    %9 = arith.truncf %8 : vector<8x512xf32> to vector<8x512xbf16>
    %c0_6 = arith.constant 0 : index
    %c0_7 = arith.constant 0 : index
    %10 = vector.load %arg4[%c0_6, %c0_7] : memref<512x1024xbf16, #tpu.memory_space<vmem>>, vector<512x1024xbf16>
    %cst_8 = arith.constant dense<0.000000e+00> : vector<8x1024xf32>
    %11 = tpu.matmul %9, %10, %cst_8 {dimension_numbers = #tpu.dot_dimension_numbers<[1], [0], [0], [1], [0, 0, 1, 1], [], []>} : vector<8x512xbf16>, vector<512x1024xbf16>, vector<8x1024xf32> -> vector<8x1024xf32>
    %c0_9 = arith.constant 0 : index
    %c0_10 = arith.constant 0 : index
    %12 = vector.load %arg5[%c0_9, %c0_10] : memref<1x1024xf32, #tpu.memory_space<vmem>>, vector<1x1024xf32>
    %13 = vector.broadcast %12 : vector<1x1024xf32> to vector<8x1024xf32>
    %14 = arith.addf %11, %13 : vector<8x1024xf32>
    %cst_11 = arith.constant 0.000000e+00 : f32
    %15 = vector.broadcast %cst_11 : f32 to vector<8x1024xf32>
    %16 = arith.maximumf %14, %15 : vector<8x1024xf32>
    %17 = arith.truncf %16 : vector<8x1024xf32> to vector<8x1024xbf16>
    %c0_12 = arith.constant 0 : index
    %c0_13 = arith.constant 0 : index
    %18 = vector.load %arg6[%c0_12, %c0_13] : memref<1024x512xbf16, #tpu.memory_space<vmem>>, vector<1024x512xbf16>
    %cst_14 = arith.constant dense<0.000000e+00> : vector<8x512xf32>
    %19 = tpu.matmul %17, %18, %cst_14 {dimension_numbers = #tpu.dot_dimension_numbers<[1], [0], [0], [1], [0, 0, 1, 1], [], []>} : vector<8x1024xbf16>, vector<1024x512xbf16>, vector<8x512xf32> -> vector<8x512xf32>
    %c0_15 = arith.constant 0 : index
    %c0_16 = arith.constant 0 : index
    %20 = vector.load %arg7[%c0_15, %c0_16] : memref<1x512xf32, #tpu.memory_space<vmem>>, vector<1x512xf32>
    %21 = vector.broadcast %20 : vector<1x512xf32> to vector<8x512xf32>
    %22 = arith.addf %19, %21 : vector<8x512xf32>
    %cst_17 = arith.constant 0.000000e+00 : f32
    %23 = vector.broadcast %cst_17 : f32 to vector<8x512xf32>
    %24 = arith.maximumf %22, %23 : vector<8x512xf32>
    %25 = arith.truncf %24 : vector<8x512xf32> to vector<8x512xbf16>
    %c0_18 = arith.constant 0 : index
    %c0_19 = arith.constant 0 : index
    %26 = vector.load %arg8[%c0_18, %c0_19] : memref<512x128xbf16, #tpu.memory_space<vmem>>, vector<512x128xbf16>
    %cst_20 = arith.constant dense<0.000000e+00> : vector<8x128xf32>
    %27 = tpu.matmul %25, %26, %cst_20 {dimension_numbers = #tpu.dot_dimension_numbers<[1], [0], [0], [1], [0, 0, 1, 1], [], []>} : vector<8x512xbf16>, vector<512x128xbf16>, vector<8x128xf32> -> vector<8x128xf32>
    %c0_21 = arith.constant 0 : index
    %c0_22 = arith.constant 0 : index
    %28 = vector.load %arg9[%c0_21, %c0_22] : memref<1x128xf32, #tpu.memory_space<vmem>>, vector<1x128xf32>
    %29 = vector.broadcast %28 : vector<1x128xf32> to vector<8x128xf32>
    %30 = arith.addf %27, %29 : vector<8x128xf32>
    %c0_23 = arith.constant 0 : index
    %c0_24 = arith.constant 0 : index
    %31 = vector.load %arg10[%c0_23, %c0_24] : memref<8x128xf32, #tpu.memory_space<vmem>>, vector<8x128xf32>
    tpu.vector_store %arg10[%c0_23, %c0_24], %30 {strides = array<i32>} : memref<8x128xf32, #tpu.memory_space<vmem>>, vector<8x128xf32>,
    return
  }
  func.func @transform_0(%arg0: i32) -> (i32, i32) {
    %c0_i32 = arith.constant 0 : i32
    %c0_i32_0 = arith.constant 0 : i32
    return %arg0, %c0_i32 : i32, i32
  }
  func.func @transform_1(%arg0: i32) -> (i32, i32) {
    %c0_i32 = arith.constant 0 : i32
    %c0_i32_0 = arith.constant 0 : i32
    %c0_i32_1 = arith.constant 0 : i32
    return %c0_i32, %c0_i32_0 : i32, i32
  }
  func.func @transform_2(%arg0: i32) -> (i32, i32) {
    %c0_i32 = arith.constant 0 : i32
    %c0_i32_0 = arith.constant 0 : i32
    %c0_i32_1 = arith.constant 0 : i32
    return %c0_i32, %c0_i32_0 : i32, i32
  }
  func.func @transform_3(%arg0: i32) -> (i32, i32) {
    %c0_i32 = arith.constant 0 : i32
    %c0_i32_0 = arith.constant 0 : i32
    %c0_i32_1 = arith.constant 0 : i32
    return %c0_i32, %c0_i32_0 : i32, i32
  }
  func.func @transform_4(%arg0: i32) -> (i32, i32) {
    %c0_i32 = arith.constant 0 : i32
    %c0_i32_0 = arith.constant 0 : i32
    %c0_i32_1 = arith.constant 0 : i32
    return %c0_i32, %c0_i32_0 : i32, i32
  }
  func.func @transform_5(%arg0: i32) -> (i32, i32) {
    %c0_i32 = arith.constant 0 : i32
    %c0_i32_0 = arith.constant 0 : i32
    %c0_i32_1 = arith.constant 0 : i32
    return %c0_i32, %c0_i32_0 : i32, i32
  }
  func.func @transform_6(%arg0: i32) -> (i32, i32) {
    %c0_i32 = arith.constant 0 : i32
    %c0_i32_0 = arith.constant 0 : i32
    %c0_i32_1 = arith.constant 0 : i32
    return %c0_i32, %c0_i32_0 : i32, i32
  }
  func.func @transform_7(%arg0: i32) -> (i32, i32) {
    %c0_i32 = arith.constant 0 : i32
    %c0_i32_0 = arith.constant 0 : i32
    %c0_i32_1 = arith.constant 0 : i32
    return %c0_i32, %c0_i32_0 : i32, i32
  }
  func.func @transform_8(%arg0: i32) -> (i32, i32) {
    %c0_i32 = arith.constant 0 : i32
    %c0_i32_0 = arith.constant 0 : i32
    %c0_i32_1 = arith.constant 0 : i32
    return %c0_i32, %c0_i32_0 : i32, i32
  }
  func.func @transform_9(%arg0: i32) -> (i32, i32) {
    %c0_i32 = arith.constant 0 : i32
    %c0_i32_0 = arith.constant 0 : i32
    return %arg0, %c0_i32 : i32, i32
  }
}

</mosaic_0001>

<llo_original>
// kernel: ann_forward.1
$region0: #{ann_forward.1}
  #allocation0 [shape = 'u32[]', space=smem, size = 0x4, offset = 0x4, fixed_abs, tag = 'smem constant byte address 0x4 - core index']
  #allocation1 [shape = 'u32[72,128]{1,0:T(1,128)}', space=vmem, size = 0x9000, scoped, tag = 'internal scratch']
  %s0 = inlined_call_operand.vmem [shape: f32[8,32], index: 0, kind: input, shape index: {}]
  %s1 = inlined_call_operand.hbm [shape: bf16[32,512], index: 1, kind: input, shape index: {}]
  %s2 = inlined_call_operand.vmem [shape: f32[1,512], index: 2, kind: input, shape index: {}]
  %s3 = inlined_call_operand.hbm [shape: bf16[512,1024], index: 3, kind: input, shape index: {}]
  %s4 = inlined_call_operand.vmem [shape: f32[1,1024], index: 4, kind: input, shape index: {}]
  %s5 = inlined_call_operand.hbm [shape: bf16[1024,512], index: 5, kind: input, shape index: {}]
  %s6 = inlined_call_operand.vmem [shape: f32[1,512], index: 6, kind: input, shape index: {}]
  %s7 = inlined_call_operand.hbm [shape: bf16[512,128], index: 7, kind: input, shape index: {}]
  %s8 = inlined_call_operand.vmem [shape: f32[1,128], index: 8, kind: input, shape index: {}]
  %s9 = inlined_call_operand.vmem [shape: f32[8,128], index: 9, kind: output, shape index: {}]
  %s10 = sld [smem:[#allocation0]]
  $region62: #{ann_forward.1} parent=0
    _
  %s12 = ssub.s32 1, %s10
  %s13 = scalar_select 0, %s12, %s10
  $region1: #{ann_forward.1} parent=0
    #allocation2 [shape = 'u8[32768]{0}', space=vmem, size = 0x8000, scoped, tag = 'input window, operand 1, single buffered']
    #allocation3 [shape = 's32[1]{0}', space=sflag, size = 0x4, scoped, tag = 'scoped memory for ann_forward.1']
    #allocation4 [shape = 'u8[1048576]{0}', space=vmem, size = 0x100000, scoped, tag = 'input window, operand 3, single buffered']
    #allocation5 [shape = 's32[1]{0}', space=sflag, size = 0x4, scoped, tag = 'scoped memory for ann_forward.1']
    #allocation6 [shape = 'u8[1048576]{0}', space=vmem, size = 0x100000, scoped, tag = 'input window, operand 5, single buffered']
    #allocation7 [shape = 'u8[131072]{0}', space=vmem, size = 0x20000, scoped, tag = 'input window, operand 7, single buffered']
    #allocation8 [shape = 's32[1]{0}', space=sflag, size = 0x4, scoped, tag = 'scoped memory for ann_forward.1']
    %14 = vsyncpa [#allocation3], 0
    %15 = vsyncpa [#allocation5], 0
    %16 = vsyncpa [#allocation8], 0
    // Predicated region
    $region2: #{ann_forward.1} parent=1 // pred_check
      _
    $region3: #{ann_forward.1} parent=1 // pred_check_branch
      %18 = sbr.rel (0) target = $region5
    $region4: #{ann_forward.1} parent=1 // pred_region
      _
    $region5: #{ann_forward.1} parent=1 // pred_fallthru
      _
    // Predicated region
    $region6: #{ann_forward.1} parent=1 // pred_check
      _
    $region7: #{ann_forward.1} parent=1 // pred_check_branch
      %20 = sbr.rel (0) target = $region9
    $region8: #{ann_forward.1} parent=1 // pred_region
      %22 = vsyncadd [#allocation3], 0
      %s23 = sshll.u32 %s1, 4
      %s24 = int_to_ptr.hbm [resolvable:$true] %s23
      %s25 = sshll.u32 [#allocation2], 4
      %s26 = int_to_ptr.vmem [resolvable:$true] %s25
      %31 = dma.hbm_to_vmem [thread:$0]  %s24, 1024, %s26, [#allocation3], 256, 256, 16
    $region9: #{ann_forward.1} parent=1 // pred_fallthru
      _
    // Predicated region
    $region10: #{ann_forward.1} parent=1 // pred_check
      _
    $region11: #{ann_forward.1} parent=1 // pred_check_branch
      %33 = sbr.rel (0) target = $region13
    $region12: #{ann_forward.1} parent=1 // pred_region
      _
    $region13: #{ann_forward.1} parent=1 // pred_fallthru
      _
    // Predicated region
    $region14: #{ann_forward.1} parent=1 // pred_check
      _
    $region15: #{ann_forward.1} parent=1 // pred_check_branch
      %35 = sbr.rel (0) target = $region17
    $region16: #{ann_forward.1} parent=1 // pred_region
      %37 = vsyncadd [#allocation5], 0
      %s38 = sshll.u32 %s3, 4
      %s39 = int_to_ptr.hbm [resolvable:$true] %s38
      %s40 = sshll.u32 [#allocation4], 4
      %s41 = int_to_ptr.vmem [resolvable:$true] %s40
      %46 = dma.hbm_to_vmem [thread:$0]  %s39, 32768, %s41, [#allocation5], 512, 512, 32
    $region17: #{ann_forward.1} parent=1 // pred_fallthru
      _
    // Predicated region
    $region18: #{ann_forward.1} parent=1 // pred_check
      _
    $region19: #{ann_forward.1} parent=1 // pred_check_branch
      %48 = sbr.rel (0) target = $region21
    $region20: #{ann_forward.1} parent=1 // pred_region
      _
    $region21: #{ann_forward.1} parent=1 // pred_fallthru
      _
    // Predicated region
    $region22: #{ann_forward.1} parent=1 // pred_check
      _
    $region23: #{ann_forward.1} parent=1 // pred_check_branch
      %50 = sbr.rel (0) target = $region25
    $region24: #{ann_forward.1} parent=1 // pred_region
      %52 = vsyncadd [#allocation5], 0
      %s53 = sshll.u32 %s5, 4
      %s54 = int_to_ptr.hbm [resolvable:$true] %s53
      %s55 = sshll.u32 [#allocation6], 4
      %s56 = int_to_ptr.vmem [resolvable:$true] %s55
      %61 = dma.hbm_to_vmem [thread:$0]  %s54, 32768, %s56, [#allocation5], 256, 256, 16
    $region25: #{ann_forward.1} parent=1 // pred_fallthru
      _
    // Predicated region
    $region26: #{ann_forward.1} parent=1 // pred_check
      _
    $region27: #{ann_forward.1} parent=1 // pred_check_branch
      %63 = sbr.rel (0) target = $region29
    $region28: #{ann_forward.1} parent=1 // pred_region
      _
    $region29: #{ann_forward.1} parent=1 // pred_fallthru
      _
    // Predicated region
    $region30: #{ann_forward.1} parent=1 // pred_check
      _
    $region31: #{ann_forward.1} parent=1 // pred_check_branch
      %65 = sbr.rel (0) target = $region33
    $region32: #{ann_forward.1} parent=1 // pred_region
      %67 = vsyncadd [#allocation8], 0
      %s68 = sshll.u32 %s7, 4
      %s69 = int_to_ptr.hbm [resolvable:$true] %s68
      %s70 = sshll.u32 [#allocation7], 4
      %s71 = int_to_ptr.vmem [resolvable:$true] %s70
      %76 = dma.hbm_to_vmem [thread:$0]  %s69, 4096, %s71, [#allocation8], 64, 64, 4
    $region33: #{ann_forward.1} parent=1 // pred_fallthru
      _
    // Predicated region
    $region34: #{ann_forward.1} parent=1 // pred_check
      _
    $region35: #{ann_forward.1} parent=1 // pred_check_branch
      %78 = sbr.rel (0) target = $region37
    $region36: #{ann_forward.1} parent=1 // pred_region
      _
    $region37: #{ann_forward.1} parent=1 // pred_fallthru
      _
    // Predicated region
    $region38: #{ann_forward.1} parent=1 // pred_check
      _
    $region39: #{ann_forward.1} parent=1 // pred_check_branch
      %80 = sbr.rel (0) target = $region41
    $region40: #{ann_forward.1} parent=1 // pred_region
      %82 = dma.done [#allocation3], 1024
    $region41: #{ann_forward.1} parent=1 // pred_fallthru
      _
    // Predicated region
    $region42: #{ann_forward.1} parent=1 // pred_check
      _
    $region43: #{ann_forward.1} parent=1 // pred_check_branch
      %84 = sbr.rel (0) target = $region45
    $region44: #{ann_forward.1} parent=1 // pred_region
      %86 = dma.done [#allocation5], 32768
    $region45: #{ann_forward.1} parent=1 // pred_fallthru
      _
    // Predicated region
    $region46: #{ann_forward.1} parent=1 // pred_check
      _
    $region47: #{ann_forward.1} parent=1 // pred_check_branch
      %88 = sbr.rel (0) target = $region49
    $region48: #{ann_forward.1} parent=1 // pred_region
      %90 = dma.done [#allocation5], 32768
    $region49: #{ann_forward.1} parent=1 // pred_fallthru
      _
    // Predicated region
    $region50: #{ann_forward.1} parent=1 // pred_check
      _
    $region51: #{ann_forward.1} parent=1 // pred_check_branch
      %92 = sbr.rel (0) target = $region53
    $region52: #{ann_forward.1} parent=1 // pred_region
      %94 = dma.done [#allocation8], 4096
    $region53: #{ann_forward.1} parent=1 // pred_fallthru
      _
    %v96 = vld [vmem:[%s0] sm:$0xff]
    %v97 = vpack.c.bf16 %v96, %v96
    %v98 = vld [vmem:[#allocation2] sm:$0xff]
    %v99 = vld [vmem:[#allocation2 + $0x8] sm:$0xff]
    %v100 = vld [vmem:[#allocation2 + $0x10] sm:$0xff]
    %v101 = vld [vmem:[#allocation2 + $0x18] sm:$0xff]
    %v102 = vld [vmem:[#allocation2 + $0x20] sm:$0xff]
    %v103 = vld [vmem:[#allocation2 + $0x28] sm:$0xff]
    %v104 = vld [vmem:[#allocation2 + $0x30] sm:$0xff]
    %v105 = vld [vmem:[#allocation2 + $0x38] sm:$0xff]
    %v106 = vld [vmem:[%s2] sm:$0xf]
    %v108 = vperm.slane %v106, 0
    %v109 = vperm.slane %v106, 1
    %v110 = vperm.slane %v106, 2
    %v111 = vperm.slane %v106, 3
    %v124 = vunpack.c.l.b16 %v98
    %v125 = vunpack.c.h.b16 %v98
    %v126 = vunpack.c.l.b16 %v99
    %v127 = vunpack.c.h.b16 %v99
    %v128 = vunpack.c.l.b16 %v100
    %v129 = vunpack.c.h.b16 %v100
    %v130 = vunpack.c.l.b16 %v101
    %v131 = vunpack.c.h.b16 %v101
    %v132 = vunpack.c.l.b16 %v102
    %v133 = vunpack.c.h.b16 %v102
    %v134 = vunpack.c.l.b16 %v103
    %v135 = vunpack.c.h.b16 %v103
    %v136 = vunpack.c.l.b16 %v104
    %v137 = vunpack.c.h.b16 %v104
    %v138 = vunpack.c.l.b16 %v105
    %v139 = vunpack.c.h.b16 %v105
    %v140 = vpack.c.b16 %v128, %v124
    %v141 = vpack.c.b16 %v129, %v125
    %v142 = vpack.c.b16 %v130, %v126
    %v143 = vpack.c.b16 %v131, %v127
    %v144 = vpack.c.b16 %v136, %v132
    %v145 = vpack.c.b16 %v137, %v133
    %v146 = vpack.c.b16 %v138, %v134
    %v147 = vpack.c.b16 %v139, %v135
    %vm156 = vcmask 261120
    %v158 = vsel %vm156, %v97, 0
    %160 = vmatpush.bf16.msra.mxu0 0
    %161 = vmatpush.bf16.msra.mxu0 0
    %162 = vmatpush.bf16.msra.mxu0 0
    %163 = vmatpush.bf16.msra.mxu0 0
    %164 = vmatpush.bf16.msra.mxu0 0
    %165 = vmatpush.bf16.msra.mxu0 0
    %166 = vmatpush.bf16.msra.mxu0 %v144
    %167 = vmatpush.bf16.msra.mxu0 %v140
    %168 = vmatmul.bf16.gmra.mxu0 %v158
    %v169 = vpop.f32.mrf.mxu0
    %v170 = vadd.f32 %v108, %v169
    %v171 = vpop.f32.mrf.mxu0
    %172 = vdwg.mxu0
    %173 = vmatpush.bf16.msra.mxu0 0
    %174 = vmatpush.bf16.msra.mxu0 0
    %175 = vmatpush.bf16.msra.mxu0 0
    %176 = vmatpush.bf16.msra.mxu0 0
    %177 = vmatpush.bf16.msra.mxu0 0
    %178 = vmatpush.bf16.msra.mxu0 0
    %179 = vmatpush.bf16.msra.mxu0 %v145
    %180 = vmatpush.bf16.msra.mxu0 %v141
    %181 = vmatmul.bf16.gmra.mxu0 %v158
    %v182 = vpop.f32.mrf.mxu0
    %v183 = vadd.f32 %v109, %v182
    %v184 = vpop.f32.mrf.mxu0
    %185 = vdwg.mxu0
    %186 = vmatpush.bf16.msra.mxu0 0
    %187 = vmatpush.bf16.msra.mxu0 0
    %188 = vmatpush.bf16.msra.mxu0 0
    %189 = vmatpush.bf16.msra.mxu0 0
    %190 = vmatpush.bf16.msra.mxu0 0
    %191 = vmatpush.bf16.msra.mxu0 0
    %192 = vmatpush.bf16.msra.mxu0 %v146
    %193 = vmatpush.bf16.msra.mxu0 %v142
    %194 = vmatmul.bf16.gmra.mxu0 %v158
    %v195 = vpop.f32.mrf.mxu0
    %v196 = vadd.f32 %v110, %v195
    %v197 = vpop.f32.mrf.mxu0
    %198 = vdwg.mxu0
    %199 = vmatpush.bf16.msra.mxu0 0
    %200 = vmatpush.bf16.msra.mxu0 0
    %201 = vmatpush.bf16.msra.mxu0 0
    %202 = vmatpush.bf16.msra.mxu0 0
    %203 = vmatpush.bf16.msra.mxu0 0
    %204 = vmatpush.bf16.msra.mxu0 0
    %205 = vmatpush.bf16.msra.mxu0 %v147
    %206 = vmatpush.bf16.msra.mxu0 %v143
    %207 = vmatmul.bf16.gmra.mxu0 %v158
    %v208 = vpop.f32.mrf.mxu0
    %v209 = vadd.f32 %v111, %v208
    %v210 = vpop.f32.mrf.mxu0
    %211 = vdwg.mxu0
    %v212 = vmax.f32 %v170, 0.0
    %v213 = vmax.f32 %v183, 0.0
    %v214 = vmax.f32 %v196, 0.0
    %v215 = vmax.f32 %v209, 0.0
    %v216 = vpack.c.bf16 %v212, %v212
    %v217 = vpack.c.bf16 %v213, %v213
    %v218 = vpack.c.bf16 %v214, %v214
    %v219 = vpack.c.bf16 %v215, %v215
    %v220 = vld [vmem:[#allocation4] sm:$0xff]
    %v221 = vld [vmem:[#allocation4 + $0x8] sm:$0xff]
    %v222 = vld [vmem:[#allocation4 + $0x10] sm:$0xff]
    %v223 = vld [vmem:[#allocation4 + $0x18] sm:$0xff]
    %v224 = vld [vmem:[#allocation4 + $0x20] sm:$0xff]
    %v225 = vld [vmem:[#allocation4 + $0x28] sm:$0xff]
    %v226 = vld [vmem:[#allocation4 + $0x30] sm:$0xff]
    %v227 = vld [vmem:[#allocation4 + $0x38] sm:$0xff]
    %v228 = vld [vmem:[#allocation4 + $0x40] sm:$0xff]
    %v229 = vld [vmem:[#allocation4 + $0x48] sm:$0xff]
    %v230 = vld [vmem:[#allocation4 + $0x50] sm:$0xff]
    %v231 = vld [vmem:[#allocation4 + $0x58] sm:$0xff]
    %v232 = vld [vmem:[#allocation4 + $0x60] sm:$0xff]
    %v233 = vld [vmem:[#allocation4 + $0x68] sm:$0xff]
    %v234 = vld [vmem:[#allocation4 + $0x70] sm:$0xff]
    %v235 = vld [vmem:[#allocation4 + $0x78] sm:$0xff]
    %v236 = vld [vmem:[#allocation4 + $0x80] sm:$0xff]
    %v237 = vld [vmem:[#allocation4 + $0x88] sm:$0xff]
    %v238 = vld [vmem:[#allocation4 + $0x90] sm:$0xff]
    %v239 = vld [vmem:[#allocation4 + $0x98] sm:$0xff]
    %v240 = vld [vmem:[#allocation4 + $0xa0] sm:$0xff]
    %v241 = vld [vmem:[#allocation4 + $0xa8] sm:$0xff]
    %v242 = vld [vmem:[#allocation4 + $0xb0] sm:$0xff]
    %v243 = vld [vmem:[#allocation4 + $0xb8] sm:$0xff]
    %v244 = vld [vmem:[#allocation4 + $0xc0] sm:$0xff]
    %v245 = vld [vmem:[#allocation4 + $0xc8] sm:$0xff]
    %v246 = vld [vmem:[#allocation4 + $0xd0] sm:$0xff]
    %v247 = vld [vmem:[#allocation4 + $0xd8] sm:$0xff]
    %v248 = vld [vmem:[#allocation4 + $0xe0] sm:$0xff]
    %v249 = vld [vmem:[#allocation4 + $0xe8] sm:$0xff]
    %v250 = vld [vmem:[#allocation4 + $0xf0] sm:$0xff]
    %v251 = vld [vmem:[#allocation4 + $0xf8] sm:$0xff]
    %v252 = vld [vmem:[#allocation4 + $0x100] sm:$0xff]
    %v253 = vld [vmem:[#allocation4 + $0x108] sm:$0xff]
    %v254 = vld [vmem:[#allocation4 + $0x110] sm:$0xff]
    %v255 = vld [vmem:[#allocation4 + $0x118] sm:$0xff]
    %v256 = vld [vmem:[#allocation4 + $0x120] sm:$0xff]
    %v257 = vld [vmem:[#allocation4 + $0x128] sm:$0xff]
    %v258 = vld [vmem:[#allocation4 + $0x130] sm:$0xff]
    %v259 = vld [vmem:[#allocation4 + $0x138] sm:$0xff]
    %v260 = vld [vmem:[#allocation4 + $0x140] sm:$0xff]
    %v261 = vld [vmem:[#allocation4 + $0x148] sm:$0xff]
    %v262 = vld [vmem:[#allocation4 + $0x150] sm:$0xff]
    %v263 = vld [vmem:[#allocation4 + $0x158] sm:$0xff]
    %v264 = vld [vmem:[#allocation4 + $0x160] sm:$0xff]
    %v265 = vld [vmem:[#allocation4 + $0x168] sm:$0xff]
    %v266 = vld [vmem:[#allocation4 + $0x170] sm:$0xff]
    %v267 = vld [vmem:[#allocation4 + $0x178] sm:$0xff]
    %v268 = vld [vmem:[#allocation4 + $0x180] sm:$0xff]
    %v269 = vld [vmem:[#allocation4 + $0x188] sm:$0xff]
    %v270 = vld [vmem:[#allocation4 + $0x190] sm:$0xff]
    %v271 = vld [vmem:[#allocation4 + $0x198] sm:$0xff]
    %v272 = vld [vmem:[#allocation4 + $0x1a0] sm:$0xff]
    %v273 = vld [vmem:[#allocation4 + $0x1a8] sm:$0xff]
    %v274 = vld [vmem:[#allocation4 + $0x1b0] sm:$0xff]
    %v275 = vld [vmem:[#allocation4 + $0x1b8] sm:$0xff]
    %v276 = vld [vmem:[#allocation4 + $0x1c0] sm:$0xff]
    %v277 = vld [vmem:[#allocation4 + $0x1c8] sm:$0xff]
    %v278 = vld [vmem:[#allocation4 + $0x1d0] sm:$0xff]
    %v279 = vld [vmem:[#allocation4 + $0x1d8] sm:$0xff]
    %v280 = vld [vmem:[#allocation4 + $0x1e0] sm:$0xff]
    %v281 = vld [vmem:[#allocation4 + $0x1e8] sm:$0xff]
    %v282 = vld [vmem:[#allocation4 + $0x1f0] sm:$0xff]
    %v283 = vld [vmem:[#allocation4 + $0x1f8] sm:$0xff]
    %v284 = vld [vmem:[#allocation4 + $0x200] sm:$0xff]
    %v285 = vld [vmem:[#allocation4 + $0x208] sm:$0xff]
    %v286 = vld [vmem:[#allocation4 + $0x210] sm:$0xff]
    %v287 = vld [vmem:[#allocation4 + $0x218] sm:$0xff]
    %v288 = vld [vmem:[#allocation4 + $0x220] sm:$0xff]
    %v289 = vld [vmem:[#allocation4 + $0x228] sm:$0xff]
    %v290 = vld [vmem:[#allocation4 + $0x230] sm:$0xff]
    %v291 = vld [vmem:[#allocation4 + $0x238] sm:$0xff]
    %v292 = vld [vmem:[#allocation4 + $0x240] sm:$0xff]
    %v293 = vld [vmem:[#allocation4 + $0x248] sm:$0xff]
    %v294 = vld [vmem:[#allocation4 + $0x250] sm:$0xff]
    %v295 = vld [vmem:[#allocation4 + $0x258] sm:$0xff]
    %v296 = vld [vmem:[#allocation4 + $0x260] sm:$0xff]
    %v297 = vld [vmem:[#allocation4 + $0x268] sm:$0xff]
    %v298 = vld [vmem:[#allocation4 + $0x270] sm:$0xff]
    %v299 = vld [vmem:[#allocation4 + $0x278] sm:$0xff]
    %v300 = vld [vmem:[#allocation4 + $0x280] sm:$0xff]
    %v301 = vld [vmem:[#allocation4 + $0x288] sm:$0xff]
    %v302 = vld [vmem:[#allocation4 + $0x290] sm:$0xff]
    %v303 = vld [vmem:[#allocation4 + $0x298] sm:$0xff]
    %v304 = vld [vmem:[#allocation4 + $0x2a0] sm:$0xff]
    %v305 = vld [vmem:[#allocation4 + $0x2a8] sm:$0xff]
    %v306 = vld [vmem:[#allocation4 + $0x2b0] sm:$0xff]
    %v307 = vld [vmem:[#allocation4 + $0x2b8] sm:$0xff]
    %v308 = vld [vmem:[#allocation4 + $0x2c0] sm:$0xff]
    %v309 = vld [vmem:[#allocation4 + $0x2c8] sm:$0xff]
    %v310 = vld [vmem:[#allocation4 + $0x2d0] sm:$0xff]
    %v311 = vld [vmem:[#allocation4 + $0x2d8] sm:$0xff]
    %v312 = vld [vmem:[#allocation4 + $0x2e0] sm:$0xff]
    %v313 = vld [vmem:[#allocation4 + $0x2e8] sm:$0xff]
    %v314 = vld [vmem:[#allocation4 + $0x2f0] sm:$0xff]
    %v315 = vld [vmem:[#allocation4 + $0x2f8] sm:$0xff]
    %v316 = vld [vmem:[#allocation4 + $0x300] sm:$0xff]
    %v317 = vld [vmem:[#allocation4 + $0x308] sm:$0xff]
    %v318 = vld [vmem:[#allocation4 + $0x310] sm:$0xff]
    %v319 = vld [vmem:[#allocation4 + $0x318] sm:$0xff]
    %v320 = vld [vmem:[#allocation4 + $0x320] sm:$0xff]
    %v321 = vld [vmem:[#allocation4 + $0x328] sm:$0xff]
    %v322 = vld [vmem:[#allocation4 + $0x330] sm:$0xff]
    %v323 = vld [vmem:[#allocation4 + $0x338] sm:$0xff]
    %v324 = vld [vmem:[#allocation4 + $0x340] sm:$0xff]
    %v325 = vld [vmem:[#allocation4 + $0x348] sm:$0xff]
    %v326 = vld [vmem:[#allocation4 + $0x350] sm:$0xff]
    %v327 = vld [vmem:[#allocation4 + $0x358] sm:$0xff]
    %v328 = vld [vmem:[#allocation4 + $0x360] sm:$0xff]
    %v329 = vld [vmem:[#allocation4 + $0x368] sm:$0xff]
    %v330 = vld [vmem:[#allocation4 + $0x370] sm:$0xff]
    %v331 = vld [vmem:[#allocation4 + $0x378] sm:$0xff]
    %v332 = vld [vmem:[#allocation4 + $0x380] sm:$0xff]
    %v333 = vld [vmem:[#allocation4 + $0x388] sm:$0xff]
    %v334 = vld [vmem:[#allocation4 + $0x390] sm:$0xff]
    %v335 = vld [vmem:[#allocation4 + $0x398] sm:$0xff]
    %v336 = vld [vmem:[#allocation4 + $0x3a0] sm:$0xff]
    %v337 = vld [vmem:[#allocation4 + $0x3a8] sm:$0xff]
    %v338 = vld [vmem:[#allocation4 + $0x3b0] sm:$0xff]
    %v339 = vld [vmem:[#allocation4 + $0x3b8] sm:$0xff]
    %v340 = vld [vmem:[#allocation4 + $0x3c0] sm:$0xff]
    %v341 = vld [vmem:[#allocation4 + $0x3c8] sm:$0xff]
    %v342 = vld [vmem:[#allocation4 + $0x3d0] sm:$0xff]
    %v343 = vld [vmem:[#allocation4 + $0x3d8] sm:$0xff]
    %v344 = vld [vmem:[#allocation4 + $0x3e0] sm:$0xff]
    %v345 = vld [vmem:[#allocation4 + $0x3e8] sm:$0xff]
    %v346 = vld [vmem:[#allocation4 + $0x3f0] sm:$0xff]
    %v347 = vld [vmem:[#allocation4 + $0x3f8] sm:$0xff]
    %v348 = vld [vmem:[#allocation4 + $0x400] sm:$0xff]
    %v349 = vld [vmem:[#allocation4 + $0x408] sm:$0xff]
    %v350 = vld [vmem:[#allocation4 + $0x410] sm:$0xff]
    %v351 = vld [vmem:[#allocation4 + $0x418] sm:$0xff]
    %v352 = vld [vmem:[#allocation4 + $0x420] sm:$0xff]
    %v353 = vld [vmem:[#allocation4 + $0x428] sm:$0xff]
    %v354 = vld [vmem:[#allocation4 + $0x430] sm:$0xff]
    %v355 = vld [vmem:[#allocation4 + $0x438] sm:$0xff]
    %v356 = vld [vmem:[#allocation4 + $0x440] sm:$0xff]
    %v357 = vld [vmem:[#allocation4 + $0x448] sm:$0xff]
    %v358 = vld [vmem:[#allocation4 + $0x450] sm:$0xff]
    %v359 = vld [vmem:[#allocation4 + $0x458] sm:$0xff]
    %v360 = vld [vmem:[#allocation4 + $0x460] sm:$0xff]
    %v361 = vld [vmem:[#allocation4 + $0x468] sm:$0xff]
    %v362 = vld [vmem:[#allocation4 + $0x470] sm:$0xff]
    %v363 = vld [vmem:[#allocation4 + $0x478] sm:$0xff]
    %v364 = vld [vmem:[#allocation4 + $0x480] sm:$0xff]
    %v365 = vld [vmem:[#allocation4 + $0x488] sm:$0xff]
    %v366 = vld [vmem:[#allocation4 + $0x490] sm:$0xff]
    %v367 = vld [vmem:[#allocation4 + $0x498] sm:$0xff]
    %v368 = vld [vmem:[#allocation4 + $0x4a0] sm:$0xff]
    %v369 = vld [vmem:[#allocation4 + $0x4a8] sm:$0xff]
    %v370 = vld [vmem:[#allocation4 + $0x4b0] sm:$0xff]
    %v371 = vld [vmem:[#allocation4 + $0x4b8] sm:$0xff]
    %v372 = vld [vmem:[#allocation4 + $0x4c0] sm:$0xff]
    %v373 = vld [vmem:[#allocation4 + $0x4c8] sm:$0xff]
    %v374 = vld [vmem:[#allocation4 + $0x4d0] sm:$0xff]
    %v375 = vld [vmem:[#allocation4 + $0x4d8] sm:$0xff]
    %v376 = vld [vmem:[#allocation4 + $0x4e0] sm:$0xff]
    %v377 = vld [vmem:[#allocation4 + $0x4e8] sm:$0xff]
    %v378 = vld [vmem:[#allocation4 + $0x4f0] sm:$0xff]
    %v379 = vld [vmem:[#allocation4 + $0x4f8] sm:$0xff]
    %v380 = vld [vmem:[#allocation4 + $0x500] sm:$0xff]
    %v381 = vld [vmem:[#allocation4 + $0x508] sm:$0xff]
    %v382 = vld [vmem:[#allocation4 + $0x510] sm:$0xff]
    %v383 = vld [vmem:[#allocation4 + $0x518] sm:$0xff]
    %v384 = vld [vmem:[#allocation4 + $0x520] sm:$0xff]
    %v385 = vld [vmem:[#allocation4 + $0x528] sm:$0xff]
    %v386 = vld [vmem:[#allocation4 + $0x530] sm:$0xff]
    %v387 = vld [vmem:[#allocation4 + $0x538] sm:$0xff]
    %v388 = vld [vmem:[#allocation4 + $0x540] sm:$0xff]
    %v389 = vld [vmem:[#allocation4 + $0x548] sm:$0xff]
    %v390 = vld [vmem:[#allocation4 + $0x550] sm:$0xff]
    %v391 = vld [vmem:[#allocation4 + $0x558] sm:$0xff]
    %v392 = vld [vmem:[#allocation4 + $0x560] sm:$0xff]
    %v393 = vld [vmem:[#allocation4 + $0x568] sm:$0xff]
    %v394 = vld [vmem:[#allocation4 + $0x570] sm:$0xff]
    %v395 = vld [vmem:[#allocation4 + $0x578] sm:$0xff]
    %v396 = vld [vmem:[#allocation4 + $0x580] sm:$0xff]
    %v397 = vld [vmem:[#allocation4 + $0x588] sm:$0xff]
    %v398 = vld [vmem:[#allocation4 + $0x590] sm:$0xff]
    %v399 = vld [vmem:[#allocation4 + $0x598] sm:$0xff]
    %v400 = vld [vmem:[#allocation4 + $0x5a0] sm:$0xff]
    %v401 = vld [vmem:[#allocation4 + $0x5a8] sm:$0xff]
    %v402 = vld [vmem:[#allocation4 + $0x5b0] sm:$0xff]
    %v403 = vld [vmem:[#allocation4 + $0x5b8] sm:$0xff]
    %v404 = vld [vmem:[#allocation4 + $0x5c0] sm:$0xff]
    %v405 = vld [vmem:[#allocation4 + $0x5c8] sm:$0xff]
    %v406 = vld [vmem:[#allocation4 + $0x5d0] sm:$0xff]
    %v407 = vld [vmem:[#allocation4 + $0x5d8] sm:$0xff]
    %v408 = vld [vmem:[#allocation4 + $0x5e0] sm:$0xff]
    %v409 = vld [vmem:[#allocation4 + $0x5e8] sm:$0xff]
    %v410 = vld [vmem:[#allocation4 + $0x5f0] sm:$0xff]
    %v411 = vld [vmem:[#allocation4 + $0x5f8] sm:$0xff]
    %v412 = vld [vmem:[#allocation4 + $0x600] sm:$0xff]
    %v413 = vld [vmem:[#allocation4 + $0x608] sm:$0xff]
    %v414 = vld [vmem:[#allocation4 + $0x610] sm:$0xff]
    %v415 = vld [vmem:[#allocation4 + $0x618] sm:$0xff]
    %v416 = vld [vmem:[#allocation4 + $0x620] sm:$0xff]
    %v417 = vld [vmem:[#allocation4 + $0x628] sm:$0xff]
    %v418 = vld [vmem:[#allocation4 + $0x630] sm:$0xff]
    %v419 = vld [vmem:[#allocation4 + $0x638] sm:$0xff]
    %v420 = vld [vmem:[#allocation4 + $0x640] sm:$0xff]
    %v421 = vld [vmem:[#allocation4 + $0x648] sm:$0xff]
    %v422 = vld [vmem:[#allocation4 + $0x650] sm:$0xff]
    %v423 = vld [vmem:[#allocation4 + $0x658] sm:$0xff]
    %v424 = vld [vmem:[#allocation4 + $0x660] sm:$0xff]
    %v425 = vld [vmem:[#allocation4 + $0x668] sm:$0xff]
    %v426 = vld [vmem:[#allocation4 + $0x670] sm:$0xff]
    %v427 = vld [vmem:[#allocation4 + $0x678] sm:$0xff]
    %v428 = vld [vmem:[#allocation4 + $0x680] sm:$0xff]
    %v429 = vld [vmem:[#allocation4 + $0x688] sm:$0xff]
    %v430 = vld [vmem:[#allocation4 + $0x690] sm:$0xff]
    %v431 = vld [vmem:[#allocation4 + $0x698] sm:$0xff]
    %v432 = vld [vmem:[#allocation4 + $0x6a0] sm:$0xff]
    %v433 = vld [vmem:[#allocation4 + $0x6a8] sm:$0xff]
    %v434 = vld [vmem:[#allocation4 + $0x6b0] sm:$0xff]
    %v435 = vld [vmem:[#allocation4 + $0x6b8] sm:$0xff]
    %v436 = vld [vmem:[#allocation4 + $0x6c0] sm:$0xff]
    %v437 = vld [vmem:[#allocation4 + $0x6c8] sm:$0xff]
    %v438 = vld [vmem:[#allocation4 + $0x6d0] sm:$0xff]
    %v439 = vld [vmem:[#allocation4 + $0x6d8] sm:$0xff]
    %v440 = vld [vmem:[#allocation4 + $0x6e0] sm:$0xff]
    %v441 = vld [vmem:[#allocation4 + $0x6e8] sm:$0xff]
    %v442 = vld [vmem:[#allocation4 + $0x6f0] sm:$0xff]
    %v443 = vld [vmem:[#allocation4 + $0x6f8] sm:$0xff]
    %v444 = vld [vmem:[#allocation4 + $0x700] sm:$0xff]
    %v445 = vld [vmem:[#allocation4 + $0x708] sm:$0xff]
    %v446 = vld [vmem:[#allocation4 + $0x710] sm:$0xff]
    %v447 = vld [vmem:[#allocation4 + $0x718] sm:$0xff]
    %v448 = vld [vmem:[#allocation4 + $0x720] sm:$0xff]
    %v449 = vld [vmem:[#allocation4 + $0x728] sm:$0xff]
    %v450 = vld [vmem:[#allocation4 + $0x730] sm:$0xff]
    %v451 = vld [vmem:[#allocation4 + $0x738] sm:$0xff]
    %v452 = vld [vmem:[#allocation4 + $0x740] sm:$0xff]
    %v453 = vld [vmem:[#allocation4 + $0x748] sm:$0xff]
    %v454 = vld [vmem:[#allocation4 + $0x750] sm:$0xff]
    %v455 = vld [vmem:[#allocation4 + $0x758] sm:$0xff]
    %v456 = vld [vmem:[#allocation4 + $0x760] sm:$0xff]
    %v457 = vld [vmem:[#allocation4 + $0x768] sm:$0xff]
    %v458 = vld [vmem:[#allocation4 + $0x770] sm:$0xff]
    %v459 = vld [vmem:[#allocation4 + $0x778] sm:$0xff]
    %v460 = vld [vmem:[#allocation4 + $0x780] sm:$0xff]
    %v461 = vld [vmem:[#allocation4 + $0x788] sm:$0xff]
    %v462 = vld [vmem:[#allocation4 + $0x790] sm:$0xff]
    %v463 = vld [vmem:[#allocation4 + $0x798] sm:$0xff]
    %v464 = vld [vmem:[#allocation4 + $0x7a0] sm:$0xff]
    %v465 = vld [vmem:[#allocation4 + $0x7a8] sm:$0xff]
    %v466 = vld [vmem:[#allocation4 + $0x7b0] sm:$0xff]
    %v467 = vld [vmem:[#allocation4 + $0x7b8] sm:$0xff]
    %v468 = vld [vmem:[#allocation4 + $0x7c0] sm:$0xff]
    %v469 = vld [vmem:[#allocation4 + $0x7c8] sm:$0xff]
    %v470 = vld [vmem:[#allocation4 + $0x7d0] sm:$0xff]
    %v471 = vld [vmem:[#allocation4 + $0x7d8] sm:$0xff]
    %v472 = vld [vmem:[#allocation4 + $0x7e0] sm:$0xff]
    %v473 = vld [vmem:[#allocation4 + $0x7e8] sm:$0xff]
    %v474 = vld [vmem:[#allocation4 + $0x7f0] sm:$0xff]
    %v475 = vld [vmem:[#allocation4 + $0x7f8] sm:$0xff]
    %v476 = vld [vmem:[%s4] sm:$0xff]
    %v478 = vperm.slane %v476, 0
    %v479 = vperm.slane %v476, 1
    %v480 = vperm.slane %v476, 2
    %v481 = vperm.slane %v476, 3
    %v482 = vperm.slane %v476, 4
    %v483 = vperm.slane %v476, 5
    %v484 = vperm.slane %v476, 6
    %v485 = vperm.slane %v476, 7
    %v750 = vunpack.c.l.b16 %v220
    %v751 = vunpack.c.h.b16 %v220
    %v752 = vunpack.c.l.b16 %v221
    %v753 = vunpack.c.h.b16 %v221
    %v754 = vunpack.c.l.b16 %v222
    %v755 = vunpack.c.h.b16 %v222
    %v756 = vunpack.c.l.b16 %v223
    %v757 = vunpack.c.h.b16 %v223
    %v758 = vunpack.c.l.b16 %v224
    %v759 = vunpack.c.h.b16 %v224
    %v760 = vunpack.c.l.b16 %v225
    %v761 = vunpack.c.h.b16 %v225
    %v762 = vunpack.c.l.b16 %v226
    %v763 = vunpack.c.h.b16 %v226
    %v764 = vunpack.c.l.b16 %v227
    %v765 = vunpack.c.h.b16 %v227
    %v766 = vunpack.c.l.b16 %v228
    %v767 = vunpack.c.h.b16 %v228
    %v768 = vunpack.c.l.b16 %v229
    %v769 = vunpack.c.h.b16 %v229
    %v770 = vunpack.c.l.b16 %v230
    %v771 = vunpack.c.h.b16 %v230
    %v772 = vunpack.c.l.b16 %v231
    %v773 = vunpack.c.h.b16 %v231
    %v774 = vunpack.c.l.b16 %v232
    %v775 = vunpack.c.h.b16 %v232
    %v776 = vunpack.c.l.b16 %v233
    %v777 = vunpack.c.h.b16 %v233
    %v778 = vunpack.c.l.b16 %v234
    %v779 = vunpack.c.h.b16 %v234
    %v780 = vunpack.c.l.b16 %v235
    %v781 = vunpack.c.h.b16 %v235
    %v782 = vunpack.c.l.b16 %v236
    %v783 = vunpack.c.h.b16 %v236
    %v784 = vunpack.c.l.b16 %v237
    %v785 = vunpack.c.h.b16 %v237
    %v786 = vunpack.c.l.b16 %v238
    %v787 = vunpack.c.h.b16 %v238
    %v788 = vunpack.c.l.b16 %v239
    %v789 = vunpack.c.h.b16 %v239
    %v790 = vunpack.c.l.b16 %v240
    %v791 = vunpack.c.h.b16 %v240
    %v792 = vunpack.c.l.b16 %v241
    %v793 = vunpack.c.h.b16 %v241
    %v794 = vunpack.c.l.b16 %v242
    %v795 = vunpack.c.h.b16 %v242
    %v796 = vunpack.c.l.b16 %v243
    %v797 = vunpack.c.h.b16 %v243
    %v798 = vunpack.c.l.b16 %v244
    %v799 = vunpack.c.h.b16 %v244
    %v800 = vunpack.c.l.b16 %v245
    %v801 = vunpack.c.h.b16 %v245
    %v802 = vunpack.c.l.b16 %v246
    %v803 = vunpack.c.h.b16 %v246
    %v804 = vunpack.c.l.b16 %v247
    %v805 = vunpack.c.h.b16 %v247
    %v806 = vunpack.c.l.b16 %v248
    %v807 = vunpack.c.h.b16 %v248
    %v808 = vunpack.c.l.b16 %v249
    %v809 = vunpack.c.h.b16 %v249
    %v810 = vunpack.c.l.b16 %v250
    %v811 = vunpack.c.h.b16 %v250
    %v812 = vunpack.c.l.b16 %v251
    %v813 = vunpack.c.h.b16 %v251
    %v814 = vunpack.c.l.b16 %v252
    %v815 = vunpack.c.h.b16 %v252
    %v816 = vunpack.c.l.b16 %v253
    %v817 = vunpack.c.h.b16 %v253
    %v818 = vunpack.c.l.b16 %v254
    %v819 = vunpack.c.h.b16 %v254
    %v820 = vunpack.c.l.b16 %v255
    %v821 = vunpack.c.h.b16 %v255
    %v822 = vunpack.c.l.b16 %v256
    %v823 = vunpack.c.h.b16 %v256
    %v824 = vunpack.c.l.b16 %v257
    %v825 = vunpack.c.h.b16 %v257
    %v826 = vunpack.c.l.b16 %v258
    %v827 = vunpack.c.h.b16 %v258
    %v828 = vunpack.c.l.b16 %v259
    %v829 = vunpack.c.h.b16 %v259
    %v830 = vunpack.c.l.b16 %v260
    %v831 = vunpack.c.h.b16 %v260
    %v832 = vunpack.c.l.b16 %v261
    %v833 = vunpack.c.h.b16 %v261
    %v834 = vunpack.c.l.b16 %v262
    %v835 = vunpack.c.h.b16 %v262
    %v836 = vunpack.c.l.b16 %v263
    %v837 = vunpack.c.h.b16 %v263
    %v838 = vunpack.c.l.b16 %v264
    %v839 = vunpack.c.h.b16 %v264
    %v840 = vunpack.c.l.b16 %v265
    %v841 = vunpack.c.h.b16 %v265
    %v842 = vunpack.c.l.b16 %v266
    %v843 = vunpack.c.h.b16 %v266
    %v844 = vunpack.c.l.b16 %v267
    %v845 = vunpack.c.h.b16 %v267
    %v846 = vunpack.c.l.b16 %v268
    %v847 = vunpack.c.h.b16 %v268
    %v848 = vunpack.c.l.b16 %v269
    %v849 = vunpack.c.h.b16 %v269
    %v850 = vunpack.c.l.b16 %v270
    %v851 = vunpack.c.h.b16 %v270
    %v852 = vunpack.c.l.b16 %v271
    %v853 = vunpack.c.h.b16 %v271
    %v854 = vunpack.c.l.b16 %v272
    %v855 = vunpack.c.h.b16 %v272
    %v856 = vunpack.c.l.b16 %v273
    %v857 = vunpack.c.h.b16 %v273
    %v858 = vunpack.c.l.b16 %v274
    %v859 = vunpack.c.h.b16 %v274
    %v860 = vunpack.c.l.b16 %v275
    %v861 = vunpack.c.h.b16 %v275
    %v862 = vunpack.c.l.b16 %v276
    %v863 = vunpack.c.h.b16 %v276
    %v864 = vunpack.c.l.b16 %v277
    %v865 = vunpack.c.h.b16 %v277
    %v866 = vunpack.c.l.b16 %v278
    %v867 = vunpack.c.h.b16 %v278
    %v868 = vunpack.c.l.b16 %v279
    %v869 = vunpack.c.h.b16 %v279
    %v870 = vunpack.c.l.b16 %v280
    %v871 = vunpack.c.h.b16 %v280
    %v872 = vunpack.c.l.b16 %v281
    %v873 = vunpack.c.h.b16 %v281
    %v874 = vunpack.c.l.b16 %v282
    %v875 = vunpack.c.h.b16 %v282
    %v876 = vunpack.c.l.b16 %v283
    %v877 = vunpack.c.h.b16 %v283
    %v878 = vunpack.c.l.b16 %v284
    %v879 = vunpack.c.h.b16 %v284
    %v880 = vunpack.c.l.b16 %v285
    %v881 = vunpack.c.h.b16 %v285
    %v882 = vunpack.c.l.b16 %v286
    %v883 = vunpack.c.h.b16 %v286
    %v884 = vunpack.c.l.b16 %v287
    %v885 = vunpack.c.h.b16 %v287
    %v886 = vunpack.c.l.b16 %v288
    %v887 = vunpack.c.h.b16 %v288
    %v888 = vunpack.c.l.b16 %v289
    %v889 = vunpack.c.h.b16 %v289
    %v890 = vunpack.c.l.b16 %v290
    %v891 = vunpack.c.h.b16 %v290
    %v892 = vunpack.c.l.b16 %v291
    %v893 = vunpack.c.h.b16 %v291
    %v894 = vunpack.c.l.b16 %v292
    %v895 = vunpack.c.h.b16 %v292
    %v896 = vunpack.c.l.b16 %v293
    %v897 = vunpack.c.h.b16 %v293
    %v898 = vunpack.c.l.b16 %v294
    %v899 = vunpack.c.h.b16 %v294
    %v900 = vunpack.c.l.b16 %v295
    %v901 = vunpack.c.h.b16 %v295
    %v902 = vunpack.c.l.b16 %v296
    %v903 = vunpack.c.h.b16 %v296
    %v904 = vunpack.c.l.b16 %v297
    %v905 = vunpack.c.h.b16 %v297
    %v906 = vunpack.c.l.b16 %v298
    %v907 = vunpack.c.h.b16 %v298
    %v908 = vunpack.c.l.b16 %v299
    %v909 = vunpack.c.h.b16 %v299
    %v910 = vunpack.c.l.b16 %v300
    %v911 = vunpack.c.h.b16 %v300
    %v912 = vunpack.c.l.b16 %v301
    %v913 = vunpack.c.h.b16 %v301
    %v914 = vunpack.c.l.b16 %v302
    %v915 = vunpack.c.h.b16 %v302
    %v916 = vunpack.c.l.b16 %v303
    %v917 = vunpack.c.h.b16 %v303
    %v918 = vunpack.c.l.b16 %v304
    %v919 = vunpack.c.h.b16 %v304
    %v920 = vunpack.c.l.b16 %v305
    %v921 = vunpack.c.h.b16 %v305
    %v922 = vunpack.c.l.b16 %v306
    %v923 = vunpack.c.h.b16 %v306
    %v924 = vunpack.c.l.b16 %v307
    %v925 = vunpack.c.h.b16 %v307
    %v926 = vunpack.c.l.b16 %v308
    %v927 = vunpack.c.h.b16 %v308
    %v928 = vunpack.c.l.b16 %v309
    %v929 = vunpack.c.h.b16 %v309
    %v930 = vunpack.c.l.b16 %v310
    %v931 = vunpack.c.h.b16 %v310
    %v932 = vunpack.c.l.b16 %v311
    %v933 = vunpack.c.h.b16 %v311
    %v934 = vunpack.c.l.b16 %v312
    %v935 = vunpack.c.h.b16 %v312
    %v936 = vunpack.c.l.b16 %v313
    %v937 = vunpack.c.h.b16 %v313
    %v938 = vunpack.c.l.b16 %v314
    %v939 = vunpack.c.h.b16 %v314
    %v940 = vunpack.c.l.b16 %v315
    %v941 = vunpack.c.h.b16 %v315
    %v942 = vunpack.c.l.b16 %v316
    %v943 = vunpack.c.h.b16 %v316
    %v944 = vunpack.c.l.b16 %v317
    %v945 = vunpack.c.h.b16 %v317
    %v946 = vunpack.c.l.b16 %v318
    %v947 = vunpack.c.h.b16 %v318
    %v948 = vunpack.c.l.b16 %v319
    %v949 = vunpack.c.h.b16 %v319
    %v950 = vunpack.c.l.b16 %v320
    %v951 = vunpack.c.h.b16 %v320
    %v952 = vunpack.c.l.b16 %v321
    %v953 = vunpack.c.h.b16 %v321
    %v954 = vunpack.c.l.b16 %v322
    %v955 = vunpack.c.h.b16 %v322
    %v956 = vunpack.c.l.b16 %v323
    %v957 = vunpack.c.h.b16 %v323
    %v958 = vunpack.c.l.b16 %v324
    %v959 = vunpack.c.h.b16 %v324
    %v960 = vunpack.c.l.b16 %v325
    %v961 = vunpack.c.h.b16 %v325
    %v962 = vunpack.c.l.b16 %v326
    %v963 = vunpack.c.h.b16 %v326
    %v964 = vunpack.c.l.b16 %v327
    %v965 = vunpack.c.h.b16 %v327
    %v966 = vunpack.c.l.b16 %v328
    %v967 = vunpack.c.h.b16 %v328
    %v968 = vunpack.c.l.b16 %v329
    %v969 = vunpack.c.h.b16 %v329
    %v970 = vunpack.c.l.b16 %v330
    %v971 = vunpack.c.h.b16 %v330
    %v972 = vunpack.c.l.b16 %v331
    %v973 = vunpack.c.h.b16 %v331
    %v974 = vunpack.c.l.b16 %v332
    %v975 = vunpack.c.h.b16 %v332
    %v976 = vunpack.c.l.b16 %v333
    %v977 = vunpack.c.h.b16 %v333
    %v978 = vunpack.c.l.b16 %v334
    %v979 = vunpack.c.h.b16 %v334
    %v980 = vunpack.c.l.b16 %v335
    %v981 = vunpack.c.h.b16 %v335
    %v982 = vunpack.c.l.b16 %v336
    %v983 = vunpack.c.h.b16 %v336
    %v984 = vunpack.c.l.b16 %v337
    %v985 = vunpack.c.h.b16 %v337
    %v986 = vunpack.c.l.b16 %v338
    %v987 = vunpack.c.h.b16 %v338
    %v988 = vunpack.c.l.b16 %v339
    %v989 = vunpack.c.h.b16 %v339
    %v990 = vunpack.c.l.b16 %v340
    %v991 = vunpack.c.h.b16 %v340
    %v992 = vunpack.c.l.b16 %v341
    %v993 = vunpack.c.h.b16 %v341
    %v994 = vunpack.c.l.b16 %v342
    %v995 = vunpack.c.h.b16 %v342
    %v996 = vunpack.c.l.b16 %v343
    %v997 = vunpack.c.h.b16 %v343
    %v998 = vunpack.c.l.b16 %v344
    %v999 = vunpack.c.h.b16 %v344
    %v1000 = vunpack.c.l.b16 %v345
    %v1001 = vunpack.c.h.b16 %v345
    %v1002 = vunpack.c.l.b16 %v346
    %v1003 = vunpack.c.h.b16 %v346
    %v1004 = vunpack.c.l.b16 %v347
    %v1005 = vunpack.c.h.b16 %v347
    %v1006 = vunpack.c.l.b16 %v348
    %v1007 = vunpack.c.h.b16 %v348
    %v1008 = vunpack.c.l.b16 %v349
    %v1009 = vunpack.c.h.b16 %v349
    %v1010 = vunpack.c.l.b16 %v350
    %v1011 = vunpack.c.h.b16 %v350
    %v1012 = vunpack.c.l.b16 %v351
    %v1013 = vunpack.c.h.b16 %v351
    %v1014 = vunpack.c.l.b16 %v352
    %v1015 = vunpack.c.h.b16 %v352
    %v1016 = vunpack.c.l.b16 %v353
    %v1017 = vunpack.c.h.b16 %v353
    %v1018 = vunpack.c.l.b16 %v354
    %v1019 = vunpack.c.h.b16 %v354
    %v1020 = vunpack.c.l.b16 %v355
    %v1021 = vunpack.c.h.b16 %v355
    %v1022 = vunpack.c.l.b16 %v356
    %v1023 = vunpack.c.h.b16 %v356
    %v1024 = vunpack.c.l.b16 %v357
    %v1025 = vunpack.c.h.b16 %v357
    %v1026 = vunpack.c.l.b16 %v358
    %v1027 = vunpack.c.h.b16 %v358
    %v1028 = vunpack.c.l.b16 %v359
    %v1029 = vunpack.c.h.b16 %v359
    %v1030 = vunpack.c.l.b16 %v360
    %v1031 = vunpack.c.h.b16 %v360
    %v1032 = vunpack.c.l.b16 %v361
    %v1033 = vunpack.c.h.b16 %v361
    %v1034 = vunpack.c.l.b16 %v362
    %v1035 = vunpack.c.h.b16 %v362
    %v1036 = vunpack.c.l.b16 %v363
    %v1037 = vunpack.c.h.b16 %v363
    %v1038 = vunpack.c.l.b16 %v364
    %v1039 = vunpack.c.h.b16 %v364
    %v1040 = vunpack.c.l.b16 %v365
    %v1041 = vunpack.c.h.b16 %v365
    %v1042 = vunpack.c.l.b16 %v366
    %v1043 = vunpack.c.h.b16 %v366
    %v1044 = vunpack.c.l.b16 %v367
    %v1045 = vunpack.c.h.b16 %v367
    %v1046 = vunpack.c.l.b16 %v368
    %v1047 = vunpack.c.h.b16 %v368
    %v1048 = vunpack.c.l.b16 %v369
    %v1049 = vunpack.c.h.b16 %v369
    %v1050 = vunpack.c.l.b16 %v370
    %v1051 = vunpack.c.h.b16 %v370
    %v1052 = vunpack.c.l.b16 %v371
    %v1053 = vunpack.c.h.b16 %v371
    %v1054 = vunpack.c.l.b16 %v372
    %v1055 = vunpack.c.h.b16 %v372
    %v1056 = vunpack.c.l.b16 %v373
    %v1057 = vunpack.c.h.b16 %v373
    %v1058 = vunpack.c.l.b16 %v374
    %v1059 = vunpack.c.h.b16 %v374
    %v1060 = vunpack.c.l.b16 %v375
    %v1061 = vunpack.c.h.b16 %v375
    %v1062 = vunpack.c.l.b16 %v376
    %v1063 = vunpack.c.h.b16 %v376
    %v1064 = vunpack.c.l.b16 %v377
    %v1065 = vunpack.c.h.b16 %v377
    %v1066 = vunpack.c.l.b16 %v378
    %v1067 = vunpack.c.h.b16 %v378
    %v1068 = vunpack.c.l.b16 %v379
    %v1069 = vunpack.c.h.b16 %v379
    %v1070 = vunpack.c.l.b16 %v380
    %v1071 = vunpack.c.h.b16 %v380
    %v1072 = vunpack.c.l.b16 %v381
    %v1073 = vunpack.c.h.b16 %v381
    %v1074 = vunpack.c.l.b16 %v382
    %v1075 = vunpack.c.h.b16 %v382
    %v1076 = vunpack.c.l.b16 %v383
    %v1077 = vunpack.c.h.b16 %v383
    %v1078 = vunpack.c.l.b16 %v384
    %v1079 = vunpack.c.h.b16 %v384
    %v1080 = vunpack.c.l.b16 %v385
    %v1081 = vunpack.c.h.b16 %v385
    %v1082 = vunpack.c.l.b16 %v386
    %v1083 = vunpack.c.h.b16 %v386
    %v1084 = vunpack.c.l.b16 %v387
    %v1085 = vunpack.c.h.b16 %v387
    %v1086 = vunpack.c.l.b16 %v388
    %v1087 = vunpack.c.h.b16 %v388
    %v1088 = vunpack.c.l.b16 %v389
    %v1089 = vunpack.c.h.b16 %v389
    %v1090 = vunpack.c.l.b16 %v390
    %v1091 = vunpack.c.h.b16 %v390
    %v1092 = vunpack.c.l.b16 %v391
    %v1093 = vunpack.c.h.b16 %v391
    %v1094 = vunpack.c.l.b16 %v392
    %v1095 = vunpack.c.h.b16 %v392
    %v1096 = vunpack.c.l.b16 %v393
    %v1097 = vunpack.c.h.b16 %v393
    %v1098 = vunpack.c.l.b16 %v394
    %v1099 = vunpack.c.h.b16 %v394
    %v1100 = vunpack.c.l.b16 %v395
    %v1101 = vunpack.c.h.b16 %v395
    %v1102 = vunpack.c.l.b16 %v396
    %v1103 = vunpack.c.h.b16 %v396
    %v1104 = vunpack.c.l.b16 %v397
    %v1105 = vunpack.c.h.b16 %v397
    %v1106 = vunpack.c.l.b16 %v398
    %v1107 = vunpack.c.h.b16 %v398
    %v1108 = vunpack.c.l.b16 %v399
    %v1109 = vunpack.c.h.b16 %v399
    %v1110 = vunpack.c.l.b16 %v400
    %v1111 = vunpack.c.h.b16 %v400
    %v1112 = vunpack.c.l.b16 %v401
    %v1113 = vunpack.c.h.b16 %v401
    %v1114 = vunpack.c.l.b16 %v402
    %v1115 = vunpack.c.h.b16 %v402
    %v1116 = vunpack.c.l.b16 %v403
    %v1117 = vunpack.c.h.b16 %v403
    %v1118 = vunpack.c.l.b16 %v404
    %v1119 = vunpack.c.h.b16 %v404
    %v1120 = vunpack.c.l.b16 %v405
    %v1121 = vunpack.c.h.b16 %v405
    %v1122 = vunpack.c.l.b16 %v406
    %v1123 = vunpack.c.h.b16 %v406
    %v1124 = vunpack.c.l.b16 %v407
    %v1125 = vunpack.c.h.b16 %v407
    %v1126 = vunpack.c.l.b16 %v408
    %v1127 = vunpack.c.h.b16 %v408
    %v1128 = vunpack.c.l.b16 %v409
    %v1129 = vunpack.c.h.b16 %v409
    %v1130 = vunpack.c.l.b16 %v410
    %v1131 = vunpack.c.h.b16 %v410
    %v1132 = vunpack.c.l.b16 %v411
    %v1133 = vunpack.c.h.b16 %v411
    %v1134 = vunpack.c.l.b16 %v412
    %v1135 = vunpack.c.h.b16 %v412
    %v1136 = vunpack.c.l.b16 %v413
    %v1137 = vunpack.c.h.b16 %v413
    %v1138 = vunpack.c.l.b16 %v414
    %v1139 = vunpack.c.h.b16 %v414
    %v1140 = vunpack.c.l.b16 %v415
    %v1141 = vunpack.c.h.b16 %v415
    %v1142 = vunpack.c.l.b16 %v416
    %v1143 = vunpack.c.h.b16 %v416
    %v1144 = vunpack.c.l.b16 %v417
    %v1145 = vunpack.c.h.b16 %v417
    %v1146 = vunpack.c.l.b16 %v418
    %v1147 = vunpack.c.h.b16 %v418
    %v1148 = vunpack.c.l.b16 %v419
    %v1149 = vunpack.c.h.b16 %v419
    %v1150 = vunpack.c.l.b16 %v420
    %v1151 = vunpack.c.h.b16 %v420
    %v1152 = vunpack.c.l.b16 %v421
    %v1153 = vunpack.c.h.b16 %v421
    %v1154 = vunpack.c.l.b16 %v422
    %v1155 = vunpack.c.h.b16 %v422
    %v1156 = vunpack.c.l.b16 %v423
    %v1157 = vunpack.c.h.b16 %v423
    %v1158 = vunpack.c.l.b16 %v424
    %v1159 = vunpack.c.h.b16 %v424
    %v1160 = vunpack.c.l.b16 %v425
    %v1161 = vunpack.c.h.b16 %v425
    %v1162 = vunpack.c.l.b16 %v426
    %v1163 = vunpack.c.h.b16 %v426
    %v1164 = vunpack.c.l.b16 %v427
    %v1165 = vunpack.c.h.b16 %v427
    %v1166 = vunpack.c.l.b16 %v428
    %v1167 = vunpack.c.h.b16 %v428
    %v1168 = vunpack.c.l.b16 %v429
    %v1169 = vunpack.c.h.b16 %v429
    %v1170 = vunpack.c.l.b16 %v430
    %v1171 = vunpack.c.h.b16 %v430
    %v1172 = vunpack.c.l.b16 %v431
    %v1173 = vunpack.c.h.b16 %v431
    %v1174 = vunpack.c.l.b16 %v432
    %v1175 = vunpack.c.h.b16 %v432
    %v1176 = vunpack.c.l.b16 %v433
    %v1177 = vunpack.c.h.b16 %v433
    %v1178 = vunpack.c.l.b16 %v434
    %v1179 = vunpack.c.h.b16 %v434
    %v1180 = vunpack.c.l.b16 %v435
    %v1181 = vunpack.c.h.b16 %v435
    %v1182 = vunpack.c.l.b16 %v436
    %v1183 = vunpack.c.h.b16 %v436
    %v1184 = vunpack.c.l.b16 %v437
    %v1185 = vunpack.c.h.b16 %v437
    %v1186 = vunpack.c.l.b16 %v438
    %v1187 = vunpack.c.h.b16 %v438
    %v1188 = vunpack.c.l.b16 %v439
    %v1189 = vunpack.c.h.b16 %v439
    %v1190 = vunpack.c.l.b16 %v440
    %v1191 = vunpack.c.h.b16 %v440
    %v1192 = vunpack.c.l.b16 %v441
    %v1193 = vunpack.c.h.b16 %v441
    %v1194 = vunpack.c.l.b16 %v442
    %v1195 = vunpack.c.h.b16 %v442
    %v1196 = vunpack.c.l.b16 %v443
    %v1197 = vunpack.c.h.b16 %v443
    %v1198 = vunpack.c.l.b16 %v444
    %v1199 = vunpack.c.h.b16 %v444
    %v1200 = vunpack.c.l.b16 %v445
    %v1201 = vunpack.c.h.b16 %v445
    %v1202 = vunpack.c.l.b16 %v446
    %v1203 = vunpack.c.h.b16 %v446
    %v1204 = vunpack.c.l.b16 %v447
    %v1205 = vunpack.c.h.b16 %v447
    %v1206 = vunpack.c.l.b16 %v448
    %v1207 = vunpack.c.h.b16 %v448
    %v1208 = vunpack.c.l.b16 %v449
    %v1209 = vunpack.c.h.b16 %v449
    %v1210 = vunpack.c.l.b16 %v450
    %v1211 = vunpack.c.h.b16 %v450
    %v1212 = vunpack.c.l.b16 %v451
    %v1213 = vunpack.c.h.b16 %v451
    %v1214 = vunpack.c.l.b16 %v452
    %v1215 = vunpack.c.h.b16 %v452
    %v1216 = vunpack.c.l.b16 %v453
    %v1217 = vunpack.c.h.b16 %v453
    %v1218 = vunpack.c.l.b16 %v454
    %v1219 = vunpack.c.h.b16 %v454
    %v1220 = vunpack.c.l.b16 %v455
    %v1221 = vunpack.c.h.b16 %v455
    %v1222 = vunpack.c.l.b16 %v456
    %v1223 = vunpack.c.h.b16 %v456
    %v1224 = vunpack.c.l.b16 %v457
    %v1225 = vunpack.c.h.b16 %v457
    %v1226 = vunpack.c.l.b16 %v458
    %v1227 = vunpack.c.h.b16 %v458
    %v1228 = vunpack.c.l.b16 %v459
    %v1229 = vunpack.c.h.b16 %v459
    %v1230 = vunpack.c.l.b16 %v460
    %v1231 = vunpack.c.h.b16 %v460
    %v1232 = vunpack.c.l.b16 %v461
    %v1233 = vunpack.c.h.b16 %v461
    %v1234 = vunpack.c.l.b16 %v462
    %v1235 = vunpack.c.h.b16 %v462
    %v1236 = vunpack.c.l.b16 %v463
    %v1237 = vunpack.c.h.b16 %v463
    %v1238 = vunpack.c.l.b16 %v464
    %v1239 = vunpack.c.h.b16 %v464
    %v1240 = vunpack.c.l.b16 %v465
    %v1241 = vunpack.c.h.b16 %v465
    %v1242 = vunpack.c.l.b16 %v466
    %v1243 = vunpack.c.h.b16 %v466
    %v1244 = vunpack.c.l.b16 %v467
    %v1245 = vunpack.c.h.b16 %v467
    %v1246 = vunpack.c.l.b16 %v468
    %v1247 = vunpack.c.h.b16 %v468
    %v1248 = vunpack.c.l.b16 %v469
    %v1249 = vunpack.c.h.b16 %v469
    %v1250 = vunpack.c.l.b16 %v470
    %v1251 = vunpack.c.h.b16 %v470
    %v1252 = vunpack.c.l.b16 %v471
    %v1253 = vunpack.c.h.b16 %v471
    %v1254 = vunpack.c.l.b16 %v472
    %v1255 = vunpack.c.h.b16 %v472
    %v1256 = vunpack.c.l.b16 %v473
    %v1257 = vunpack.c.h.b16 %v473
    %v1258 = vunpack.c.l.b16 %v474
    %v1259 = vunpack.c.h.b16 %v474
    %v1260 = vunpack.c.l.b16 %v475
    %v1261 = vunpack.c.h.b16 %v475
    %v1262 = vpack.c.b16 %v758, %v750
    %v1263 = vpack.c.b16 %v759, %v751
    %v1264 = vpack.c.b16 %v760, %v752
    %v1265 = vpack.c.b16 %v761, %v753
    %v1266 = vpack.c.b16 %v762, %v754
    %v1267 = vpack.c.b16 %v763, %v755
    %v1268 = vpack.c.b16 %v764, %v756
    %v1269 = vpack.c.b16 %v765, %v757
    %v1270 = vpack.c.b16 %v774, %v766
    %v1271 = vpack.c.b16 %v775, %v767
    %v1272 = vpack.c.b16 %v776, %v768
    %v1273 = vpack.c.b16 %v777, %v769
    %v1274 = vpack.c.b16 %v778, %v770
    %v1275 = vpack.c.b16 %v779, %v771
    %v1276 = vpack.c.b16 %v780, %v772
    %v1277 = vpack.c.b16 %v781, %v773
    %v1278 = vpack.c.b16 %v790, %v782
    %v1279 = vpack.c.b16 %v791, %v783
    %v1280 = vpack.c.b16 %v792, %v784
    %v1281 = vpack.c.b16 %v793, %v785
    %v1282 = vpack.c.b16 %v794, %v786
    %v1283 = vpack.c.b16 %v795, %v787
    %v1284 = vpack.c.b16 %v796, %v788
    %v1285 = vpack.c.b16 %v797, %v789
    %v1286 = vpack.c.b16 %v806, %v798
    %v1287 = vpack.c.b16 %v807, %v799
    %v1288 = vpack.c.b16 %v808, %v800
    %v1289 = vpack.c.b16 %v809, %v801
    %v1290 = vpack.c.b16 %v810, %v802
    %v1291 = vpack.c.b16 %v811, %v803
    %v1292 = vpack.c.b16 %v812, %v804
    %v1293 = vpack.c.b16 %v813, %v805
    %v1294 = vpack.c.b16 %v822, %v814
    %v1295 = vpack.c.b16 %v823, %v815
    %v1296 = vpack.c.b16 %v824, %v816
    %v1297 = vpack.c.b16 %v825, %v817
    %v1298 = vpack.c.b16 %v826, %v818
    %v1299 = vpack.c.b16 %v827, %v819
    %v1300 = vpack.c.b16 %v828, %v820
    %v1301 = vpack.c.b16 %v829, %v821
    %v1302 = vpack.c.b16 %v838, %v830
    %v1303 = vpack.c.b16 %v839, %v831
    %v1304 = vpack.c.b16 %v840, %v832
    %v1305 = vpack.c.b16 %v841, %v833
    %v1306 = vpack.c.b16 %v842, %v834
    %v1307 = vpack.c.b16 %v843, %v835
    %v1308 = vpack.c.b16 %v844, %v836
    %v1309 = vpack.c.b16 %v845, %v837
    %v1310 = vpack.c.b16 %v854, %v846
    %v1311 = vpack.c.b16 %v855, %v847
    %v1312 = vpack.c.b16 %v856, %v848
    %v1313 = vpack.c.b16 %v857, %v849
    %v1314 = vpack.c.b16 %v858, %v850
    %v1315 = vpack.c.b16 %v859, %v851
    %v1316 = vpack.c.b16 %v860, %v852
    %v1317 = vpack.c.b16 %v861, %v853
    %v1318 = vpack.c.b16 %v870, %v862
    %v1319 = vpack.c.b16 %v871, %v863
    %v1320 = vpack.c.b16 %v872, %v864
    %v1321 = vpack.c.b16 %v873, %v865
    %v1322 = vpack.c.b16 %v874, %v866
    %v1323 = vpack.c.b16 %v875, %v867
    %v1324 = vpack.c.b16 %v876, %v868
    %v1325 = vpack.c.b16 %v877, %v869
    %v1326 = vpack.c.b16 %v886, %v878
    %v1327 = vpack.c.b16 %v887, %v879
    %v1328 = vpack.c.b16 %v888, %v880
    %v1329 = vpack.c.b16 %v889, %v881
    %v1330 = vpack.c.b16 %v890, %v882
    %v1331 = vpack.c.b16 %v891, %v883
    %v1332 = vpack.c.b16 %v892, %v884
    %v1333 = vpack.c.b16 %v893, %v885
    %v1334 = vpack.c.b16 %v902, %v894
    %v1335 = vpack.c.b16 %v903, %v895
    %v1336 = vpack.c.b16 %v904, %v896
    %v1337 = vpack.c.b16 %v905, %v897
    %v1338 = vpack.c.b16 %v906, %v898
    %v1339 = vpack.c.b16 %v907, %v899
    %v1340 = vpack.c.b16 %v908, %v900
    %v1341 = vpack.c.b16 %v909, %v901
    %v1342 = vpack.c.b16 %v918, %v910
    %v1343 = vpack.c.b16 %v919, %v911
    %v1344 = vpack.c.b16 %v920, %v912
    %v1345 = vpack.c.b16 %v921, %v913
    %v1346 = vpack.c.b16 %v922, %v914
    %v1347 = vpack.c.b16 %v923, %v915
    %v1348 = vpack.c.b16 %v924, %v916
    %v1349 = vpack.c.b16 %v925, %v917
    %v1350 = vpack.c.b16 %v934, %v926
    %v1351 = vpack.c.b16 %v935, %v927
    %v1352 = vpack.c.b16 %v936, %v928
    %v1353 = vpack.c.b16 %v937, %v929
    %v1354 = vpack.c.b16 %v938, %v930
    %v1355 = vpack.c.b16 %v939, %v931
    %v1356 = vpack.c.b16 %v940, %v932
    %v1357 = vpack.c.b16 %v941, %v933
    %v1358 = vpack.c.b16 %v950, %v942
    %v1359 = vpack.c.b16 %v951, %v943
    %v1360 = vpack.c.b16 %v952, %v944
    %v1361 = vpack.c.b16 %v953, %v945
    %v1362 = vpack.c.b16 %v954, %v946
    %v1363 = vpack.c.b16 %v955, %v947
    %v1364 = vpack.c.b16 %v956, %v948
    %v1365 = vpack.c.b16 %v957, %v949
    %v1366 = vpack.c.b16 %v966, %v958
    %v1367 = vpack.c.b16 %v967, %v959
    %v1368 = vpack.c.b16 %v968, %v960
    %v1369 = vpack.c.b16 %v969, %v961
    %v1370 = vpack.c.b16 %v970, %v962
    %v1371 = vpack.c.b16 %v971, %v963
    %v1372 = vpack.c.b16 %v972, %v964
    %v1373 = vpack.c.b16 %v973, %v965
    %v1374 = vpack.c.b16 %v982, %v974
    %v1375 = vpack.c.b16 %v983, %v975
    %v1376 = vpack.c.b16 %v984, %v976
    %v1377 = vpack.c.b16 %v985, %v977
    %v1378 = vpack.c.b16 %v986, %v978
    %v1379 = vpack.c.b16 %v987, %v979
    %v1380 = vpack.c.b16 %v988, %v980
    %v1381 = vpack.c.b16 %v989, %v981
    %v1382 = vpack.c.b16 %v998, %v990
    %v1383 = vpack.c.b16 %v999, %v991
    %v1384 = vpack.c.b16 %v1000, %v992
    %v1385 = vpack.c.b16 %v1001, %v993
    %v1386 = vpack.c.b16 %v1002, %v994
    %v1387 = vpack.c.b16 %v1003, %v995
    %v1388 = vpack.c.b16 %v1004, %v996
    %v1389 = vpack.c.b16 %v1005, %v997
    %v1390 = vpack.c.b16 %v1014, %v1006
    %v1391 = vpack.c.b16 %v1015, %v1007
    %v1392 = vpack.c.b16 %v1016, %v1008
    %v1393 = vpack.c.b16 %v1017, %v1009
    %v1394 = vpack.c.b16 %v1018, %v1010
    %v1395 = vpack.c.b16 %v1019, %v1011
    %v1396 = vpack.c.b16 %v1020, %v1012
    %v1397 = vpack.c.b16 %v1021, %v1013
    %v1398 = vpack.c.b16 %v1030, %v1022
    %v1399 = vpack.c.b16 %v1031, %v1023
    %v1400 = vpack.c.b16 %v1032, %v1024
    %v1401 = vpack.c.b16 %v1033, %v1025
    %v1402 = vpack.c.b16 %v1034, %v1026
    %v1403 = vpack.c.b16 %v1035, %v1027
    %v1404 = vpack.c.b16 %v1036, %v1028
    %v1405 = vpack.c.b16 %v1037, %v1029
    %v1406 = vpack.c.b16 %v1046, %v1038
    %v1407 = vpack.c.b16 %v1047, %v1039
    %v1408 = vpack.c.b16 %v1048, %v1040
    %v1409 = vpack.c.b16 %v1049, %v1041
    %v1410 = vpack.c.b16 %v1050, %v1042
    %v1411 = vpack.c.b16 %v1051, %v1043
    %v1412 = vpack.c.b16 %v1052, %v1044
    %v1413 = vpack.c.b16 %v1053, %v1045
    %v1414 = vpack.c.b16 %v1062, %v1054
    %v1415 = vpack.c.b16 %v1063, %v1055
    %v1416 = vpack.c.b16 %v1064, %v1056
    %v1417 = vpack.c.b16 %v1065, %v1057
    %v1418 = vpack.c.b16 %v1066, %v1058
    %v1419 = vpack.c.b16 %v1067, %v1059
    %v1420 = vpack.c.b16 %v1068, %v1060
    %v1421 = vpack.c.b16 %v1069, %v1061
    %v1422 = vpack.c.b16 %v1078, %v1070
    %v1423 = vpack.c.b16 %v1079, %v1071
    %v1424 = vpack.c.b16 %v1080, %v1072
    %v1425 = vpack.c.b16 %v1081, %v1073
    %v1426 = vpack.c.b16 %v1082, %v1074
    %v1427 = vpack.c.b16 %v1083, %v1075
    %v1428 = vpack.c.b16 %v1084, %v1076
    %v1429 = vpack.c.b16 %v1085, %v1077
    %v1430 = vpack.c.b16 %v1094, %v1086
    %v1431 = vpack.c.b16 %v1095, %v1087
    %v1432 = vpack.c.b16 %v1096, %v1088
    %v1433 = vpack.c.b16 %v1097, %v1089
    %v1434 = vpack.c.b16 %v1098, %v1090
    %v1435 = vpack.c.b16 %v1099, %v1091
    %v1436 = vpack.c.b16 %v1100, %v1092
    %v1437 = vpack.c.b16 %v1101, %v1093
    %v1438 = vpack.c.b16 %v1110, %v1102
    %v1439 = vpack.c.b16 %v1111, %v1103
    %v1440 = vpack.c.b16 %v1112, %v1104
    %v1441 = vpack.c.b16 %v1113, %v1105
    %v1442 = vpack.c.b16 %v1114, %v1106
    %v1443 = vpack.c.b16 %v1115, %v1107
    %v1444 = vpack.c.b16 %v1116, %v1108
    %v1445 = vpack.c.b16 %v1117, %v1109
    %v1446 = vpack.c.b16 %v1126, %v1118
    %v1447 = vpack.c.b16 %v1127, %v1119
    %v1448 = vpack.c.b16 %v1128, %v1120
    %v1449 = vpack.c.b16 %v1129, %v1121
    %v1450 = vpack.c.b16 %v1130, %v1122
    %v1451 = vpack.c.b16 %v1131, %v1123
    %v1452 = vpack.c.b16 %v1132, %v1124
    %v1453 = vpack.c.b16 %v1133, %v1125
    %v1454 = vpack.c.b16 %v1142, %v1134
    %v1455 = vpack.c.b16 %v1143, %v1135
    %v1456 = vpack.c.b16 %v1144, %v1136
    %v1457 = vpack.c.b16 %v1145, %v1137
    %v1458 = vpack.c.b16 %v1146, %v1138
    %v1459 = vpack.c.b16 %v1147, %v1139
    %v1460 = vpack.c.b16 %v1148, %v1140
    %v1461 = vpack.c.b16 %v1149, %v1141
    %v1462 = vpack.c.b16 %v1158, %v1150
    %v1463 = vpack.c.b16 %v1159, %v1151
    %v1464 = vpack.c.b16 %v1160, %v1152
    %v1465 = vpack.c.b16 %v1161, %v1153
    %v1466 = vpack.c.b16 %v1162, %v1154
    %v1467 = vpack.c.b16 %v1163, %v1155
    %v1468 = vpack.c.b16 %v1164, %v1156
    %v1469 = vpack.c.b16 %v1165, %v1157
    %v1470 = vpack.c.b16 %v1174, %v1166
    %v1471 = vpack.c.b16 %v1175, %v1167
    %v1472 = vpack.c.b16 %v1176, %v1168
    %v1473 = vpack.c.b16 %v1177, %v1169
    %v1474 = vpack.c.b16 %v1178, %v1170
    %v1475 = vpack.c.b16 %v1179, %v1171
    %v1476 = vpack.c.b16 %v1180, %v1172
    %v1477 = vpack.c.b16 %v1181, %v1173
    %v1478 = vpack.c.b16 %v1190, %v1182
    %v1479 = vpack.c.b16 %v1191, %v1183
    %v1480 = vpack.c.b16 %v1192, %v1184
    %v1481 = vpack.c.b16 %v1193, %v1185
    %v1482 = vpack.c.b16 %v1194, %v1186
    %v1483 = vpack.c.b16 %v1195, %v1187
    %v1484 = vpack.c.b16 %v1196, %v1188
    %v1485 = vpack.c.b16 %v1197, %v1189
    %v1486 = vpack.c.b16 %v1206, %v1198
    %v1487 = vpack.c.b16 %v1207, %v1199
    %v1488 = vpack.c.b16 %v1208, %v1200
    %v1489 = vpack.c.b16 %v1209, %v1201
    %v1490 = vpack.c.b16 %v1210, %v1202
    %v1491 = vpack.c.b16 %v1211, %v1203
    %v1492 = vpack.c.b16 %v1212, %v1204
    %v1493 = vpack.c.b16 %v1213, %v1205
    %v1494 = vpack.c.b16 %v1222, %v1214
    %v1495 = vpack.c.b16 %v1223, %v1215
    %v1496 = vpack.c.b16 %v1224, %v1216
    %v1497 = vpack.c.b16 %v1225, %v1217
    %v1498 = vpack.c.b16 %v1226, %v1218
    %v1499 = vpack.c.b16 %v1227, %v1219
    %v1500 = vpack.c.b16 %v1228, %v1220
    %v1501 = vpack.c.b16 %v1229, %v1221
    %v1502 = vpack.c.b16 %v1238, %v1230
    %v1503 = vpack.c.b16 %v1239, %v1231
    %v1504 = vpack.c.b16 %v1240, %v1232
    %v1505 = vpack.c.b16 %v1241, %v1233
    %v1506 = vpack.c.b16 %v1242, %v1234
    %v1507 = vpack.c.b16 %v1243, %v1235
    %v1508 = vpack.c.b16 %v1244, %v1236
    %v1509 = vpack.c.b16 %v1245, %v1237
    %v1510 = vpack.c.b16 %v1254, %v1246
    %v1511 = vpack.c.b16 %v1255, %v1247
    %v1512 = vpack.c.b16 %v1256, %v1248
    %v1513 = vpack.c.b16 %v1257, %v1249
    %v1514 = vpack.c.b16 %v1258, %v1250
    %v1515 = vpack.c.b16 %v1259, %v1251
    %v1516 = vpack.c.b16 %v1260, %v1252
    %v1517 = vpack.c.b16 %v1261, %v1253
    %1774 = vmatpush.bf16.msra.mxu0 %v1318
    %1775 = vmatpush.bf16.msra.mxu0 %v1310
    %1776 = vmatpush.bf16.msra.mxu0 %v1302
    %1777 = vmatpush.bf16.msra.mxu0 %v1294
    %1778 = vmatpush.bf16.msra.mxu0 %v1286
    %1779 = vmatpush.bf16.msra.mxu0 %v1278
    %1780 = vmatpush.bf16.msra.mxu0 %v1270
    %1781 = vmatpush.bf16.msra.mxu0 %v1262
    %1782 = vmatmul.bf16.gmra.mxu0 %v216
    %v1783 = vpop.f32.mrf.mxu0
    %v1784 = vadd.f32 %v478, %v1783
    %v1785 = vpop.f32.mrf.mxu0
    %1786 = vdwg.mxu0
    %1787 = vmatpush.bf16.msra.mxu0 %v1382
    %1788 = vmatpush.bf16.msra.mxu0 %v1374
    %1789 = vmatpush.bf16.msra.mxu0 %v1366
    %1790 = vmatpush.bf16.msra.mxu0 %v1358
    %1791 = vmatpush.bf16.msra.mxu0 %v1350
    %1792 = vmatpush.bf16.msra.mxu0 %v1342
    %1793 = vmatpush.bf16.msra.mxu0 %v1334
    %1794 = vmatpush.bf16.msra.mxu0 %v1326
    %1795 = vmatmul.bf16.gmra.mxu0 %v217
    %v1796 = vpop.f32.mrf.mxu0
    %v1797 = vadd.f32 %v1784, %v1796
    %v1798 = vpop.f32.mrf.mxu0
    %1799 = vdwg.mxu0
    %1800 = vmatpush.bf16.msra.mxu0 %v1446
    %1801 = vmatpush.bf16.msra.mxu0 %v1438
    %1802 = vmatpush.bf16.msra.mxu0 %v1430
    %1803 = vmatpush.bf16.msra.mxu0 %v1422
    %1804 = vmatpush.bf16.msra.mxu0 %v1414
    %1805 = vmatpush.bf16.msra.mxu0 %v1406
    %1806 = vmatpush.bf16.msra.mxu0 %v1398
    %1807 = vmatpush.bf16.msra.mxu0 %v1390
    %1808 = vmatmul.bf16.gmra.mxu0 %v218
    %v1809 = vpop.f32.mrf.mxu0
    %v1810 = vadd.f32 %v1797, %v1809
    %v1811 = vpop.f32.mrf.mxu0
    %1812 = vdwg.mxu0
    %1813 = vmatpush.bf16.msra.mxu0 %v1510
    %1814 = vmatpush.bf16.msra.mxu0 %v1502
    %1815 = vmatpush.bf16.msra.mxu0 %v1494
    %1816 = vmatpush.bf16.msra.mxu0 %v1486
    %1817 = vmatpush.bf16.msra.mxu0 %v1478
    %1818 = vmatpush.bf16.msra.mxu0 %v1470
    %1819 = vmatpush.bf16.msra.mxu0 %v1462
    %1820 = vmatpush.bf16.msra.mxu0 %v1454
    %1821 = vmatmul.bf16.gmra.mxu0 %v219
    %v1822 = vpop.f32.mrf.mxu0
    %v1823 = vadd.f32 %v1810, %v1822
    %v1824 = vpop.f32.mrf.mxu0
    %1825 = vdwg.mxu0
    %1826 = vmatpush.bf16.msra.mxu0 %v1319
    %1827 = vmatpush.bf16.msra.mxu0 %v1311
    %1828 = vmatpush.bf16.msra.mxu0 %v1303
    %1829 = vmatpush.bf16.msra.mxu0 %v1295
    %1830 = vmatpush.bf16.msra.mxu0 %v1287
    %1831 = vmatpush.bf16.msra.mxu0 %v1279
    %1832 = vmatpush.bf16.msra.mxu0 %v1271
    %1833 = vmatpush.bf16.msra.mxu0 %v1263
    %1834 = vmatmul.bf16.gmra.mxu0 %v216
    %v1835 = vpop.f32.mrf.mxu0
    %v1836 = vadd.f32 %v479, %v1835
    %v1837 = vpop.f32.mrf.mxu0
    %1838 = vdwg.mxu0
    %1839 = vmatpush.bf16.msra.mxu0 %v1383
    %1840 = vmatpush.bf16.msra.mxu0 %v1375
    %1841 = vmatpush.bf16.msra.mxu0 %v1367
    %1842 = vmatpush.bf16.msra.mxu0 %v1359
    %1843 = vmatpush.bf16.msra.mxu0 %v1351
    %1844 = vmatpush.bf16.msra.mxu0 %v1343
    %1845 = vmatpush.bf16.msra.mxu0 %v1335
    %1846 = vmatpush.bf16.msra.mxu0 %v1327
    %1847 = vmatmul.bf16.gmra.mxu0 %v217
    %v1848 = vpop.f32.mrf.mxu0
    %v1849 = vadd.f32 %v1836, %v1848
    %v1850 = vpop.f32.mrf.mxu0
    %1851 = vdwg.mxu0
    %1852 = vmatpush.bf16.msra.mxu0 %v1447
    %1853 = vmatpush.bf16.msra.mxu0 %v1439
    %1854 = vmatpush.bf16.msra.mxu0 %v1431
    %1855 = vmatpush.bf16.msra.mxu0 %v1423
    %1856 = vmatpush.bf16.msra.mxu0 %v1415
    %1857 = vmatpush.bf16.msra.mxu0 %v1407
    %1858 = vmatpush.bf16.msra.mxu0 %v1399
    %1859 = vmatpush.bf16.msra.mxu0 %v1391
    %1860 = vmatmul.bf16.gmra.mxu0 %v218
    %v1861 = vpop.f32.mrf.mxu0
    %v1862 = vadd.f32 %v1849, %v1861
    %v1863 = vpop.f32.mrf.mxu0
    %1864 = vdwg.mxu0
    %1865 = vmatpush.bf16.msra.mxu0 %v1511
    %1866 = vmatpush.bf16.msra.mxu0 %v1503
    %1867 = vmatpush.bf16.msra.mxu0 %v1495
    %1868 = vmatpush.bf16.msra.mxu0 %v1487
    %1869 = vmatpush.bf16.msra.mxu0 %v1479
    %1870 = vmatpush.bf16.msra.mxu0 %v1471
    %1871 = vmatpush.bf16.msra.mxu0 %v1463
    %1872 = vmatpush.bf16.msra.mxu0 %v1455
    %1873 = vmatmul.bf16.gmra.mxu0 %v219
    %v1874 = vpop.f32.mrf.mxu0
    %v1875 = vadd.f32 %v1862, %v1874
    %v1876 = vpop.f32.mrf.mxu0
    %1877 = vdwg.mxu0
    %1878 = vmatpush.bf16.msra.mxu0 %v1320
    %1879 = vmatpush.bf16.msra.mxu0 %v1312
    %1880 = vmatpush.bf16.msra.mxu0 %v1304
    %1881 = vmatpush.bf16.msra.mxu0 %v1296
    %1882 = vmatpush.bf16.msra.mxu0 %v1288
    %1883 = vmatpush.bf16.msra.mxu0 %v1280
    %1884 = vmatpush.bf16.msra.mxu0 %v1272
    %1885 = vmatpush.bf16.msra.mxu0 %v1264
    %1886 = vmatmul.bf16.gmra.mxu0 %v216
    %v1887 = vpop.f32.mrf.mxu0
    %v1888 = vadd.f32 %v480, %v1887
    %v1889 = vpop.f32.mrf.mxu0
    %1890 = vdwg.mxu0
    %1891 = vmatpush.bf16.msra.mxu0 %v1384
    %1892 = vmatpush.bf16.msra.mxu0 %v1376
    %1893 = vmatpush.bf16.msra.mxu0 %v1368
    %1894 = vmatpush.bf16.msra.mxu0 %v1360
    %1895 = vmatpush.bf16.msra.mxu0 %v1352
    %1896 = vmatpush.bf16.msra.mxu0 %v1344
    %1897 = vmatpush.bf16.msra.mxu0 %v1336
    %1898 = vmatpush.bf16.msra.mxu0 %v1328
    %1899 = vmatmul.bf16.gmra.mxu0 %v217
    %v1900 = vpop.f32.mrf.mxu0
    %v1901 = vadd.f32 %v1888, %v1900
    %v1902 = vpop.f32.mrf.mxu0
    %1903 = vdwg.mxu0
    %1904 = vmatpush.bf16.msra.mxu0 %v1448
    %1905 = vmatpush.bf16.msra.mxu0 %v1440
    %1906 = vmatpush.bf16.msra.mxu0 %v1432
    %1907 = vmatpush.bf16.msra.mxu0 %v1424
    %1908 = vmatpush.bf16.msra.mxu0 %v1416
    %1909 = vmatpush.bf16.msra.mxu0 %v1408
    %1910 = vmatpush.bf16.msra.mxu0 %v1400
    %1911 = vmatpush.bf16.msra.mxu0 %v1392
    %1912 = vmatmul.bf16.gmra.mxu0 %v218
    %v1913 = vpop.f32.mrf.mxu0
    %v1914 = vadd.f32 %v1901, %v1913
    %v1915 = vpop.f32.mrf.mxu0
    %1916 = vdwg.mxu0
    %1917 = vmatpush.bf16.msra.mxu0 %v1512
    %1918 = vmatpush.bf16.msra.mxu0 %v1504
    %1919 = vmatpush.bf16.msra.mxu0 %v1496
    %1920 = vmatpush.bf16.msra.mxu0 %v1488
    %1921 = vmatpush.bf16.msra.mxu0 %v1480
    %1922 = vmatpush.bf16.msra.mxu0 %v1472
    %1923 = vmatpush.bf16.msra.mxu0 %v1464
    %1924 = vmatpush.bf16.msra.mxu0 %v1456
    %1925 = vmatmul.bf16.gmra.mxu0 %v219
    %v1926 = vpop.f32.mrf.mxu0
    %v1927 = vadd.f32 %v1914, %v1926
    %v1928 = vpop.f32.mrf.mxu0
    %1929 = vdwg.mxu0
    %1930 = vmatpush.bf16.msra.mxu0 %v1321
    %1931 = vmatpush.bf16.msra.mxu0 %v1313
    %1932 = vmatpush.bf16.msra.mxu0 %v1305
    %1933 = vmatpush.bf16.msra.mxu0 %v1297
    %1934 = vmatpush.bf16.msra.mxu0 %v1289
    %1935 = vmatpush.bf16.msra.mxu0 %v1281
    %1936 = vmatpush.bf16.msra.mxu0 %v1273
    %1937 = vmatpush.bf16.msra.mxu0 %v1265
    %1938 = vmatmul.bf16.gmra.mxu0 %v216
    %v1939 = vpop.f32.mrf.mxu0
    %v1940 = vadd.f32 %v481, %v1939
    %v1941 = vpop.f32.mrf.mxu0
    %1942 = vdwg.mxu0
    %1943 = vmatpush.bf16.msra.mxu0 %v1385
    %1944 = vmatpush.bf16.msra.mxu0 %v1377
    %1945 = vmatpush.bf16.msra.mxu0 %v1369
    %1946 = vmatpush.bf16.msra.mxu0 %v1361
    %1947 = vmatpush.bf16.msra.mxu0 %v1353
    %1948 = vmatpush.bf16.msra.mxu0 %v1345
    %1949 = vmatpush.bf16.msra.mxu0 %v1337
    %1950 = vmatpush.bf16.msra.mxu0 %v1329
    %1951 = vmatmul.bf16.gmra.mxu0 %v217
    %v1952 = vpop.f32.mrf.mxu0
    %v1953 = vadd.f32 %v1940, %v1952
    %v1954 = vpop.f32.mrf.mxu0
    %1955 = vdwg.mxu0
    %1956 = vmatpush.bf16.msra.mxu0 %v1449
    %1957 = vmatpush.bf16.msra.mxu0 %v1441
    %1958 = vmatpush.bf16.msra.mxu0 %v1433
    %1959 = vmatpush.bf16.msra.mxu0 %v1425
    %1960 = vmatpush.bf16.msra.mxu0 %v1417
    %1961 = vmatpush.bf16.msra.mxu0 %v1409
    %1962 = vmatpush.bf16.msra.mxu0 %v1401
    %1963 = vmatpush.bf16.msra.mxu0 %v1393
    %1964 = vmatmul.bf16.gmra.mxu0 %v218
    %v1965 = vpop.f32.mrf.mxu0
    %v1966 = vadd.f32 %v1953, %v1965
    %v1967 = vpop.f32.mrf.mxu0
    %1968 = vdwg.mxu0
    %1969 = vmatpush.bf16.msra.mxu0 %v1513
    %1970 = vmatpush.bf16.msra.mxu0 %v1505
    %1971 = vmatpush.bf16.msra.mxu0 %v1497
    %1972 = vmatpush.bf16.msra.mxu0 %v1489
    %1973 = vmatpush.bf16.msra.mxu0 %v1481
    %1974 = vmatpush.bf16.msra.mxu0 %v1473
    %1975 = vmatpush.bf16.msra.mxu0 %v1465
    %1976 = vmatpush.bf16.msra.mxu0 %v1457
    %1977 = vmatmul.bf16.gmra.mxu0 %v219
    %v1978 = vpop.f32.mrf.mxu0
    %v1979 = vadd.f32 %v1966, %v1978
    %v1980 = vpop.f32.mrf.mxu0
    %1981 = vdwg.mxu0
    %1982 = vmatpush.bf16.msra.mxu0 %v1322
    %1983 = vmatpush.bf16.msra.mxu0 %v1314
    %1984 = vmatpush.bf16.msra.mxu0 %v1306
    %1985 = vmatpush.bf16.msra.mxu0 %v1298
    %1986 = vmatpush.bf16.msra.mxu0 %v1290
    %1987 = vmatpush.bf16.msra.mxu0 %v1282
    %1988 = vmatpush.bf16.msra.mxu0 %v1274
    %1989 = vmatpush.bf16.msra.mxu0 %v1266
    %1990 = vmatmul.bf16.gmra.mxu0 %v216
    %v1991 = vpop.f32.mrf.mxu0
    %v1992 = vadd.f32 %v482, %v1991
    %v1993 = vpop.f32.mrf.mxu0
    %1994 = vdwg.mxu0
    %1995 = vmatpush.bf16.msra.mxu0 %v1386
    %1996 = vmatpush.bf16.msra.mxu0 %v1378
    %1997 = vmatpush.bf16.msra.mxu0 %v1370
    %1998 = vmatpush.bf16.msra.mxu0 %v1362
    %1999 = vmatpush.bf16.msra.mxu0 %v1354
    %2000 = vmatpush.bf16.msra.mxu0 %v1346
    %2001 = vmatpush.bf16.msra.mxu0 %v1338
    %2002 = vmatpush.bf16.msra.mxu0 %v1330
    %2003 = vmatmul.bf16.gmra.mxu0 %v217
    %v2004 = vpop.f32.mrf.mxu0
    %v2005 = vadd.f32 %v1992, %v2004
    %v2006 = vpop.f32.mrf.mxu0
    %2007 = vdwg.mxu0
    %2008 = vmatpush.bf16.msra.mxu0 %v1450
    %2009 = vmatpush.bf16.msra.mxu0 %v1442
    %2010 = vmatpush.bf16.msra.mxu0 %v1434
    %2011 = vmatpush.bf16.msra.mxu0 %v1426
    %2012 = vmatpush.bf16.msra.mxu0 %v1418
    %2013 = vmatpush.bf16.msra.mxu0 %v1410
    %2014 = vmatpush.bf16.msra.mxu0 %v1402
    %2015 = vmatpush.bf16.msra.mxu0 %v1394
    %2016 = vmatmul.bf16.gmra.mxu0 %v218
    %v2017 = vpop.f32.mrf.mxu0
    %v2018 = vadd.f32 %v2005, %v2017
    %v2019 = vpop.f32.mrf.mxu0
    %2020 = vdwg.mxu0
    %2021 = vmatpush.bf16.msra.mxu0 %v1514
    %2022 = vmatpush.bf16.msra.mxu0 %v1506
    %2023 = vmatpush.bf16.msra.mxu0 %v1498
    %2024 = vmatpush.bf16.msra.mxu0 %v1490
    %2025 = vmatpush.bf16.msra.mxu0 %v1482
    %2026 = vmatpush.bf16.msra.mxu0 %v1474
    %2027 = vmatpush.bf16.msra.mxu0 %v1466
    %2028 = vmatpush.bf16.msra.mxu0 %v1458
    %2029 = vmatmul.bf16.gmra.mxu0 %v219
    %v2030 = vpop.f32.mrf.mxu0
    %v2031 = vadd.f32 %v2018, %v2030
    %v2032 = vpop.f32.mrf.mxu0
    %2033 = vdwg.mxu0
    %2034 = vmatpush.bf16.msra.mxu0 %v1323
    %2035 = vmatpush.bf16.msra.mxu0 %v1315
    %2036 = vmatpush.bf16.msra.mxu0 %v1307
    %2037 = vmatpush.bf16.msra.mxu0 %v1299
    %2038 = vmatpush.bf16.msra.mxu0 %v1291
    %2039 = vmatpush.bf16.msra.mxu0 %v1283
    %2040 = vmatpush.bf16.msra.mxu0 %v1275
    %2041 = vmatpush.bf16.msra.mxu0 %v1267
    %2042 = vmatmul.bf16.gmra.mxu0 %v216
    %v2043 = vpop.f32.mrf.mxu0
    %v2044 = vadd.f32 %v483, %v2043
    %v2045 = vpop.f32.mrf.mxu0
    %2046 = vdwg.mxu0
    %2047 = vmatpush.bf16.msra.mxu0 %v1387
    %2048 = vmatpush.bf16.msra.mxu0 %v1379
    %2049 = vmatpush.bf16.msra.mxu0 %v1371
    %2050 = vmatpush.bf16.msra.mxu0 %v1363
    %2051 = vmatpush.bf16.msra.mxu0 %v1355
    %2052 = vmatpush.bf16.msra.mxu0 %v1347
    %2053 = vmatpush.bf16.msra.mxu0 %v1339
    %2054 = vmatpush.bf16.msra.mxu0 %v1331
    %2055 = vmatmul.bf16.gmra.mxu0 %v217
    %v2056 = vpop.f32.mrf.mxu0
    %v2057 = vadd.f32 %v2044, %v2056
    %v2058 = vpop.f32.mrf.mxu0
    %2059 = vdwg.mxu0
    %2060 = vmatpush.bf16.msra.mxu0 %v1451
    %2061 = vmatpush.bf16.msra.mxu0 %v1443
    %2062 = vmatpush.bf16.msra.mxu0 %v1435
    %2063 = vmatpush.bf16.msra.mxu0 %v1427
    %2064 = vmatpush.bf16.msra.mxu0 %v1419
    %2065 = vmatpush.bf16.msra.mxu0 %v1411
    %2066 = vmatpush.bf16.msra.mxu0 %v1403
    %2067 = vmatpush.bf16.msra.mxu0 %v1395
    %2068 = vmatmul.bf16.gmra.mxu0 %v218
    %v2069 = vpop.f32.mrf.mxu0
    %v2070 = vadd.f32 %v2057, %v2069
    %v2071 = vpop.f32.mrf.mxu0
    %2072 = vdwg.mxu0
    %2073 = vmatpush.bf16.msra.mxu0 %v1515
    %2074 = vmatpush.bf16.msra.mxu0 %v1507
    %2075 = vmatpush.bf16.msra.mxu0 %v1499
    %2076 = vmatpush.bf16.msra.mxu0 %v1491
    %2077 = vmatpush.bf16.msra.mxu0 %v1483
    %2078 = vmatpush.bf16.msra.mxu0 %v1475
    %2079 = vmatpush.bf16.msra.mxu0 %v1467
    %2080 = vmatpush.bf16.msra.mxu0 %v1459
    %2081 = vmatmul.bf16.gmra.mxu0 %v219
    %v2082 = vpop.f32.mrf.mxu0
    %v2083 = vadd.f32 %v2070, %v2082
    %v2084 = vpop.f32.mrf.mxu0
    %2085 = vdwg.mxu0
    %2086 = vmatpush.bf16.msra.mxu0 %v1324
    %2087 = vmatpush.bf16.msra.mxu0 %v1316
    %2088 = vmatpush.bf16.msra.mxu0 %v1308
    %2089 = vmatpush.bf16.msra.mxu0 %v1300
    %2090 = vmatpush.bf16.msra.mxu0 %v1292
    %2091 = vmatpush.bf16.msra.mxu0 %v1284
    %2092 = vmatpush.bf16.msra.mxu0 %v1276
    %2093 = vmatpush.bf16.msra.mxu0 %v1268
    %2094 = vmatmul.bf16.gmra.mxu0 %v216
    %v2095 = vpop.f32.mrf.mxu0
    %v2096 = vadd.f32 %v484, %v2095
    %v2097 = vpop.f32.mrf.mxu0
    %2098 = vdwg.mxu0
    %2099 = vmatpush.bf16.msra.mxu0 %v1388
    %2100 = vmatpush.bf16.msra.mxu0 %v1380
    %2101 = vmatpush.bf16.msra.mxu0 %v1372
    %2102 = vmatpush.bf16.msra.mxu0 %v1364
    %2103 = vmatpush.bf16.msra.mxu0 %v1356
    %2104 = vmatpush.bf16.msra.mxu0 %v1348
    %2105 = vmatpush.bf16.msra.mxu0 %v1340
    %2106 = vmatpush.bf16.msra.mxu0 %v1332
    %2107 = vmatmul.bf16.gmra.mxu0 %v217
    %v2108 = vpop.f32.mrf.mxu0
    %v2109 = vadd.f32 %v2096, %v2108
    %v2110 = vpop.f32.mrf.mxu0
    %2111 = vdwg.mxu0
    %2112 = vmatpush.bf16.msra.mxu0 %v1452
    %2113 = vmatpush.bf16.msra.mxu0 %v1444
    %2114 = vmatpush.bf16.msra.mxu0 %v1436
    %2115 = vmatpush.bf16.msra.mxu0 %v1428
    %2116 = vmatpush.bf16.msra.mxu0 %v1420
    %2117 = vmatpush.bf16.msra.mxu0 %v1412
    %2118 = vmatpush.bf16.msra.mxu0 %v1404
    %2119 = vmatpush.bf16.msra.mxu0 %v1396
    %2120 = vmatmul.bf16.gmra.mxu0 %v218
    %v2121 = vpop.f32.mrf.mxu0
    %v2122 = vadd.f32 %v2109, %v2121
    %v2123 = vpop.f32.mrf.mxu0
    %2124 = vdwg.mxu0
    %2125 = vmatpush.bf16.msra.mxu0 %v1516
    %2126 = vmatpush.bf16.msra.mxu0 %v1508
    %2127 = vmatpush.bf16.msra.mxu0 %v1500
    %2128 = vmatpush.bf16.msra.mxu0 %v1492
    %2129 = vmatpush.bf16.msra.mxu0 %v1484
    %2130 = vmatpush.bf16.msra.mxu0 %v1476
    %2131 = vmatpush.bf16.msra.mxu0 %v1468
    %2132 = vmatpush.bf16.msra.mxu0 %v1460
    %2133 = vmatmul.bf16.gmra.mxu0 %v219
    %v2134 = vpop.f32.mrf.mxu0
    %v2135 = vadd.f32 %v2122, %v2134
    %v2136 = vpop.f32.mrf.mxu0
    %2137 = vdwg.mxu0
    %2138 = vmatpush.bf16.msra.mxu0 %v1325
    %2139 = vmatpush.bf16.msra.mxu0 %v1317
    %2140 = vmatpush.bf16.msra.mxu0 %v1309
    %2141 = vmatpush.bf16.msra.mxu0 %v1301
    %2142 = vmatpush.bf16.msra.mxu0 %v1293
    %2143 = vmatpush.bf16.msra.mxu0 %v1285
    %2144 = vmatpush.bf16.msra.mxu0 %v1277
    %2145 = vmatpush.bf16.msra.mxu0 %v1269
    %2146 = vmatmul.bf16.gmra.mxu0 %v216
    %v2147 = vpop.f32.mrf.mxu0
    %v2148 = vadd.f32 %v485, %v2147
    %v2149 = vpop.f32.mrf.mxu0
    %2150 = vdwg.mxu0
    %2151 = vmatpush.bf16.msra.mxu0 %v1389
    %2152 = vmatpush.bf16.msra.mxu0 %v1381
    %2153 = vmatpush.bf16.msra.mxu0 %v1373
    %2154 = vmatpush.bf16.msra.mxu0 %v1365
    %2155 = vmatpush.bf16.msra.mxu0 %v1357
    %2156 = vmatpush.bf16.msra.mxu0 %v1349
    %2157 = vmatpush.bf16.msra.mxu0 %v1341
    %2158 = vmatpush.bf16.msra.mxu0 %v1333
    %2159 = vmatmul.bf16.gmra.mxu0 %v217
    %v2160 = vpop.f32.mrf.mxu0
    %v2161 = vadd.f32 %v2148, %v2160
    %v2162 = vpop.f32.mrf.mxu0
    %2163 = vdwg.mxu0
    %2164 = vmatpush.bf16.msra.mxu0 %v1453
    %2165 = vmatpush.bf16.msra.mxu0 %v1445
    %2166 = vmatpush.bf16.msra.mxu0 %v1437
    %2167 = vmatpush.bf16.msra.mxu0 %v1429
    %2168 = vmatpush.bf16.msra.mxu0 %v1421
    %2169 = vmatpush.bf16.msra.mxu0 %v1413
    %2170 = vmatpush.bf16.msra.mxu0 %v1405
    %2171 = vmatpush.bf16.msra.mxu0 %v1397
    %2172 = vmatmul.bf16.gmra.mxu0 %v218
    %v2173 = vpop.f32.mrf.mxu0
    %v2174 = vadd.f32 %v2161, %v2173
    %v2175 = vpop.f32.mrf.mxu0
    %2176 = vdwg.mxu0
    %2177 = vmatpush.bf16.msra.mxu0 %v1517
    %2178 = vmatpush.bf16.msra.mxu0 %v1509
    %2179 = vmatpush.bf16.msra.mxu0 %v1501
    %2180 = vmatpush.bf16.msra.mxu0 %v1493
    %2181 = vmatpush.bf16.msra.mxu0 %v1485
    %2182 = vmatpush.bf16.msra.mxu0 %v1477
    %2183 = vmatpush.bf16.msra.mxu0 %v1469
    %2184 = vmatpush.bf16.msra.mxu0 %v1461
    %2185 = vmatmul.bf16.gmra.mxu0 %v219
    %v2186 = vpop.f32.mrf.mxu0
    %v2187 = vadd.f32 %v2174, %v2186
    %v2188 = vpop.f32.mrf.mxu0
    %2189 = vdwg.mxu0
    %v2190 = vmax.f32 %v1823, 0.0
    %v2191 = vmax.f32 %v1875, 0.0
    %v2192 = vmax.f32 %v1927, 0.0
    %v2193 = vmax.f32 %v1979, 0.0
    %v2194 = vmax.f32 %v2031, 0.0
    %v2195 = vmax.f32 %v2083, 0.0
    %v2196 = vmax.f32 %v2135, 0.0
    %v2197 = vmax.f32 %v2187, 0.0
    %v2198 = vpack.c.bf16 %v2190, %v2190
    %v2199 = vpack.c.bf16 %v2191, %v2191
    %v2200 = vpack.c.bf16 %v2192, %v2192
    %v2201 = vpack.c.bf16 %v2193, %v2193
    %v2202 = vpack.c.bf16 %v2194, %v2194
    %v2203 = vpack.c.bf16 %v2195, %v2195
    %v2204 = vpack.c.bf16 %v2196, %v2196
    %v2205 = vpack.c.bf16 %v2197, %v2197
    %v2206 = vld [vmem:[#allocation6] sm:$0xff]
    %v2207 = vld [vmem:[#allocation6 + $0x8] sm:$0xff]
    %v2208 = vld [vmem:[#allocation6 + $0x10] sm:$0xff]
    %v2209 = vld [vmem:[#allocation6 + $0x18] sm:$0xff]
    %v2210 = vld [vmem:[#allocation6 + $0x20] sm:$0xff]
    %v2211 = vld [vmem:[#allocation6 + $0x28] sm:$0xff]
    %v2212 = vld [vmem:[#allocation6 + $0x30] sm:$0xff]
    %v2213 = vld [vmem:[#allocation6 + $0x38] sm:$0xff]
    %v2214 = vld [vmem:[#allocation6 + $0x40] sm:$0xff]
    %v2215 = vld [vmem:[#allocation6 + $0x48] sm:$0xff]
    %v2216 = vld [vmem:[#allocation6 + $0x50] sm:$0xff]
    %v2217 = vld [vmem:[#allocation6 + $0x58] sm:$0xff]
    %v2218 = vld [vmem:[#allocation6 + $0x60] sm:$0xff]
    %v2219 = vld [vmem:[#allocation6 + $0x68] sm:$0xff]
    %v2220 = vld [vmem:[#allocation6 + $0x70] sm:$0xff]
    %v2221 = vld [vmem:[#allocation6 + $0x78] sm:$0xff]
    %v2222 = vld [vmem:[#allocation6 + $0x80] sm:$0xff]
    %v2223 = vld [vmem:[#allocation6 + $0x88] sm:$0xff]
    %v2224 = vld [vmem:[#allocation6 + $0x90] sm:$0xff]
    %v2225 = vld [vmem:[#allocation6 + $0x98] sm:$0xff]
    %v2226 = vld [vmem:[#allocation6 + $0xa0] sm:$0xff]
    %v2227 = vld [vmem:[#allocation6 + $0xa8] sm:$0xff]
    %v2228 = vld [vmem:[#allocation6 + $0xb0] sm:$0xff]
    %v2229 = vld [vmem:[#allocation6 + $0xb8] sm:$0xff]
    %v2230 = vld [vmem:[#allocation6 + $0xc0] sm:$0xff]
    %v2231 = vld [vmem:[#allocation6 + $0xc8] sm:$0xff]
    %v2232 = vld [vmem:[#allocation6 + $0xd0] sm:$0xff]
    %v2233 = vld [vmem:[#allocation6 + $0xd8] sm:$0xff]
    %v2234 = vld [vmem:[#allocation6 + $0xe0] sm:$0xff]
    %v2235 = vld [vmem:[#allocation6 + $0xe8] sm:$0xff]
    %v2236 = vld [vmem:[#allocation6 + $0xf0] sm:$0xff]
    %v2237 = vld [vmem:[#allocation6 + $0xf8] sm:$0xff]
    %v2238 = vld [vmem:[#allocation6 + $0x100] sm:$0xff]
    %v2239 = vld [vmem:[#allocation6 + $0x108] sm:$0xff]
    %v2240 = vld [vmem:[#allocation6 + $0x110] sm:$0xff]
    %v2241 = vld [vmem:[#allocation6 + $0x118] sm:$0xff]
    %v2242 = vld [vmem:[#allocation6 + $0x120] sm:$0xff]
    %v2243 = vld [vmem:[#allocation6 + $0x128] sm:$0xff]
    %v2244 = vld [vmem:[#allocation6 + $0x130] sm:$0xff]
    %v2245 = vld [vmem:[#allocation6 + $0x138] sm:$0xff]
    %v2246 = vld [vmem:[#allocation6 + $0x140] sm:$0xff]
    %v2247 = vld [vmem:[#allocation6 + $0x148] sm:$0xff]
    %v2248 = vld [vmem:[#allocation6 + $0x150] sm:$0xff]
    %v2249 = vld [vmem:[#allocation6 + $0x158] sm:$0xff]
    %v2250 = vld [vmem:[#allocation6 + $0x160] sm:$0xff]
    %v2251 = vld [vmem:[#allocation6 + $0x168] sm:$0xff]
    %v2252 = vld [vmem:[#allocation6 + $0x170] sm:$0xff]
    %v2253 = vld [vmem:[#allocation6 + $0x178] sm:$0xff]
    %v2254 = vld [vmem:[#allocation6 + $0x180] sm:$0xff]
    %v2255 = vld [vmem:[#allocation6 + $0x188] sm:$0xff]
    %v2256 = vld [vmem:[#allocation6 + $0x190] sm:$0xff]
    %v2257 = vld [vmem:[#allocation6 + $0x198] sm:$0xff]
    %v2258 = vld [vmem:[#allocation6 + $0x1a0] sm:$0xff]
    %v2259 = vld [vmem:[#allocation6 + $0x1a8] sm:$0xff]
    %v2260 = vld [vmem:[#allocation6 + $0x1b0] sm:$0xff]
    %v2261 = vld [vmem:[#allocation6 + $0x1b8] sm:$0xff]
    %v2262 = vld [vmem:[#allocation6 + $0x1c0] sm:$0xff]
    %v2263 = vld [vmem:[#allocation6 + $0x1c8] sm:$0xff]
    %v2264 = vld [vmem:[#allocation6 + $0x1d0] sm:$0xff]
    %v2265 = vld [vmem:[#allocation6 + $0x1d8] sm:$0xff]
    %v2266 = vld [vmem:[#allocation6 + $0x1e0] sm:$0xff]
    %v2267 = vld [vmem:[#allocation6 + $0x1e8] sm:$0xff]
    %v2268 = vld [vmem:[#allocation6 + $0x1f0] sm:$0xff]
    %v2269 = vld [vmem:[#allocation6 + $0x1f8] sm:$0xff]
    %v2270 = vld [vmem:[#allocation6 + $0x200] sm:$0xff]
    %v2271 = vld [vmem:[#allocation6 + $0x208] sm:$0xff]
    %v2272 = vld [vmem:[#allocation6 + $0x210] sm:$0xff]
    %v2273 = vld [vmem:[#allocation6 + $0x218] sm:$0xff]
    %v2274 = vld [vmem:[#allocation6 + $0x220] sm:$0xff]
    %v2275 = vld [vmem:[#allocation6 + $0x228] sm:$0xff]
    %v2276 = vld [vmem:[#allocation6 + $0x230] sm:$0xff]
    %v2277 = vld [vmem:[#allocation6 + $0x238] sm:$0xff]
    %v2278 = vld [vmem:[#allocation6 + $0x240] sm:$0xff]
    %v2279 = vld [vmem:[#allocation6 + $0x248] sm:$0xff]
    %v2280 = vld [vmem:[#allocation6 + $0x250] sm:$0xff]
    %v2281 = vld [vmem:[#allocation6 + $0x258] sm:$0xff]
    %v2282 = vld [vmem:[#allocation6 + $0x260] sm:$0xff]
    %v2283 = vld [vmem:[#allocation6 + $0x268] sm:$0xff]
    %v2284 = vld [vmem:[#allocation6 + $0x270] sm:$0xff]
    %v2285 = vld [vmem:[#allocation6 + $0x278] sm:$0xff]
    %v2286 = vld [vmem:[#allocation6 + $0x280] sm:$0xff]
    %v2287 = vld [vmem:[#allocation6 + $0x288] sm:$0xff]
    %v2288 = vld [vmem:[#allocation6 + $0x290] sm:$0xff]
    %v2289 = vld [vmem:[#allocation6 + $0x298] sm:$0xff]
    %v2290 = vld [vmem:[#allocation6 + $0x2a0] sm:$0xff]
    %v2291 = vld [vmem:[#allocation6 + $0x2a8] sm:$0xff]
    %v2292 = vld [vmem:[#allocation6 + $0x2b0] sm:$0xff]
    %v2293 = vld [vmem:[#allocation6 + $0x2b8] sm:$0xff]
    %v2294 = vld [vmem:[#allocation6 + $0x2c0] sm:$0xff]
    %v2295 = vld [vmem:[#allocation6 + $0x2c8] sm:$0xff]
    %v2296 = vld [vmem:[#allocation6 + $0x2d0] sm:$0xff]
    %v2297 = vld [vmem:[#allocation6 + $0x2d8] sm:$0xff]
    %v2298 = vld [vmem:[#allocation6 + $0x2e0] sm:$0xff]
    %v2299 = vld [vmem:[#allocation6 + $0x2e8] sm:$0xff]
    %v2300 = vld [vmem:[#allocation6 + $0x2f0] sm:$0xff]
    %v2301 = vld [vmem:[#allocation6 + $0x2f8] sm:$0xff]
    %v2302 = vld [vmem:[#allocation6 + $0x300] sm:$0xff]
    %v2303 = vld [vmem:[#allocation6 + $0x308] sm:$0xff]
    %v2304 = vld [vmem:[#allocation6 + $0x310] sm:$0xff]
    %v2305 = vld [vmem:[#allocation6 + $0x318] sm:$0xff]
    %v2306 = vld [vmem:[#allocation6 + $0x320] sm:$0xff]
    %v2307 = vld [vmem:[#allocation6 + $0x328] sm:$0xff]
    %v2308 = vld [vmem:[#allocation6 + $0x330] sm:$0xff]
    %v2309 = vld [vmem:[#allocation6 + $0x338] sm:$0xff]
    %v2310 = vld [vmem:[#allocation6 + $0x340] sm:$0xff]
    %v2311 = vld [vmem:[#allocation6 + $0x348] sm:$0xff]
    %v2312 = vld [vmem:[#allocation6 + $0x350] sm:$0xff]
    %v2313 = vld [vmem:[#allocation6 + $0x358] sm:$0xff]
    %v2314 = vld [vmem:[#allocation6 + $0x360] sm:$0xff]
    %v2315 = vld [vmem:[#allocation6 + $0x368] sm:$0xff]
    %v2316 = vld [vmem:[#allocation6 + $0x370] sm:$0xff]
    %v2317 = vld [vmem:[#allocation6 + $0x378] sm:$0xff]
    %v2318 = vld [vmem:[#allocation6 + $0x380] sm:$0xff]
    %v2319 = vld [vmem:[#allocation6 + $0x388] sm:$0xff]
    %v2320 = vld [vmem:[#allocation6 + $0x390] sm:$0xff]
    %v2321 = vld [vmem:[#allocation6 + $0x398] sm:$0xff]
    %v2322 = vld [vmem:[#allocation6 + $0x3a0] sm:$0xff]
    %v2323 = vld [vmem:[#allocation6 + $0x3a8] sm:$0xff]
    %v2324 = vld [vmem:[#allocation6 + $0x3b0] sm:$0xff]
    %v2325 = vld [vmem:[#allocation6 + $0x3b8] sm:$0xff]
    %v2326 = vld [vmem:[#allocation6 + $0x3c0] sm:$0xff]
    %v2327 = vld [vmem:[#allocation6 + $0x3c8] sm:$0xff]
    %v2328 = vld [vmem:[#allocation6 + $0x3d0] sm:$0xff]
    %v2329 = vld [vmem:[#allocation6 + $0x3d8] sm:$0xff]
    %v2330 = vld [vmem:[#allocation6 + $0x3e0] sm:$0xff]
    %v2331 = vld [vmem:[#allocation6 + $0x3e8] sm:$0xff]
    %v2332 = vld [vmem:[#allocation6 + $0x3f0] sm:$0xff]
    %v2333 = vld [vmem:[#allocation6 + $0x3f8] sm:$0xff]
    %v2334 = vld [vmem:[#allocation6 + $0x400] sm:$0xff]
    %v2335 = vld [vmem:[#allocation6 + $0x408] sm:$0xff]
    %v2336 = vld [vmem:[#allocation6 + $0x410] sm:$0xff]
    %v2337 = vld [vmem:[#allocation6 + $0x418] sm:$0xff]
    %v2338 = vld [vmem:[#allocation6 + $0x420] sm:$0xff]
    %v2339 = vld [vmem:[#allocation6 + $0x428] sm:$0xff]
    %v2340 = vld [vmem:[#allocation6 + $0x430] sm:$0xff]
    %v2341 = vld [vmem:[#allocation6 + $0x438] sm:$0xff]
    %v2342 = vld [vmem:[#allocation6 + $0x440] sm:$0xff]
    %v2343 = vld [vmem:[#allocation6 + $0x448] sm:$0xff]
    %v2344 = vld [vmem:[#allocation6 + $0x450] sm:$0xff]
    %v2345 = vld [vmem:[#allocation6 + $0x458] sm:$0xff]
    %v2346 = vld [vmem:[#allocation6 + $0x460] sm:$0xff]
    %v2347 = vld [vmem:[#allocation6 + $0x468] sm:$0xff]
    %v2348 = vld [vmem:[#allocation6 + $0x470] sm:$0xff]
    %v2349 = vld [vmem:[#allocation6 + $0x478] sm:$0xff]
    %v2350 = vld [vmem:[#allocation6 + $0x480] sm:$0xff]
    %v2351 = vld [vmem:[#allocation6 + $0x488] sm:$0xff]
    %v2352 = vld [vmem:[#allocation6 + $0x490] sm:$0xff]
    %v2353 = vld [vmem:[#allocation6 + $0x498] sm:$0xff]
    %v2354 = vld [vmem:[#allocation6 + $0x4a0] sm:$0xff]
    %v2355 = vld [vmem:[#allocation6 + $0x4a8] sm:$0xff]
    %v2356 = vld [vmem:[#allocation6 + $0x4b0] sm:$0xff]
    %v2357 = vld [vmem:[#allocation6 + $0x4b8] sm:$0xff]
    %v2358 = vld [vmem:[#allocation6 + $0x4c0] sm:$0xff]
    %v2359 = vld [vmem:[#allocation6 + $0x4c8] sm:$0xff]
    %v2360 = vld [vmem:[#allocation6 + $0x4d0] sm:$0xff]
    %v2361 = vld [vmem:[#allocation6 + $0x4d8] sm:$0xff]
    %v2362 = vld [vmem:[#allocation6 + $0x4e0] sm:$0xff]
    %v2363 = vld [vmem:[#allocation6 + $0x4e8] sm:$0xff]
    %v2364 = vld [vmem:[#allocation6 + $0x4f0] sm:$0xff]
    %v2365 = vld [vmem:[#allocation6 + $0x4f8] sm:$0xff]
    %v2366 = vld [vmem:[#allocation6 + $0x500] sm:$0xff]
    %v2367 = vld [vmem:[#allocation6 + $0x508] sm:$0xff]
    %v2368 = vld [vmem:[#allocation6 + $0x510] sm:$0xff]
    %v2369 = vld [vmem:[#allocation6 + $0x518] sm:$0xff]
    %v2370 = vld [vmem:[#allocation6 + $0x520] sm:$0xff]
    %v2371 = vld [vmem:[#allocation6 + $0x528] sm:$0xff]
    %v2372 = vld [vmem:[#allocation6 + $0x530] sm:$0xff]
    %v2373 = vld [vmem:[#allocation6 + $0x538] sm:$0xff]
    %v2374 = vld [vmem:[#allocation6 + $0x540] sm:$0xff]
    %v2375 = vld [vmem:[#allocation6 + $0x548] sm:$0xff]
    %v2376 = vld [vmem:[#allocation6 + $0x550] sm:$0xff]
    %v2377 = vld [vmem:[#allocation6 + $0x558] sm:$0xff]
    %v2378 = vld [vmem:[#allocation6 + $0x560] sm:$0xff]
    %v2379 = vld [vmem:[#allocation6 + $0x568] sm:$0xff]
    %v2380 = vld [vmem:[#allocation6 + $0x570] sm:$0xff]
    %v2381 = vld [vmem:[#allocation6 + $0x578] sm:$0xff]
    %v2382 = vld [vmem:[#allocation6 + $0x580] sm:$0xff]
    %v2383 = vld [vmem:[#allocation6 + $0x588] sm:$0xff]
    %v2384 = vld [vmem:[#allocation6 + $0x590] sm:$0xff]
    %v2385 = vld [vmem:[#allocation6 + $0x598] sm:$0xff]
    %v2386 = vld [vmem:[#allocation6 + $0x5a0] sm:$0xff]
    %v2387 = vld [vmem:[#allocation6 + $0x5a8] sm:$0xff]
    %v2388 = vld [vmem:[#allocation6 + $0x5b0] sm:$0xff]
    %v2389 = vld [vmem:[#allocation6 + $0x5b8] sm:$0xff]
    %v2390 = vld [vmem:[#allocation6 + $0x5c0] sm:$0xff]
    %v2391 = vld [vmem:[#allocation6 + $0x5c8] sm:$0xff]
    %v2392 = vld [vmem:[#allocation6 + $0x5d0] sm:$0xff]
    %v2393 = vld [vmem:[#allocation6 + $0x5d8] sm:$0xff]
    %v2394 = vld [vmem:[#allocation6 + $0x5e0] sm:$0xff]
    %v2395 = vld [vmem:[#allocation6 + $0x5e8] sm:$0xff]
    %v2396 = vld [vmem:[#allocation6 + $0x5f0] sm:$0xff]
    %v2397 = vld [vmem:[#allocation6 + $0x5f8] sm:$0xff]
    %v2398 = vld [vmem:[#allocation6 + $0x600] sm:$0xff]
    %v2399 = vld [vmem:[#allocation6 + $0x608] sm:$0xff]
    %v2400 = vld [vmem:[#allocation6 + $0x610] sm:$0xff]
    %v2401 = vld [vmem:[#allocation6 + $0x618] sm:$0xff]
    %v2402 = vld [vmem:[#allocation6 + $0x620] sm:$0xff]
    %v2403 = vld [vmem:[#allocation6 + $0x628] sm:$0xff]
    %v2404 = vld [vmem:[#allocation6 + $0x630] sm:$0xff]
    %v2405 = vld [vmem:[#allocation6 + $0x638] sm:$0xff]
    %v2406 = vld [vmem:[#allocation6 + $0x640] sm:$0xff]
    %v2407 = vld [vmem:[#allocation6 + $0x648] sm:$0xff]
    %v2408 = vld [vmem:[#allocation6 + $0x650] sm:$0xff]
    %v2409 = vld [vmem:[#allocation6 + $0x658] sm:$0xff]
    %v2410 = vld [vmem:[#allocation6 + $0x660] sm:$0xff]
    %v2411 = vld [vmem:[#allocation6 + $0x668] sm:$0xff]
    %v2412 = vld [vmem:[#allocation6 + $0x670] sm:$0xff]
    %v2413 = vld [vmem:[#allocation6 + $0x678] sm:$0xff]
    %v2414 = vld [vmem:[#allocation6 + $0x680] sm:$0xff]
    %v2415 = vld [vmem:[#allocation6 + $0x688] sm:$0xff]
    %v2416 = vld [vmem:[#allocation6 + $0x690] sm:$0xff]
    %v2417 = vld [vmem:[#allocation6 + $0x698] sm:$0xff]
    %v2418 = vld [vmem:[#allocation6 + $0x6a0] sm:$0xff]
    %v2419 = vld [vmem:[#allocation6 + $0x6a8] sm:$0xff]
    %v2420 = vld [vmem:[#allocation6 + $0x6b0] sm:$0xff]
    %v2421 = vld [vmem:[#allocation6 + $0x6b8] sm:$0xff]
    %v2422 = vld [vmem:[#allocation6 + $0x6c0] sm:$0xff]
    %v2423 = vld [vmem:[#allocation6 + $0x6c8] sm:$0xff]
    %v2424 = vld [vmem:[#allocation6 + $0x6d0] sm:$0xff]
    %v2425 = vld [vmem:[#allocation6 + $0x6d8] sm:$0xff]
    %v2426 = vld [vmem:[#allocation6 + $0x6e0] sm:$0xff]
    %v2427 = vld [vmem:[#allocation6 + $0x6e8] sm:$0xff]
    %v2428 = vld [vmem:[#allocation6 + $0x6f0] sm:$0xff]
    %v2429 = vld [vmem:[#allocation6 + $0x6f8] sm:$0xff]
    %v2430 = vld [vmem:[#allocation6 + $0x700] sm:$0xff]
    %v2431 = vld [vmem:[#allocation6 + $0x708] sm:$0xff]
    %v2432 = vld [vmem:[#allocation6 + $0x710] sm:$0xff]
    %v2433 = vld [vmem:[#allocation6 + $0x718] sm:$0xff]
    %v2434 = vld [vmem:[#allocation6 + $0x720] sm:$0xff]
    %v2435 = vld [vmem:[#allocation6 + $0x728] sm:$0xff]
    %v2436 = vld [vmem:[#allocation6 + $0x730] sm:$0xff]
    %v2437 = vld [vmem:[#allocation6 + $0x738] sm:$0xff]
    %v2438 = vld [vmem:[#allocation6 + $0x740] sm:$0xff]
    %v2439 = vld [vmem:[#allocation6 + $0x748] sm:$0xff]
    %v2440 = vld [vmem:[#allocation6 + $0x750] sm:$0xff]
    %v2441 = vld [vmem:[#allocation6 + $0x758] sm:$0xff]
    %v2442 = vld [vmem:[#allocation6 + $0x760] sm:$0xff]
    %v2443 = vld [vmem:[#allocation6 + $0x768] sm:$0xff]
    %v2444 = vld [vmem:[#allocation6 + $0x770] sm:$0xff]
    %v2445 = vld [vmem:[#allocation6 + $0x778] sm:$0xff]
    %v2446 = vld [vmem:[#allocation6 + $0x780] sm:$0xff]
    %v2447 = vld [vmem:[#allocation6 + $0x788] sm:$0xff]
    %v2448 = vld [vmem:[#allocation6 + $0x790] sm:$0xff]
    %v2449 = vld [vmem:[#allocation6 + $0x798] sm:$0xff]
    %v2450 = vld [vmem:[#allocation6 + $0x7a0] sm:$0xff]
    %v2451 = vld [vmem:[#allocation6 + $0x7a8] sm:$0xff]
    %v2452 = vld [vmem:[#allocation6 + $0x7b0] sm:$0xff]
    %v2453 = vld [vmem:[#allocation6 + $0x7b8] sm:$0xff]
    %v2454 = vld [vmem:[#allocation6 + $0x7c0] sm:$0xff]
    %v2455 = vld [vmem:[#allocation6 + $0x7c8] sm:$0xff]
    %v2456 = vld [vmem:[#allocation6 + $0x7d0] sm:$0xff]
    %v2457 = vld [vmem:[#allocation6 + $0x7d8] sm:$0xff]
    %v2458 = vld [vmem:[#allocation6 + $0x7e0] sm:$0xff]
    %v2459 = vld [vmem:[#allocation6 + $0x7e8] sm:$0xff]
    %v2460 = vld [vmem:[#allocation6 + $0x7f0] sm:$0xff]
    %v2461 = vld [vmem:[#allocation6 + $0x7f8] sm:$0xff]
    %v2462 = vld [vmem:[%s6] sm:$0xf]
    %v2464 = vperm.slane %v2462, 0
    %v2465 = vperm.slane %v2462, 1
    %v2466 = vperm.slane %v2462, 2
    %v2467 = vperm.slane %v2462, 3
    %v2728 = vunpack.c.l.b16 %v2206
    %v2729 = vunpack.c.h.b16 %v2206
    %v2730 = vunpack.c.l.b16 %v2207
    %v2731 = vunpack.c.h.b16 %v2207
    %v2732 = vunpack.c.l.b16 %v2208
    %v2733 = vunpack.c.h.b16 %v2208
    %v2734 = vunpack.c.l.b16 %v2209
    %v2735 = vunpack.c.h.b16 %v2209
    %v2736 = vunpack.c.l.b16 %v2210
    %v2737 = vunpack.c.h.b16 %v2210
    %v2738 = vunpack.c.l.b16 %v2211
    %v2739 = vunpack.c.h.b16 %v2211
    %v2740 = vunpack.c.l.b16 %v2212
    %v2741 = vunpack.c.h.b16 %v2212
    %v2742 = vunpack.c.l.b16 %v2213
    %v2743 = vunpack.c.h.b16 %v2213
    %v2744 = vunpack.c.l.b16 %v2214
    %v2745 = vunpack.c.h.b16 %v2214
    %v2746 = vunpack.c.l.b16 %v2215
    %v2747 = vunpack.c.h.b16 %v2215
    %v2748 = vunpack.c.l.b16 %v2216
    %v2749 = vunpack.c.h.b16 %v2216
    %v2750 = vunpack.c.l.b16 %v2217
    %v2751 = vunpack.c.h.b16 %v2217
    %v2752 = vunpack.c.l.b16 %v2218
    %v2753 = vunpack.c.h.b16 %v2218
    %v2754 = vunpack.c.l.b16 %v2219
    %v2755 = vunpack.c.h.b16 %v2219
    %v2756 = vunpack.c.l.b16 %v2220
    %v2757 = vunpack.c.h.b16 %v2220
    %v2758 = vunpack.c.l.b16 %v2221
    %v2759 = vunpack.c.h.b16 %v2221
    %v2760 = vunpack.c.l.b16 %v2222
    %v2761 = vunpack.c.h.b16 %v2222
    %v2762 = vunpack.c.l.b16 %v2223
    %v2763 = vunpack.c.h.b16 %v2223
    %v2764 = vunpack.c.l.b16 %v2224
    %v2765 = vunpack.c.h.b16 %v2224
    %v2766 = vunpack.c.l.b16 %v2225
    %v2767 = vunpack.c.h.b16 %v2225
    %v2768 = vunpack.c.l.b16 %v2226
    %v2769 = vunpack.c.h.b16 %v2226
    %v2770 = vunpack.c.l.b16 %v2227
    %v2771 = vunpack.c.h.b16 %v2227
    %v2772 = vunpack.c.l.b16 %v2228
    %v2773 = vunpack.c.h.b16 %v2228
    %v2774 = vunpack.c.l.b16 %v2229
    %v2775 = vunpack.c.h.b16 %v2229
    %v2776 = vunpack.c.l.b16 %v2230
    %v2777 = vunpack.c.h.b16 %v2230
    %v2778 = vunpack.c.l.b16 %v2231
    %v2779 = vunpack.c.h.b16 %v2231
    %v2780 = vunpack.c.l.b16 %v2232
    %v2781 = vunpack.c.h.b16 %v2232
    %v2782 = vunpack.c.l.b16 %v2233
    %v2783 = vunpack.c.h.b16 %v2233
    %v2784 = vunpack.c.l.b16 %v2234
    %v2785 = vunpack.c.h.b16 %v2234
    %v2786 = vunpack.c.l.b16 %v2235
    %v2787 = vunpack.c.h.b16 %v2235
    %v2788 = vunpack.c.l.b16 %v2236
    %v2789 = vunpack.c.h.b16 %v2236
    %v2790 = vunpack.c.l.b16 %v2237
    %v2791 = vunpack.c.h.b16 %v2237
    %v2792 = vunpack.c.l.b16 %v2238
    %v2793 = vunpack.c.h.b16 %v2238
    %v2794 = vunpack.c.l.b16 %v2239
    %v2795 = vunpack.c.h.b16 %v2239
    %v2796 = vunpack.c.l.b16 %v2240
    %v2797 = vunpack.c.h.b16 %v2240
    %v2798 = vunpack.c.l.b16 %v2241
    %v2799 = vunpack.c.h.b16 %v2241
    %v2800 = vunpack.c.l.b16 %v2242
    %v2801 = vunpack.c.h.b16 %v2242
    %v2802 = vunpack.c.l.b16 %v2243
    %v2803 = vunpack.c.h.b16 %v2243
    %v2804 = vunpack.c.l.b16 %v2244
    %v2805 = vunpack.c.h.b16 %v2244
    %v2806 = vunpack.c.l.b16 %v2245
    %v2807 = vunpack.c.h.b16 %v2245
    %v2808 = vunpack.c.l.b16 %v2246
    %v2809 = vunpack.c.h.b16 %v2246
    %v2810 = vunpack.c.l.b16 %v2247
    %v2811 = vunpack.c.h.b16 %v2247
    %v2812 = vunpack.c.l.b16 %v2248
    %v2813 = vunpack.c.h.b16 %v2248
    %v2814 = vunpack.c.l.b16 %v2249
    %v2815 = vunpack.c.h.b16 %v2249
    %v2816 = vunpack.c.l.b16 %v2250
    %v2817 = vunpack.c.h.b16 %v2250
    %v2818 = vunpack.c.l.b16 %v2251
    %v2819 = vunpack.c.h.b16 %v2251
    %v2820 = vunpack.c.l.b16 %v2252
    %v2821 = vunpack.c.h.b16 %v2252
    %v2822 = vunpack.c.l.b16 %v2253
    %v2823 = vunpack.c.h.b16 %v2253
    %v2824 = vunpack.c.l.b16 %v2254
    %v2825 = vunpack.c.h.b16 %v2254
    %v2826 = vunpack.c.l.b16 %v2255
    %v2827 = vunpack.c.h.b16 %v2255
    %v2828 = vunpack.c.l.b16 %v2256
    %v2829 = vunpack.c.h.b16 %v2256
    %v2830 = vunpack.c.l.b16 %v2257
    %v2831 = vunpack.c.h.b16 %v2257
    %v2832 = vunpack.c.l.b16 %v2258
    %v2833 = vunpack.c.h.b16 %v2258
    %v2834 = vunpack.c.l.b16 %v2259
    %v2835 = vunpack.c.h.b16 %v2259
    %v2836 = vunpack.c.l.b16 %v2260
    %v2837 = vunpack.c.h.b16 %v2260
    %v2838 = vunpack.c.l.b16 %v2261
    %v2839 = vunpack.c.h.b16 %v2261
    %v2840 = vunpack.c.l.b16 %v2262
    %v2841 = vunpack.c.h.b16 %v2262
    %v2842 = vunpack.c.l.b16 %v2263
    %v2843 = vunpack.c.h.b16 %v2263
    %v2844 = vunpack.c.l.b16 %v2264
    %v2845 = vunpack.c.h.b16 %v2264
    %v2846 = vunpack.c.l.b16 %v2265
    %v2847 = vunpack.c.h.b16 %v2265
    %v2848 = vunpack.c.l.b16 %v2266
    %v2849 = vunpack.c.h.b16 %v2266
    %v2850 = vunpack.c.l.b16 %v2267
    %v2851 = vunpack.c.h.b16 %v2267
    %v2852 = vunpack.c.l.b16 %v2268
    %v2853 = vunpack.c.h.b16 %v2268
    %v2854 = vunpack.c.l.b16 %v2269
    %v2855 = vunpack.c.h.b16 %v2269
    %v2856 = vunpack.c.l.b16 %v2270
    %v2857 = vunpack.c.h.b16 %v2270
    %v2858 = vunpack.c.l.b16 %v2271
    %v2859 = vunpack.c.h.b16 %v2271
    %v2860 = vunpack.c.l.b16 %v2272
    %v2861 = vunpack.c.h.b16 %v2272
    %v2862 = vunpack.c.l.b16 %v2273
    %v2863 = vunpack.c.h.b16 %v2273
    %v2864 = vunpack.c.l.b16 %v2274
    %v2865 = vunpack.c.h.b16 %v2274
    %v2866 = vunpack.c.l.b16 %v2275
    %v2867 = vunpack.c.h.b16 %v2275
    %v2868 = vunpack.c.l.b16 %v2276
    %v2869 = vunpack.c.h.b16 %v2276
    %v2870 = vunpack.c.l.b16 %v2277
    %v2871 = vunpack.c.h.b16 %v2277
    %v2872 = vunpack.c.l.b16 %v2278
    %v2873 = vunpack.c.h.b16 %v2278
    %v2874 = vunpack.c.l.b16 %v2279
    %v2875 = vunpack.c.h.b16 %v2279
    %v2876 = vunpack.c.l.b16 %v2280
    %v2877 = vunpack.c.h.b16 %v2280
    %v2878 = vunpack.c.l.b16 %v2281
    %v2879 = vunpack.c.h.b16 %v2281
    %v2880 = vunpack.c.l.b16 %v2282
    %v2881 = vunpack.c.h.b16 %v2282
    %v2882 = vunpack.c.l.b16 %v2283
    %v2883 = vunpack.c.h.b16 %v2283
    %v2884 = vunpack.c.l.b16 %v2284
    %v2885 = vunpack.c.h.b16 %v2284
    %v2886 = vunpack.c.l.b16 %v2285
    %v2887 = vunpack.c.h.b16 %v2285
    %v2888 = vunpack.c.l.b16 %v2286
    %v2889 = vunpack.c.h.b16 %v2286
    %v2890 = vunpack.c.l.b16 %v2287
    %v2891 = vunpack.c.h.b16 %v2287
    %v2892 = vunpack.c.l.b16 %v2288
    %v2893 = vunpack.c.h.b16 %v2288
    %v2894 = vunpack.c.l.b16 %v2289
    %v2895 = vunpack.c.h.b16 %v2289
    %v2896 = vunpack.c.l.b16 %v2290
    %v2897 = vunpack.c.h.b16 %v2290
    %v2898 = vunpack.c.l.b16 %v2291
    %v2899 = vunpack.c.h.b16 %v2291
    %v2900 = vunpack.c.l.b16 %v2292
    %v2901 = vunpack.c.h.b16 %v2292
    %v2902 = vunpack.c.l.b16 %v2293
    %v2903 = vunpack.c.h.b16 %v2293
    %v2904 = vunpack.c.l.b16 %v2294
    %v2905 = vunpack.c.h.b16 %v2294
    %v2906 = vunpack.c.l.b16 %v2295
    %v2907 = vunpack.c.h.b16 %v2295
    %v2908 = vunpack.c.l.b16 %v2296
    %v2909 = vunpack.c.h.b16 %v2296
    %v2910 = vunpack.c.l.b16 %v2297
    %v2911 = vunpack.c.h.b16 %v2297
    %v2912 = vunpack.c.l.b16 %v2298
    %v2913 = vunpack.c.h.b16 %v2298
    %v2914 = vunpack.c.l.b16 %v2299
    %v2915 = vunpack.c.h.b16 %v2299
    %v2916 = vunpack.c.l.b16 %v2300
    %v2917 = vunpack.c.h.b16 %v2300
    %v2918 = vunpack.c.l.b16 %v2301
    %v2919 = vunpack.c.h.b16 %v2301
    %v2920 = vunpack.c.l.b16 %v2302
    %v2921 = vunpack.c.h.b16 %v2302
    %v2922 = vunpack.c.l.b16 %v2303
    %v2923 = vunpack.c.h.b16 %v2303
    %v2924 = vunpack.c.l.b16 %v2304
    %v2925 = vunpack.c.h.b16 %v2304
    %v2926 = vunpack.c.l.b16 %v2305
    %v2927 = vunpack.c.h.b16 %v2305
    %v2928 = vunpack.c.l.b16 %v2306
    %v2929 = vunpack.c.h.b16 %v2306
    %v2930 = vunpack.c.l.b16 %v2307
    %v2931 = vunpack.c.h.b16 %v2307
    %v2932 = vunpack.c.l.b16 %v2308
    %v2933 = vunpack.c.h.b16 %v2308
    %v2934 = vunpack.c.l.b16 %v2309
    %v2935 = vunpack.c.h.b16 %v2309
    %v2936 = vunpack.c.l.b16 %v2310
    %v2937 = vunpack.c.h.b16 %v2310
    %v2938 = vunpack.c.l.b16 %v2311
    %v2939 = vunpack.c.h.b16 %v2311
    %v2940 = vunpack.c.l.b16 %v2312
    %v2941 = vunpack.c.h.b16 %v2312
    %v2942 = vunpack.c.l.b16 %v2313
    %v2943 = vunpack.c.h.b16 %v2313
    %v2944 = vunpack.c.l.b16 %v2314
    %v2945 = vunpack.c.h.b16 %v2314
    %v2946 = vunpack.c.l.b16 %v2315
    %v2947 = vunpack.c.h.b16 %v2315
    %v2948 = vunpack.c.l.b16 %v2316
    %v2949 = vunpack.c.h.b16 %v2316
    %v2950 = vunpack.c.l.b16 %v2317
    %v2951 = vunpack.c.h.b16 %v2317
    %v2952 = vunpack.c.l.b16 %v2318
    %v2953 = vunpack.c.h.b16 %v2318
    %v2954 = vunpack.c.l.b16 %v2319
    %v2955 = vunpack.c.h.b16 %v2319
    %v2956 = vunpack.c.l.b16 %v2320
    %v2957 = vunpack.c.h.b16 %v2320
    %v2958 = vunpack.c.l.b16 %v2321
    %v2959 = vunpack.c.h.b16 %v2321
    %v2960 = vunpack.c.l.b16 %v2322
    %v2961 = vunpack.c.h.b16 %v2322
    %v2962 = vunpack.c.l.b16 %v2323
    %v2963 = vunpack.c.h.b16 %v2323
    %v2964 = vunpack.c.l.b16 %v2324
    %v2965 = vunpack.c.h.b16 %v2324
    %v2966 = vunpack.c.l.b16 %v2325
    %v2967 = vunpack.c.h.b16 %v2325
    %v2968 = vunpack.c.l.b16 %v2326
    %v2969 = vunpack.c.h.b16 %v2326
    %v2970 = vunpack.c.l.b16 %v2327
    %v2971 = vunpack.c.h.b16 %v2327
    %v2972 = vunpack.c.l.b16 %v2328
    %v2973 = vunpack.c.h.b16 %v2328
    %v2974 = vunpack.c.l.b16 %v2329
    %v2975 = vunpack.c.h.b16 %v2329
    %v2976 = vunpack.c.l.b16 %v2330
    %v2977 = vunpack.c.h.b16 %v2330
    %v2978 = vunpack.c.l.b16 %v2331
    %v2979 = vunpack.c.h.b16 %v2331
    %v2980 = vunpack.c.l.b16 %v2332
    %v2981 = vunpack.c.h.b16 %v2332
    %v2982 = vunpack.c.l.b16 %v2333
    %v2983 = vunpack.c.h.b16 %v2333
    %v2984 = vunpack.c.l.b16 %v2334
    %v2985 = vunpack.c.h.b16 %v2334
    %v2986 = vunpack.c.l.b16 %v2335
    %v2987 = vunpack.c.h.b16 %v2335
    %v2988 = vunpack.c.l.b16 %v2336
    %v2989 = vunpack.c.h.b16 %v2336
    %v2990 = vunpack.c.l.b16 %v2337
    %v2991 = vunpack.c.h.b16 %v2337
    %v2992 = vunpack.c.l.b16 %v2338
    %v2993 = vunpack.c.h.b16 %v2338
    %v2994 = vunpack.c.l.b16 %v2339
    %v2995 = vunpack.c.h.b16 %v2339
    %v2996 = vunpack.c.l.b16 %v2340
    %v2997 = vunpack.c.h.b16 %v2340
    %v2998 = vunpack.c.l.b16 %v2341
    %v2999 = vunpack.c.h.b16 %v2341
    %v3000 = vunpack.c.l.b16 %v2342
    %v3001 = vunpack.c.h.b16 %v2342
    %v3002 = vunpack.c.l.b16 %v2343
    %v3003 = vunpack.c.h.b16 %v2343
    %v3004 = vunpack.c.l.b16 %v2344
    %v3005 = vunpack.c.h.b16 %v2344
    %v3006 = vunpack.c.l.b16 %v2345
    %v3007 = vunpack.c.h.b16 %v2345
    %v3008 = vunpack.c.l.b16 %v2346
    %v3009 = vunpack.c.h.b16 %v2346
    %v3010 = vunpack.c.l.b16 %v2347
    %v3011 = vunpack.c.h.b16 %v2347
    %v3012 = vunpack.c.l.b16 %v2348
    %v3013 = vunpack.c.h.b16 %v2348
    %v3014 = vunpack.c.l.b16 %v2349
    %v3015 = vunpack.c.h.b16 %v2349
    %v3016 = vunpack.c.l.b16 %v2350
    %v3017 = vunpack.c.h.b16 %v2350
    %v3018 = vunpack.c.l.b16 %v2351
    %v3019 = vunpack.c.h.b16 %v2351
    %v3020 = vunpack.c.l.b16 %v2352
    %v3021 = vunpack.c.h.b16 %v2352
    %v3022 = vunpack.c.l.b16 %v2353
    %v3023 = vunpack.c.h.b16 %v2353
    %v3024 = vunpack.c.l.b16 %v2354
    %v3025 = vunpack.c.h.b16 %v2354
    %v3026 = vunpack.c.l.b16 %v2355
    %v3027 = vunpack.c.h.b16 %v2355
    %v3028 = vunpack.c.l.b16 %v2356
    %v3029 = vunpack.c.h.b16 %v2356
    %v3030 = vunpack.c.l.b16 %v2357
    %v3031 = vunpack.c.h.b16 %v2357
    %v3032 = vunpack.c.l.b16 %v2358
    %v3033 = vunpack.c.h.b16 %v2358
    %v3034 = vunpack.c.l.b16 %v2359
    %v3035 = vunpack.c.h.b16 %v2359
    %v3036 = vunpack.c.l.b16 %v2360
    %v3037 = vunpack.c.h.b16 %v2360
    %v3038 = vunpack.c.l.b16 %v2361
    %v3039 = vunpack.c.h.b16 %v2361
    %v3040 = vunpack.c.l.b16 %v2362
    %v3041 = vunpack.c.h.b16 %v2362
    %v3042 = vunpack.c.l.b16 %v2363
    %v3043 = vunpack.c.h.b16 %v2363
    %v3044 = vunpack.c.l.b16 %v2364
    %v3045 = vunpack.c.h.b16 %v2364
    %v3046 = vunpack.c.l.b16 %v2365
    %v3047 = vunpack.c.h.b16 %v2365
    %v3048 = vunpack.c.l.b16 %v2366
    %v3049 = vunpack.c.h.b16 %v2366
    %v3050 = vunpack.c.l.b16 %v2367
    %v3051 = vunpack.c.h.b16 %v2367
    %v3052 = vunpack.c.l.b16 %v2368
    %v3053 = vunpack.c.h.b16 %v2368
    %v3054 = vunpack.c.l.b16 %v2369
    %v3055 = vunpack.c.h.b16 %v2369
    %v3056 = vunpack.c.l.b16 %v2370
    %v3057 = vunpack.c.h.b16 %v2370
    %v3058 = vunpack.c.l.b16 %v2371
    %v3059 = vunpack.c.h.b16 %v2371
    %v3060 = vunpack.c.l.b16 %v2372
    %v3061 = vunpack.c.h.b16 %v2372
    %v3062 = vunpack.c.l.b16 %v2373
    %v3063 = vunpack.c.h.b16 %v2373
    %v3064 = vunpack.c.l.b16 %v2374
    %v3065 = vunpack.c.h.b16 %v2374
    %v3066 = vunpack.c.l.b16 %v2375
    %v3067 = vunpack.c.h.b16 %v2375
    %v3068 = vunpack.c.l.b16 %v2376
    %v3069 = vunpack.c.h.b16 %v2376
    %v3070 = vunpack.c.l.b16 %v2377
    %v3071 = vunpack.c.h.b16 %v2377
    %v3072 = vunpack.c.l.b16 %v2378
    %v3073 = vunpack.c.h.b16 %v2378
    %v3074 = vunpack.c.l.b16 %v2379
    %v3075 = vunpack.c.h.b16 %v2379
    %v3076 = vunpack.c.l.b16 %v2380
    %v3077 = vunpack.c.h.b16 %v2380
    %v3078 = vunpack.c.l.b16 %v2381
    %v3079 = vunpack.c.h.b16 %v2381
    %v3080 = vunpack.c.l.b16 %v2382
    %v3081 = vunpack.c.h.b16 %v2382
    %v3082 = vunpack.c.l.b16 %v2383
    %v3083 = vunpack.c.h.b16 %v2383
    %v3084 = vunpack.c.l.b16 %v2384
    %v3085 = vunpack.c.h.b16 %v2384
    %v3086 = vunpack.c.l.b16 %v2385
    %v3087 = vunpack.c.h.b16 %v2385
    %v3088 = vunpack.c.l.b16 %v2386
    %v3089 = vunpack.c.h.b16 %v2386
    %v3090 = vunpack.c.l.b16 %v2387
    %v3091 = vunpack.c.h.b16 %v2387
    %v3092 = vunpack.c.l.b16 %v2388
    %v3093 = vunpack.c.h.b16 %v2388
    %v3094 = vunpack.c.l.b16 %v2389
    %v3095 = vunpack.c.h.b16 %v2389
    %v3096 = vunpack.c.l.b16 %v2390
    %v3097 = vunpack.c.h.b16 %v2390
    %v3098 = vunpack.c.l.b16 %v2391
    %v3099 = vunpack.c.h.b16 %v2391
    %v3100 = vunpack.c.l.b16 %v2392
    %v3101 = vunpack.c.h.b16 %v2392
    %v3102 = vunpack.c.l.b16 %v2393
    %v3103 = vunpack.c.h.b16 %v2393
    %v3104 = vunpack.c.l.b16 %v2394
    %v3105 = vunpack.c.h.b16 %v2394
    %v3106 = vunpack.c.l.b16 %v2395
    %v3107 = vunpack.c.h.b16 %v2395
    %v3108 = vunpack.c.l.b16 %v2396
    %v3109 = vunpack.c.h.b16 %v2396
    %v3110 = vunpack.c.l.b16 %v2397
    %v3111 = vunpack.c.h.b16 %v2397
    %v3112 = vunpack.c.l.b16 %v2398
    %v3113 = vunpack.c.h.b16 %v2398
    %v3114 = vunpack.c.l.b16 %v2399
    %v3115 = vunpack.c.h.b16 %v2399
    %v3116 = vunpack.c.l.b16 %v2400
    %v3117 = vunpack.c.h.b16 %v2400
    %v3118 = vunpack.c.l.b16 %v2401
    %v3119 = vunpack.c.h.b16 %v2401
    %v3120 = vunpack.c.l.b16 %v2402
    %v3121 = vunpack.c.h.b16 %v2402
    %v3122 = vunpack.c.l.b16 %v2403
    %v3123 = vunpack.c.h.b16 %v2403
    %v3124 = vunpack.c.l.b16 %v2404
    %v3125 = vunpack.c.h.b16 %v2404
    %v3126 = vunpack.c.l.b16 %v2405
    %v3127 = vunpack.c.h.b16 %v2405
    %v3128 = vunpack.c.l.b16 %v2406
    %v3129 = vunpack.c.h.b16 %v2406
    %v3130 = vunpack.c.l.b16 %v2407
    %v3131 = vunpack.c.h.b16 %v2407
    %v3132 = vunpack.c.l.b16 %v2408
    %v3133 = vunpack.c.h.b16 %v2408
    %v3134 = vunpack.c.l.b16 %v2409
    %v3135 = vunpack.c.h.b16 %v2409
    %v3136 = vunpack.c.l.b16 %v2410
    %v3137 = vunpack.c.h.b16 %v2410
    %v3138 = vunpack.c.l.b16 %v2411
    %v3139 = vunpack.c.h.b16 %v2411
    %v3140 = vunpack.c.l.b16 %v2412
    %v3141 = vunpack.c.h.b16 %v2412
    %v3142 = vunpack.c.l.b16 %v2413
    %v3143 = vunpack.c.h.b16 %v2413
    %v3144 = vunpack.c.l.b16 %v2414
    %v3145 = vunpack.c.h.b16 %v2414
    %v3146 = vunpack.c.l.b16 %v2415
    %v3147 = vunpack.c.h.b16 %v2415
    %v3148 = vunpack.c.l.b16 %v2416
    %v3149 = vunpack.c.h.b16 %v2416
    %v3150 = vunpack.c.l.b16 %v2417
    %v3151 = vunpack.c.h.b16 %v2417
    %v3152 = vunpack.c.l.b16 %v2418
    %v3153 = vunpack.c.h.b16 %v2418
    %v3154 = vunpack.c.l.b16 %v2419
    %v3155 = vunpack.c.h.b16 %v2419
    %v3156 = vunpack.c.l.b16 %v2420
    %v3157 = vunpack.c.h.b16 %v2420
    %v3158 = vunpack.c.l.b16 %v2421
    %v3159 = vunpack.c.h.b16 %v2421
    %v3160 = vunpack.c.l.b16 %v2422
    %v3161 = vunpack.c.h.b16 %v2422
    %v3162 = vunpack.c.l.b16 %v2423
    %v3163 = vunpack.c.h.b16 %v2423
    %v3164 = vunpack.c.l.b16 %v2424
    %v3165 = vunpack.c.h.b16 %v2424
    %v3166 = vunpack.c.l.b16 %v2425
    %v3167 = vunpack.c.h.b16 %v2425
    %v3168 = vunpack.c.l.b16 %v2426
    %v3169 = vunpack.c.h.b16 %v2426
    %v3170 = vunpack.c.l.b16 %v2427
    %v3171 = vunpack.c.h.b16 %v2427
    %v3172 = vunpack.c.l.b16 %v2428
    %v3173 = vunpack.c.h.b16 %v2428
    %v3174 = vunpack.c.l.b16 %v2429
    %v3175 = vunpack.c.h.b16 %v2429
    %v3176 = vunpack.c.l.b16 %v2430
    %v3177 = vunpack.c.h.b16 %v2430
    %v3178 = vunpack.c.l.b16 %v2431
    %v3179 = vunpack.c.h.b16 %v2431
    %v3180 = vunpack.c.l.b16 %v2432
    %v3181 = vunpack.c.h.b16 %v2432
    %v3182 = vunpack.c.l.b16 %v2433
    %v3183 = vunpack.c.h.b16 %v2433
    %v3184 = vunpack.c.l.b16 %v2434
    %v3185 = vunpack.c.h.b16 %v2434
    %v3186 = vunpack.c.l.b16 %v2435
    %v3187 = vunpack.c.h.b16 %v2435
    %v3188 = vunpack.c.l.b16 %v2436
    %v3189 = vunpack.c.h.b16 %v2436
    %v3190 = vunpack.c.l.b16 %v2437
    %v3191 = vunpack.c.h.b16 %v2437
    %v3192 = vunpack.c.l.b16 %v2438
    %v3193 = vunpack.c.h.b16 %v2438
    %v3194 = vunpack.c.l.b16 %v2439
    %v3195 = vunpack.c.h.b16 %v2439
    %v3196 = vunpack.c.l.b16 %v2440
    %v3197 = vunpack.c.h.b16 %v2440
    %v3198 = vunpack.c.l.b16 %v2441
    %v3199 = vunpack.c.h.b16 %v2441
    %v3200 = vunpack.c.l.b16 %v2442
    %v3201 = vunpack.c.h.b16 %v2442
    %v3202 = vunpack.c.l.b16 %v2443
    %v3203 = vunpack.c.h.b16 %v2443
    %v3204 = vunpack.c.l.b16 %v2444
    %v3205 = vunpack.c.h.b16 %v2444
    %v3206 = vunpack.c.l.b16 %v2445
    %v3207 = vunpack.c.h.b16 %v2445
    %v3208 = vunpack.c.l.b16 %v2446
    %v3209 = vunpack.c.h.b16 %v2446
    %v3210 = vunpack.c.l.b16 %v2447
    %v3211 = vunpack.c.h.b16 %v2447
    %v3212 = vunpack.c.l.b16 %v2448
    %v3213 = vunpack.c.h.b16 %v2448
    %v3214 = vunpack.c.l.b16 %v2449
    %v3215 = vunpack.c.h.b16 %v2449
    %v3216 = vunpack.c.l.b16 %v2450
    %v3217 = vunpack.c.h.b16 %v2450
    %v3218 = vunpack.c.l.b16 %v2451
    %v3219 = vunpack.c.h.b16 %v2451
    %v3220 = vunpack.c.l.b16 %v2452
    %v3221 = vunpack.c.h.b16 %v2452
    %v3222 = vunpack.c.l.b16 %v2453
    %v3223 = vunpack.c.h.b16 %v2453
    %v3224 = vunpack.c.l.b16 %v2454
    %v3225 = vunpack.c.h.b16 %v2454
    %v3226 = vunpack.c.l.b16 %v2455
    %v3227 = vunpack.c.h.b16 %v2455
    %v3228 = vunpack.c.l.b16 %v2456
    %v3229 = vunpack.c.h.b16 %v2456
    %v3230 = vunpack.c.l.b16 %v2457
    %v3231 = vunpack.c.h.b16 %v2457
    %v3232 = vunpack.c.l.b16 %v2458
    %v3233 = vunpack.c.h.b16 %v2458
    %v3234 = vunpack.c.l.b16 %v2459
    %v3235 = vunpack.c.h.b16 %v2459
    %v3236 = vunpack.c.l.b16 %v2460
    %v3237 = vunpack.c.h.b16 %v2460
    %v3238 = vunpack.c.l.b16 %v2461
    %v3239 = vunpack.c.h.b16 %v2461
    %v3240 = vpack.c.b16 %v2732, %v2728
    %v3241 = vpack.c.b16 %v2733, %v2729
    %v3242 = vpack.c.b16 %v2734, %v2730
    %v3243 = vpack.c.b16 %v2735, %v2731
    %v3244 = vpack.c.b16 %v2740, %v2736
    %v3245 = vpack.c.b16 %v2741, %v2737
    %v3246 = vpack.c.b16 %v2742, %v2738
    %v3247 = vpack.c.b16 %v2743, %v2739
    %v3248 = vpack.c.b16 %v2748, %v2744
    %v3249 = vpack.c.b16 %v2749, %v2745
    %v3250 = vpack.c.b16 %v2750, %v2746
    %v3251 = vpack.c.b16 %v2751, %v2747
    %v3252 = vpack.c.b16 %v2756, %v2752
    %v3253 = vpack.c.b16 %v2757, %v2753
    %v3254 = vpack.c.b16 %v2758, %v2754
    %v3255 = vpack.c.b16 %v2759, %v2755
    %v3256 = vpack.c.b16 %v2764, %v2760
    %v3257 = vpack.c.b16 %v2765, %v2761
    %v3258 = vpack.c.b16 %v2766, %v2762
    %v3259 = vpack.c.b16 %v2767, %v2763
    %v3260 = vpack.c.b16 %v2772, %v2768
    %v3261 = vpack.c.b16 %v2773, %v2769
    %v3262 = vpack.c.b16 %v2774, %v2770
    %v3263 = vpack.c.b16 %v2775, %v2771
    %v3264 = vpack.c.b16 %v2780, %v2776
    %v3265 = vpack.c.b16 %v2781, %v2777
    %v3266 = vpack.c.b16 %v2782, %v2778
    %v3267 = vpack.c.b16 %v2783, %v2779
    %v3268 = vpack.c.b16 %v2788, %v2784
    %v3269 = vpack.c.b16 %v2789, %v2785
    %v3270 = vpack.c.b16 %v2790, %v2786
    %v3271 = vpack.c.b16 %v2791, %v2787
    %v3272 = vpack.c.b16 %v2796, %v2792
    %v3273 = vpack.c.b16 %v2797, %v2793
    %v3274 = vpack.c.b16 %v2798, %v2794
    %v3275 = vpack.c.b16 %v2799, %v2795
    %v3276 = vpack.c.b16 %v2804, %v2800
    %v3277 = vpack.c.b16 %v2805, %v2801
    %v3278 = vpack.c.b16 %v2806, %v2802
    %v3279 = vpack.c.b16 %v2807, %v2803
    %v3280 = vpack.c.b16 %v2812, %v2808
    %v3281 = vpack.c.b16 %v2813, %v2809
    %v3282 = vpack.c.b16 %v2814, %v2810
    %v3283 = vpack.c.b16 %v2815, %v2811
    %v3284 = vpack.c.b16 %v2820, %v2816
    %v3285 = vpack.c.b16 %v2821, %v2817
    %v3286 = vpack.c.b16 %v2822, %v2818
    %v3287 = vpack.c.b16 %v2823, %v2819
    %v3288 = vpack.c.b16 %v2828, %v2824
    %v3289 = vpack.c.b16 %v2829, %v2825
    %v3290 = vpack.c.b16 %v2830, %v2826
    %v3291 = vpack.c.b16 %v2831, %v2827
    %v3292 = vpack.c.b16 %v2836, %v2832
    %v3293 = vpack.c.b16 %v2837, %v2833
    %v3294 = vpack.c.b16 %v2838, %v2834
    %v3295 = vpack.c.b16 %v2839, %v2835
    %v3296 = vpack.c.b16 %v2844, %v2840
    %v3297 = vpack.c.b16 %v2845, %v2841
    %v3298 = vpack.c.b16 %v2846, %v2842
    %v3299 = vpack.c.b16 %v2847, %v2843
    %v3300 = vpack.c.b16 %v2852, %v2848
    %v3301 = vpack.c.b16 %v2853, %v2849
    %v3302 = vpack.c.b16 %v2854, %v2850
    %v3303 = vpack.c.b16 %v2855, %v2851
    %v3304 = vpack.c.b16 %v2860, %v2856
    %v3305 = vpack.c.b16 %v2861, %v2857
    %v3306 = vpack.c.b16 %v2862, %v2858
    %v3307 = vpack.c.b16 %v2863, %v2859
    %v3308 = vpack.c.b16 %v2868, %v2864
    %v3309 = vpack.c.b16 %v2869, %v2865
    %v3310 = vpack.c.b16 %v2870, %v2866
    %v3311 = vpack.c.b16 %v2871, %v2867
    %v3312 = vpack.c.b16 %v2876, %v2872
    %v3313 = vpack.c.b16 %v2877, %v2873
    %v3314 = vpack.c.b16 %v2878, %v2874
    %v3315 = vpack.c.b16 %v2879, %v2875
    %v3316 = vpack.c.b16 %v2884, %v2880
    %v3317 = vpack.c.b16 %v2885, %v2881
    %v3318 = vpack.c.b16 %v2886, %v2882
    %v3319 = vpack.c.b16 %v2887, %v2883
    %v3320 = vpack.c.b16 %v2892, %v2888
    %v3321 = vpack.c.b16 %v2893, %v2889
    %v3322 = vpack.c.b16 %v2894, %v2890
    %v3323 = vpack.c.b16 %v2895, %v2891
    %v3324 = vpack.c.b16 %v2900, %v2896
    %v3325 = vpack.c.b16 %v2901, %v2897
    %v3326 = vpack.c.b16 %v2902, %v2898
    %v3327 = vpack.c.b16 %v2903, %v2899
    %v3328 = vpack.c.b16 %v2908, %v2904
    %v3329 = vpack.c.b16 %v2909, %v2905
    %v3330 = vpack.c.b16 %v2910, %v2906
    %v3331 = vpack.c.b16 %v2911, %v2907
    %v3332 = vpack.c.b16 %v2916, %v2912
    %v3333 = vpack.c.b16 %v2917, %v2913
    %v3334 = vpack.c.b16 %v2918, %v2914
    %v3335 = vpack.c.b16 %v2919, %v2915
    %v3336 = vpack.c.b16 %v2924, %v2920
    %v3337 = vpack.c.b16 %v2925, %v2921
    %v3338 = vpack.c.b16 %v2926, %v2922
    %v3339 = vpack.c.b16 %v2927, %v2923
    %v3340 = vpack.c.b16 %v2932, %v2928
    %v3341 = vpack.c.b16 %v2933, %v2929
    %v3342 = vpack.c.b16 %v2934, %v2930
    %v3343 = vpack.c.b16 %v2935, %v2931
    %v3344 = vpack.c.b16 %v2940, %v2936
    %v3345 = vpack.c.b16 %v2941, %v2937
    %v3346 = vpack.c.b16 %v2942, %v2938
    %v3347 = vpack.c.b16 %v2943, %v2939
    %v3348 = vpack.c.b16 %v2948, %v2944
    %v3349 = vpack.c.b16 %v2949, %v2945
    %v3350 = vpack.c.b16 %v2950, %v2946
    %v3351 = vpack.c.b16 %v2951, %v2947
    %v3352 = vpack.c.b16 %v2956, %v2952
    %v3353 = vpack.c.b16 %v2957, %v2953
    %v3354 = vpack.c.b16 %v2958, %v2954
    %v3355 = vpack.c.b16 %v2959, %v2955
    %v3356 = vpack.c.b16 %v2964, %v2960
    %v3357 = vpack.c.b16 %v2965, %v2961
    %v3358 = vpack.c.b16 %v2966, %v2962
    %v3359 = vpack.c.b16 %v2967, %v2963
    %v3360 = vpack.c.b16 %v2972, %v2968
    %v3361 = vpack.c.b16 %v2973, %v2969
    %v3362 = vpack.c.b16 %v2974, %v2970
    %v3363 = vpack.c.b16 %v2975, %v2971
    %v3364 = vpack.c.b16 %v2980, %v2976
    %v3365 = vpack.c.b16 %v2981, %v2977
    %v3366 = vpack.c.b16 %v2982, %v2978
    %v3367 = vpack.c.b16 %v2983, %v2979
    %v3368 = vpack.c.b16 %v2988, %v2984
    %v3369 = vpack.c.b16 %v2989, %v2985
    %v3370 = vpack.c.b16 %v2990, %v2986
    %v3371 = vpack.c.b16 %v2991, %v2987
    %v3372 = vpack.c.b16 %v2996, %v2992
    %v3373 = vpack.c.b16 %v2997, %v2993
    %v3374 = vpack.c.b16 %v2998, %v2994
    %v3375 = vpack.c.b16 %v2999, %v2995
    %v3376 = vpack.c.b16 %v3004, %v3000
    %v3377 = vpack.c.b16 %v3005, %v3001
    %v3378 = vpack.c.b16 %v3006, %v3002
    %v3379 = vpack.c.b16 %v3007, %v3003
    %v3380 = vpack.c.b16 %v3012, %v3008
    %v3381 = vpack.c.b16 %v3013, %v3009
    %v3382 = vpack.c.b16 %v3014, %v3010
    %v3383 = vpack.c.b16 %v3015, %v3011
    %v3384 = vpack.c.b16 %v3020, %v3016
    %v3385 = vpack.c.b16 %v3021, %v3017
    %v3386 = vpack.c.b16 %v3022, %v3018
    %v3387 = vpack.c.b16 %v3023, %v3019
    %v3388 = vpack.c.b16 %v3028, %v3024
    %v3389 = vpack.c.b16 %v3029, %v3025
    %v3390 = vpack.c.b16 %v3030, %v3026
    %v3391 = vpack.c.b16 %v3031, %v3027
    %v3392 = vpack.c.b16 %v3036, %v3032
    %v3393 = vpack.c.b16 %v3037, %v3033
    %v3394 = vpack.c.b16 %v3038, %v3034
    %v3395 = vpack.c.b16 %v3039, %v3035
    %v3396 = vpack.c.b16 %v3044, %v3040
    %v3397 = vpack.c.b16 %v3045, %v3041
    %v3398 = vpack.c.b16 %v3046, %v3042
    %v3399 = vpack.c.b16 %v3047, %v3043
    %v3400 = vpack.c.b16 %v3052, %v3048
    %v3401 = vpack.c.b16 %v3053, %v3049
    %v3402 = vpack.c.b16 %v3054, %v3050
    %v3403 = vpack.c.b16 %v3055, %v3051
    %v3404 = vpack.c.b16 %v3060, %v3056
    %v3405 = vpack.c.b16 %v3061, %v3057
    %v3406 = vpack.c.b16 %v3062, %v3058
    %v3407 = vpack.c.b16 %v3063, %v3059
    %v3408 = vpack.c.b16 %v3068, %v3064
    %v3409 = vpack.c.b16 %v3069, %v3065
    %v3410 = vpack.c.b16 %v3070, %v3066
    %v3411 = vpack.c.b16 %v3071, %v3067
    %v3412 = vpack.c.b16 %v3076, %v3072
    %v3413 = vpack.c.b16 %v3077, %v3073
    %v3414 = vpack.c.b16 %v3078, %v3074
    %v3415 = vpack.c.b16 %v3079, %v3075
    %v3416 = vpack.c.b16 %v3084, %v3080
    %v3417 = vpack.c.b16 %v3085, %v3081
    %v3418 = vpack.c.b16 %v3086, %v3082
    %v3419 = vpack.c.b16 %v3087, %v3083
    %v3420 = vpack.c.b16 %v3092, %v3088
    %v3421 = vpack.c.b16 %v3093, %v3089
    %v3422 = vpack.c.b16 %v3094, %v3090
    %v3423 = vpack.c.b16 %v3095, %v3091
    %v3424 = vpack.c.b16 %v3100, %v3096
    %v3425 = vpack.c.b16 %v3101, %v3097
    %v3426 = vpack.c.b16 %v3102, %v3098
    %v3427 = vpack.c.b16 %v3103, %v3099
    %v3428 = vpack.c.b16 %v3108, %v3104
    %v3429 = vpack.c.b16 %v3109, %v3105
    %v3430 = vpack.c.b16 %v3110, %v3106
    %v3431 = vpack.c.b16 %v3111, %v3107
    %v3432 = vpack.c.b16 %v3116, %v3112
    %v3433 = vpack.c.b16 %v3117, %v3113
    %v3434 = vpack.c.b16 %v3118, %v3114
    %v3435 = vpack.c.b16 %v3119, %v3115
    %v3436 = vpack.c.b16 %v3124, %v3120
    %v3437 = vpack.c.b16 %v3125, %v3121
    %v3438 = vpack.c.b16 %v3126, %v3122
    %v3439 = vpack.c.b16 %v3127, %v3123
    %v3440 = vpack.c.b16 %v3132, %v3128
    %v3441 = vpack.c.b16 %v3133, %v3129
    %v3442 = vpack.c.b16 %v3134, %v3130
    %v3443 = vpack.c.b16 %v3135, %v3131
    %v3444 = vpack.c.b16 %v3140, %v3136
    %v3445 = vpack.c.b16 %v3141, %v3137
    %v3446 = vpack.c.b16 %v3142, %v3138
    %v3447 = vpack.c.b16 %v3143, %v3139
    %v3448 = vpack.c.b16 %v3148, %v3144
    %v3449 = vpack.c.b16 %v3149, %v3145
    %v3450 = vpack.c.b16 %v3150, %v3146
    %v3451 = vpack.c.b16 %v3151, %v3147
    %v3452 = vpack.c.b16 %v3156, %v3152
    %v3453 = vpack.c.b16 %v3157, %v3153
    %v3454 = vpack.c.b16 %v3158, %v3154
    %v3455 = vpack.c.b16 %v3159, %v3155
    %v3456 = vpack.c.b16 %v3164, %v3160
    %v3457 = vpack.c.b16 %v3165, %v3161
    %v3458 = vpack.c.b16 %v3166, %v3162
    %v3459 = vpack.c.b16 %v3167, %v3163
    %v3460 = vpack.c.b16 %v3172, %v3168
    %v3461 = vpack.c.b16 %v3173, %v3169
    %v3462 = vpack.c.b16 %v3174, %v3170
    %v3463 = vpack.c.b16 %v3175, %v3171
    %v3464 = vpack.c.b16 %v3180, %v3176
    %v3465 = vpack.c.b16 %v3181, %v3177
    %v3466 = vpack.c.b16 %v3182, %v3178
    %v3467 = vpack.c.b16 %v3183, %v3179
    %v3468 = vpack.c.b16 %v3188, %v3184
    %v3469 = vpack.c.b16 %v3189, %v3185
    %v3470 = vpack.c.b16 %v3190, %v3186
    %v3471 = vpack.c.b16 %v3191, %v3187
    %v3472 = vpack.c.b16 %v3196, %v3192
    %v3473 = vpack.c.b16 %v3197, %v3193
    %v3474 = vpack.c.b16 %v3198, %v3194
    %v3475 = vpack.c.b16 %v3199, %v3195
    %v3476 = vpack.c.b16 %v3204, %v3200
    %v3477 = vpack.c.b16 %v3205, %v3201
    %v3478 = vpack.c.b16 %v3206, %v3202
    %v3479 = vpack.c.b16 %v3207, %v3203
    %v3480 = vpack.c.b16 %v3212, %v3208
    %v3481 = vpack.c.b16 %v3213, %v3209
    %v3482 = vpack.c.b16 %v3214, %v3210
    %v3483 = vpack.c.b16 %v3215, %v3211
    %v3484 = vpack.c.b16 %v3220, %v3216
    %v3485 = vpack.c.b16 %v3221, %v3217
    %v3486 = vpack.c.b16 %v3222, %v3218
    %v3487 = vpack.c.b16 %v3223, %v3219
    %v3488 = vpack.c.b16 %v3228, %v3224
    %v3489 = vpack.c.b16 %v3229, %v3225
    %v3490 = vpack.c.b16 %v3230, %v3226
    %v3491 = vpack.c.b16 %v3231, %v3227
    %v3492 = vpack.c.b16 %v3236, %v3232
    %v3493 = vpack.c.b16 %v3237, %v3233
    %v3494 = vpack.c.b16 %v3238, %v3234
    %v3495 = vpack.c.b16 %v3239, %v3235
    %3752 = vmatpush.bf16.msra.mxu0 %v3268
    %3753 = vmatpush.bf16.msra.mxu0 %v3264
    %3754 = vmatpush.bf16.msra.mxu0 %v3260
    %3755 = vmatpush.bf16.msra.mxu0 %v3256
    %3756 = vmatpush.bf16.msra.mxu0 %v3252
    %3757 = vmatpush.bf16.msra.mxu0 %v3248
    %3758 = vmatpush.bf16.msra.mxu0 %v3244
    %3759 = vmatpush.bf16.msra.mxu0 %v3240
    %3760 = vmatmul.bf16.gmra.mxu0 %v2198
    %v3761 = vpop.f32.mrf.mxu0
    %v3762 = vadd.f32 %v2464, %v3761
    %v3763 = vpop.f32.mrf.mxu0
    %3764 = vdwg.mxu0
    %3765 = vmatpush.bf16.msra.mxu0 %v3300
    %3766 = vmatpush.bf16.msra.mxu0 %v3296
    %3767 = vmatpush.bf16.msra.mxu0 %v3292
    %3768 = vmatpush.bf16.msra.mxu0 %v3288
    %3769 = vmatpush.bf16.msra.mxu0 %v3284
    %3770 = vmatpush.bf16.msra.mxu0 %v3280
    %3771 = vmatpush.bf16.msra.mxu0 %v3276
    %3772 = vmatpush.bf16.msra.mxu0 %v3272
    %3773 = vmatmul.bf16.gmra.mxu0 %v2199
    %v3774 = vpop.f32.mrf.mxu0
    %v3775 = vadd.f32 %v3762, %v3774
    %v3776 = vpop.f32.mrf.mxu0
    %3777 = vdwg.mxu0
    %3778 = vmatpush.bf16.msra.mxu0 %v3332
    %3779 = vmatpush.bf16.msra.mxu0 %v3328
    %3780 = vmatpush.bf16.msra.mxu0 %v3324
    %3781 = vmatpush.bf16.msra.mxu0 %v3320
    %3782 = vmatpush.bf16.msra.mxu0 %v3316
    %3783 = vmatpush.bf16.msra.mxu0 %v3312
    %3784 = vmatpush.bf16.msra.mxu0 %v3308
    %3785 = vmatpush.bf16.msra.mxu0 %v3304
    %3786 = vmatmul.bf16.gmra.mxu0 %v2200
    %v3787 = vpop.f32.mrf.mxu0
    %v3788 = vadd.f32 %v3775, %v3787
    %v3789 = vpop.f32.mrf.mxu0
    %3790 = vdwg.mxu0
    %3791 = vmatpush.bf16.msra.mxu0 %v3364
    %3792 = vmatpush.bf16.msra.mxu0 %v3360
    %3793 = vmatpush.bf16.msra.mxu0 %v3356
    %3794 = vmatpush.bf16.msra.mxu0 %v3352
    %3795 = vmatpush.bf16.msra.mxu0 %v3348
    %3796 = vmatpush.bf16.msra.mxu0 %v3344
    %3797 = vmatpush.bf16.msra.mxu0 %v3340
    %3798 = vmatpush.bf16.msra.mxu0 %v3336
    %3799 = vmatmul.bf16.gmra.mxu0 %v2201
    %v3800 = vpop.f32.mrf.mxu0
    %v3801 = vadd.f32 %v3788, %v3800
    %v3802 = vpop.f32.mrf.mxu0
    %3803 = vdwg.mxu0
    %3804 = vmatpush.bf16.msra.mxu0 %v3396
    %3805 = vmatpush.bf16.msra.mxu0 %v3392
    %3806 = vmatpush.bf16.msra.mxu0 %v3388
    %3807 = vmatpush.bf16.msra.mxu0 %v3384
    %3808 = vmatpush.bf16.msra.mxu0 %v3380
    %3809 = vmatpush.bf16.msra.mxu0 %v3376
    %3810 = vmatpush.bf16.msra.mxu0 %v3372
    %3811 = vmatpush.bf16.msra.mxu0 %v3368
    %3812 = vmatmul.bf16.gmra.mxu0 %v2202
    %v3813 = vpop.f32.mrf.mxu0
    %v3814 = vadd.f32 %v3801, %v3813
    %v3815 = vpop.f32.mrf.mxu0
    %3816 = vdwg.mxu0
    %3817 = vmatpush.bf16.msra.mxu0 %v3428
    %3818 = vmatpush.bf16.msra.mxu0 %v3424
    %3819 = vmatpush.bf16.msra.mxu0 %v3420
    %3820 = vmatpush.bf16.msra.mxu0 %v3416
    %3821 = vmatpush.bf16.msra.mxu0 %v3412
    %3822 = vmatpush.bf16.msra.mxu0 %v3408
    %3823 = vmatpush.bf16.msra.mxu0 %v3404
    %3824 = vmatpush.bf16.msra.mxu0 %v3400
    %3825 = vmatmul.bf16.gmra.mxu0 %v2203
    %v3826 = vpop.f32.mrf.mxu0
    %v3827 = vadd.f32 %v3814, %v3826
    %v3828 = vpop.f32.mrf.mxu0
    %3829 = vdwg.mxu0
    %3830 = vmatpush.bf16.msra.mxu0 %v3460
    %3831 = vmatpush.bf16.msra.mxu0 %v3456
    %3832 = vmatpush.bf16.msra.mxu0 %v3452
    %3833 = vmatpush.bf16.msra.mxu0 %v3448
    %3834 = vmatpush.bf16.msra.mxu0 %v3444
    %3835 = vmatpush.bf16.msra.mxu0 %v3440
    %3836 = vmatpush.bf16.msra.mxu0 %v3436
    %3837 = vmatpush.bf16.msra.mxu0 %v3432
    %3838 = vmatmul.bf16.gmra.mxu0 %v2204
    %v3839 = vpop.f32.mrf.mxu0
    %v3840 = vadd.f32 %v3827, %v3839
    %v3841 = vpop.f32.mrf.mxu0
    %3842 = vdwg.mxu0
    %3843 = vmatpush.bf16.msra.mxu0 %v3492
    %3844 = vmatpush.bf16.msra.mxu0 %v3488
    %3845 = vmatpush.bf16.msra.mxu0 %v3484
    %3846 = vmatpush.bf16.msra.mxu0 %v3480
    %3847 = vmatpush.bf16.msra.mxu0 %v3476
    %3848 = vmatpush.bf16.msra.mxu0 %v3472
    %3849 = vmatpush.bf16.msra.mxu0 %v3468
    %3850 = vmatpush.bf16.msra.mxu0 %v3464
    %3851 = vmatmul.bf16.gmra.mxu0 %v2205
    %v3852 = vpop.f32.mrf.mxu0
    %v3853 = vadd.f32 %v3840, %v3852
    %v3854 = vpop.f32.mrf.mxu0
    %3855 = vdwg.mxu0
    %3856 = vmatpush.bf16.msra.mxu0 %v3269
    %3857 = vmatpush.bf16.msra.mxu0 %v3265
    %3858 = vmatpush.bf16.msra.mxu0 %v3261
    %3859 = vmatpush.bf16.msra.mxu0 %v3257
    %3860 = vmatpush.bf16.msra.mxu0 %v3253
    %3861 = vmatpush.bf16.msra.mxu0 %v3249
    %3862 = vmatpush.bf16.msra.mxu0 %v3245
    %3863 = vmatpush.bf16.msra.mxu0 %v3241
    %3864 = vmatmul.bf16.gmra.mxu0 %v2198
    %v3865 = vpop.f32.mrf.mxu0
    %v3866 = vadd.f32 %v2465, %v3865
    %v3867 = vpop.f32.mrf.mxu0
    %3868 = vdwg.mxu0
    %3869 = vmatpush.bf16.msra.mxu0 %v3301
    %3870 = vmatpush.bf16.msra.mxu0 %v3297
    %3871 = vmatpush.bf16.msra.mxu0 %v3293
    %3872 = vmatpush.bf16.msra.mxu0 %v3289
    %3873 = vmatpush.bf16.msra.mxu0 %v3285
    %3874 = vmatpush.bf16.msra.mxu0 %v3281
    %3875 = vmatpush.bf16.msra.mxu0 %v3277
    %3876 = vmatpush.bf16.msra.mxu0 %v3273
    %3877 = vmatmul.bf16.gmra.mxu0 %v2199
    %v3878 = vpop.f32.mrf.mxu0
    %v3879 = vadd.f32 %v3866, %v3878
    %v3880 = vpop.f32.mrf.mxu0
    %3881 = vdwg.mxu0
    %3882 = vmatpush.bf16.msra.mxu0 %v3333
    %3883 = vmatpush.bf16.msra.mxu0 %v3329
    %3884 = vmatpush.bf16.msra.mxu0 %v3325
    %3885 = vmatpush.bf16.msra.mxu0 %v3321
    %3886 = vmatpush.bf16.msra.mxu0 %v3317
    %3887 = vmatpush.bf16.msra.mxu0 %v3313
    %3888 = vmatpush.bf16.msra.mxu0 %v3309
    %3889 = vmatpush.bf16.msra.mxu0 %v3305
    %3890 = vmatmul.bf16.gmra.mxu0 %v2200
    %v3891 = vpop.f32.mrf.mxu0
    %v3892 = vadd.f32 %v3879, %v3891
    %v3893 = vpop.f32.mrf.mxu0
    %3894 = vdwg.mxu0
    %3895 = vmatpush.bf16.msra.mxu0 %v3365
    %3896 = vmatpush.bf16.msra.mxu0 %v3361
    %3897 = vmatpush.bf16.msra.mxu0 %v3357
    %3898 = vmatpush.bf16.msra.mxu0 %v3353
    %3899 = vmatpush.bf16.msra.mxu0 %v3349
    %3900 = vmatpush.bf16.msra.mxu0 %v3345
    %3901 = vmatpush.bf16.msra.mxu0 %v3341
    %3902 = vmatpush.bf16.msra.mxu0 %v3337
    %3903 = vmatmul.bf16.gmra.mxu0 %v2201
    %v3904 = vpop.f32.mrf.mxu0
    %v3905 = vadd.f32 %v3892, %v3904
    %v3906 = vpop.f32.mrf.mxu0
    %3907 = vdwg.mxu0
    %3908 = vmatpush.bf16.msra.mxu0 %v3397
    %3909 = vmatpush.bf16.msra.mxu0 %v3393
    %3910 = vmatpush.bf16.msra.mxu0 %v3389
    %3911 = vmatpush.bf16.msra.mxu0 %v3385
    %3912 = vmatpush.bf16.msra.mxu0 %v3381
    %3913 = vmatpush.bf16.msra.mxu0 %v3377
    %3914 = vmatpush.bf16.msra.mxu0 %v3373
    %3915 = vmatpush.bf16.msra.mxu0 %v3369
    %3916 = vmatmul.bf16.gmra.mxu0 %v2202
    %v3917 = vpop.f32.mrf.mxu0
    %v3918 = vadd.f32 %v3905, %v3917
    %v3919 = vpop.f32.mrf.mxu0
    %3920 = vdwg.mxu0
    %3921 = vmatpush.bf16.msra.mxu0 %v3429
    %3922 = vmatpush.bf16.msra.mxu0 %v3425
    %3923 = vmatpush.bf16.msra.mxu0 %v3421
    %3924 = vmatpush.bf16.msra.mxu0 %v3417
    %3925 = vmatpush.bf16.msra.mxu0 %v3413
    %3926 = vmatpush.bf16.msra.mxu0 %v3409
    %3927 = vmatpush.bf16.msra.mxu0 %v3405
    %3928 = vmatpush.bf16.msra.mxu0 %v3401
    %3929 = vmatmul.bf16.gmra.mxu0 %v2203
    %v3930 = vpop.f32.mrf.mxu0
    %v3931 = vadd.f32 %v3918, %v3930
    %v3932 = vpop.f32.mrf.mxu0
    %3933 = vdwg.mxu0
    %3934 = vmatpush.bf16.msra.mxu0 %v3461
    %3935 = vmatpush.bf16.msra.mxu0 %v3457
    %3936 = vmatpush.bf16.msra.mxu0 %v3453
    %3937 = vmatpush.bf16.msra.mxu0 %v3449
    %3938 = vmatpush.bf16.msra.mxu0 %v3445
    %3939 = vmatpush.bf16.msra.mxu0 %v3441
    %3940 = vmatpush.bf16.msra.mxu0 %v3437
    %3941 = vmatpush.bf16.msra.mxu0 %v3433
    %3942 = vmatmul.bf16.gmra.mxu0 %v2204
    %v3943 = vpop.f32.mrf.mxu0
    %v3944 = vadd.f32 %v3931, %v3943
    %v3945 = vpop.f32.mrf.mxu0
    %3946 = vdwg.mxu0
    %3947 = vmatpush.bf16.msra.mxu0 %v3493
    %3948 = vmatpush.bf16.msra.mxu0 %v3489
    %3949 = vmatpush.bf16.msra.mxu0 %v3485
    %3950 = vmatpush.bf16.msra.mxu0 %v3481
    %3951 = vmatpush.bf16.msra.mxu0 %v3477
    %3952 = vmatpush.bf16.msra.mxu0 %v3473
    %3953 = vmatpush.bf16.msra.mxu0 %v3469
    %3954 = vmatpush.bf16.msra.mxu0 %v3465
    %3955 = vmatmul.bf16.gmra.mxu0 %v2205
    %v3956 = vpop.f32.mrf.mxu0
    %v3957 = vadd.f32 %v3944, %v3956
    %v3958 = vpop.f32.mrf.mxu0
    %3959 = vdwg.mxu0
    %3960 = vmatpush.bf16.msra.mxu0 %v3270
    %3961 = vmatpush.bf16.msra.mxu0 %v3266
    %3962 = vmatpush.bf16.msra.mxu0 %v3262
    %3963 = vmatpush.bf16.msra.mxu0 %v3258
    %3964 = vmatpush.bf16.msra.mxu0 %v3254
    %3965 = vmatpush.bf16.msra.mxu0 %v3250
    %3966 = vmatpush.bf16.msra.mxu0 %v3246
    %3967 = vmatpush.bf16.msra.mxu0 %v3242
    %3968 = vmatmul.bf16.gmra.mxu0 %v2198
    %v3969 = vpop.f32.mrf.mxu0
    %v3970 = vadd.f32 %v2466, %v3969
    %v3971 = vpop.f32.mrf.mxu0
    %3972 = vdwg.mxu0
    %3973 = vmatpush.bf16.msra.mxu0 %v3302
    %3974 = vmatpush.bf16.msra.mxu0 %v3298
    %3975 = vmatpush.bf16.msra.mxu0 %v3294
    %3976 = vmatpush.bf16.msra.mxu0 %v3290
    %3977 = vmatpush.bf16.msra.mxu0 %v3286
    %3978 = vmatpush.bf16.msra.mxu0 %v3282
    %3979 = vmatpush.bf16.msra.mxu0 %v3278
    %3980 = vmatpush.bf16.msra.mxu0 %v3274
    %3981 = vmatmul.bf16.gmra.mxu0 %v2199
    %v3982 = vpop.f32.mrf.mxu0
    %v3983 = vadd.f32 %v3970, %v3982
    %v3984 = vpop.f32.mrf.mxu0
    %3985 = vdwg.mxu0
    %3986 = vmatpush.bf16.msra.mxu0 %v3334
    %3987 = vmatpush.bf16.msra.mxu0 %v3330
    %3988 = vmatpush.bf16.msra.mxu0 %v3326
    %3989 = vmatpush.bf16.msra.mxu0 %v3322
    %3990 = vmatpush.bf16.msra.mxu0 %v3318
    %3991 = vmatpush.bf16.msra.mxu0 %v3314
    %3992 = vmatpush.bf16.msra.mxu0 %v3310
    %3993 = vmatpush.bf16.msra.mxu0 %v3306
    %3994 = vmatmul.bf16.gmra.mxu0 %v2200
    %v3995 = vpop.f32.mrf.mxu0
    %v3996 = vadd.f32 %v3983, %v3995
    %v3997 = vpop.f32.mrf.mxu0
    %3998 = vdwg.mxu0
    %3999 = vmatpush.bf16.msra.mxu0 %v3366
    %4000 = vmatpush.bf16.msra.mxu0 %v3362
    %4001 = vmatpush.bf16.msra.mxu0 %v3358
    %4002 = vmatpush.bf16.msra.mxu0 %v3354
    %4003 = vmatpush.bf16.msra.mxu0 %v3350
    %4004 = vmatpush.bf16.msra.mxu0 %v3346
    %4005 = vmatpush.bf16.msra.mxu0 %v3342
    %4006 = vmatpush.bf16.msra.mxu0 %v3338
    %4007 = vmatmul.bf16.gmra.mxu0 %v2201
    %v4008 = vpop.f32.mrf.mxu0
    %v4009 = vadd.f32 %v3996, %v4008
    %v4010 = vpop.f32.mrf.mxu0
    %4011 = vdwg.mxu0
    %4012 = vmatpush.bf16.msra.mxu0 %v3398
    %4013 = vmatpush.bf16.msra.mxu0 %v3394
    %4014 = vmatpush.bf16.msra.mxu0 %v3390
    %4015 = vmatpush.bf16.msra.mxu0 %v3386
    %4016 = vmatpush.bf16.msra.mxu0 %v3382
    %4017 = vmatpush.bf16.msra.mxu0 %v3378
    %4018 = vmatpush.bf16.msra.mxu0 %v3374
    %4019 = vmatpush.bf16.msra.mxu0 %v3370
    %4020 = vmatmul.bf16.gmra.mxu0 %v2202
    %v4021 = vpop.f32.mrf.mxu0
    %v4022 = vadd.f32 %v4009, %v4021
    %v4023 = vpop.f32.mrf.mxu0
    %4024 = vdwg.mxu0
    %4025 = vmatpush.bf16.msra.mxu0 %v3430
    %4026 = vmatpush.bf16.msra.mxu0 %v3426
    %4027 = vmatpush.bf16.msra.mxu0 %v3422
    %4028 = vmatpush.bf16.msra.mxu0 %v3418
    %4029 = vmatpush.bf16.msra.mxu0 %v3414
    %4030 = vmatpush.bf16.msra.mxu0 %v3410
    %4031 = vmatpush.bf16.msra.mxu0 %v3406
    %4032 = vmatpush.bf16.msra.mxu0 %v3402
    %4033 = vmatmul.bf16.gmra.mxu0 %v2203
    %v4034 = vpop.f32.mrf.mxu0
    %v4035 = vadd.f32 %v4022, %v4034
    %v4036 = vpop.f32.mrf.mxu0
    %4037 = vdwg.mxu0
    %4038 = vmatpush.bf16.msra.mxu0 %v3462
    %4039 = vmatpush.bf16.msra.mxu0 %v3458
    %4040 = vmatpush.bf16.msra.mxu0 %v3454
    %4041 = vmatpush.bf16.msra.mxu0 %v3450
    %4042 = vmatpush.bf16.msra.mxu0 %v3446
    %4043 = vmatpush.bf16.msra.mxu0 %v3442
    %4044 = vmatpush.bf16.msra.mxu0 %v3438
    %4045 = vmatpush.bf16.msra.mxu0 %v3434
    %4046 = vmatmul.bf16.gmra.mxu0 %v2204
    %v4047 = vpop.f32.mrf.mxu0
    %v4048 = vadd.f32 %v4035, %v4047
    %v4049 = vpop.f32.mrf.mxu0
    %4050 = vdwg.mxu0
    %4051 = vmatpush.bf16.msra.mxu0 %v3494
    %4052 = vmatpush.bf16.msra.mxu0 %v3490
    %4053 = vmatpush.bf16.msra.mxu0 %v3486
    %4054 = vmatpush.bf16.msra.mxu0 %v3482
    %4055 = vmatpush.bf16.msra.mxu0 %v3478
    %4056 = vmatpush.bf16.msra.mxu0 %v3474
    %4057 = vmatpush.bf16.msra.mxu0 %v3470
    %4058 = vmatpush.bf16.msra.mxu0 %v3466
    %4059 = vmatmul.bf16.gmra.mxu0 %v2205
    %v4060 = vpop.f32.mrf.mxu0
    %v4061 = vadd.f32 %v4048, %v4060
    %v4062 = vpop.f32.mrf.mxu0
    %4063 = vdwg.mxu0
    %4064 = vmatpush.bf16.msra.mxu0 %v3271
    %4065 = vmatpush.bf16.msra.mxu0 %v3267
    %4066 = vmatpush.bf16.msra.mxu0 %v3263
    %4067 = vmatpush.bf16.msra.mxu0 %v3259
    %4068 = vmatpush.bf16.msra.mxu0 %v3255
    %4069 = vmatpush.bf16.msra.mxu0 %v3251
    %4070 = vmatpush.bf16.msra.mxu0 %v3247
    %4071 = vmatpush.bf16.msra.mxu0 %v3243
    %4072 = vmatmul.bf16.gmra.mxu0 %v2198
    %v4073 = vpop.f32.mrf.mxu0
    %v4074 = vadd.f32 %v2467, %v4073
    %v4075 = vpop.f32.mrf.mxu0
    %4076 = vdwg.mxu0
    %4077 = vmatpush.bf16.msra.mxu0 %v3303
    %4078 = vmatpush.bf16.msra.mxu0 %v3299
    %4079 = vmatpush.bf16.msra.mxu0 %v3295
    %4080 = vmatpush.bf16.msra.mxu0 %v3291
    %4081 = vmatpush.bf16.msra.mxu0 %v3287
    %4082 = vmatpush.bf16.msra.mxu0 %v3283
    %4083 = vmatpush.bf16.msra.mxu0 %v3279
    %4084 = vmatpush.bf16.msra.mxu0 %v3275
    %4085 = vmatmul.bf16.gmra.mxu0 %v2199
    %v4086 = vpop.f32.mrf.mxu0
    %v4087 = vadd.f32 %v4074, %v4086
    %v4088 = vpop.f32.mrf.mxu0
    %4089 = vdwg.mxu0
    %4090 = vmatpush.bf16.msra.mxu0 %v3335
    %4091 = vmatpush.bf16.msra.mxu0 %v3331
    %4092 = vmatpush.bf16.msra.mxu0 %v3327
    %4093 = vmatpush.bf16.msra.mxu0 %v3323
    %4094 = vmatpush.bf16.msra.mxu0 %v3319
    %4095 = vmatpush.bf16.msra.mxu0 %v3315
    %4096 = vmatpush.bf16.msra.mxu0 %v3311
    %4097 = vmatpush.bf16.msra.mxu0 %v3307
    %4098 = vmatmul.bf16.gmra.mxu0 %v2200
    %v4099 = vpop.f32.mrf.mxu0
    %v4100 = vadd.f32 %v4087, %v4099
    %v4101 = vpop.f32.mrf.mxu0
    %4102 = vdwg.mxu0
    %4103 = vmatpush.bf16.msra.mxu0 %v3367
    %4104 = vmatpush.bf16.msra.mxu0 %v3363
    %4105 = vmatpush.bf16.msra.mxu0 %v3359
    %4106 = vmatpush.bf16.msra.mxu0 %v3355
    %4107 = vmatpush.bf16.msra.mxu0 %v3351
    %4108 = vmatpush.bf16.msra.mxu0 %v3347
    %4109 = vmatpush.bf16.msra.mxu0 %v3343
    %4110 = vmatpush.bf16.msra.mxu0 %v3339
    %4111 = vmatmul.bf16.gmra.mxu0 %v2201
    %v4112 = vpop.f32.mrf.mxu0
    %v4113 = vadd.f32 %v4100, %v4112
    %v4114 = vpop.f32.mrf.mxu0
    %4115 = vdwg.mxu0
    %4116 = vmatpush.bf16.msra.mxu0 %v3399
    %4117 = vmatpush.bf16.msra.mxu0 %v3395
    %4118 = vmatpush.bf16.msra.mxu0 %v3391
    %4119 = vmatpush.bf16.msra.mxu0 %v3387
    %4120 = vmatpush.bf16.msra.mxu0 %v3383
    %4121 = vmatpush.bf16.msra.mxu0 %v3379
    %4122 = vmatpush.bf16.msra.mxu0 %v3375
    %4123 = vmatpush.bf16.msra.mxu0 %v3371
    %4124 = vmatmul.bf16.gmra.mxu0 %v2202
    %v4125 = vpop.f32.mrf.mxu0
    %v4126 = vadd.f32 %v4113, %v4125
    %v4127 = vpop.f32.mrf.mxu0
    %4128 = vdwg.mxu0
    %4129 = vmatpush.bf16.msra.mxu0 %v3431
    %4130 = vmatpush.bf16.msra.mxu0 %v3427
    %4131 = vmatpush.bf16.msra.mxu0 %v3423
    %4132 = vmatpush.bf16.msra.mxu0 %v3419
    %4133 = vmatpush.bf16.msra.mxu0 %v3415
    %4134 = vmatpush.bf16.msra.mxu0 %v3411
    %4135 = vmatpush.bf16.msra.mxu0 %v3407
    %4136 = vmatpush.bf16.msra.mxu0 %v3403
    %4137 = vmatmul.bf16.gmra.mxu0 %v2203
    %v4138 = vpop.f32.mrf.mxu0
    %v4139 = vadd.f32 %v4126, %v4138
    %v4140 = vpop.f32.mrf.mxu0
    %4141 = vdwg.mxu0
    %4142 = vmatpush.bf16.msra.mxu0 %v3463
    %4143 = vmatpush.bf16.msra.mxu0 %v3459
    %4144 = vmatpush.bf16.msra.mxu0 %v3455
    %4145 = vmatpush.bf16.msra.mxu0 %v3451
    %4146 = vmatpush.bf16.msra.mxu0 %v3447
    %4147 = vmatpush.bf16.msra.mxu0 %v3443
    %4148 = vmatpush.bf16.msra.mxu0 %v3439
    %4149 = vmatpush.bf16.msra.mxu0 %v3435
    %4150 = vmatmul.bf16.gmra.mxu0 %v2204
    %v4151 = vpop.f32.mrf.mxu0
    %v4152 = vadd.f32 %v4139, %v4151
    %v4153 = vpop.f32.mrf.mxu0
    %4154 = vdwg.mxu0
    %4155 = vmatpush.bf16.msra.mxu0 %v3495
    %4156 = vmatpush.bf16.msra.mxu0 %v3491
    %4157 = vmatpush.bf16.msra.mxu0 %v3487
    %4158 = vmatpush.bf16.msra.mxu0 %v3483
    %4159 = vmatpush.bf16.msra.mxu0 %v3479
    %4160 = vmatpush.bf16.msra.mxu0 %v3475
    %4161 = vmatpush.bf16.msra.mxu0 %v3471
    %4162 = vmatpush.bf16.msra.mxu0 %v3467
    %4163 = vmatmul.bf16.gmra.mxu0 %v2205
    %v4164 = vpop.f32.mrf.mxu0
    %v4165 = vadd.f32 %v4152, %v4164
    %v4166 = vpop.f32.mrf.mxu0
    %4167 = vdwg.mxu0
    %v4168 = vmax.f32 %v3853, 0.0
    %v4169 = vmax.f32 %v3957, 0.0
    %v4170 = vmax.f32 %v4061, 0.0
    %v4171 = vmax.f32 %v4165, 0.0
    %v4172 = vpack.c.bf16 %v4168, %v4168
    %v4173 = vpack.c.bf16 %v4169, %v4169
    %v4174 = vpack.c.bf16 %v4170, %v4170
    %v4175 = vpack.c.bf16 %v4171, %v4171
    %v4176 = vld [vmem:[#allocation7] sm:$0xf]
    %v4177 = vld [vmem:[#allocation7 + $0x4] sm:$0xf]
    %v4178 = vld [vmem:[#allocation7 + $0x8] sm:$0xf]
    %v4179 = vld [vmem:[#allocation7 + $0xc] sm:$0xf]
    %v4180 = vld [vmem:[#allocation7 + $0x10] sm:$0xf]
    %v4181 = vld [vmem:[#allocation7 + $0x14] sm:$0xf]
    %v4182 = vld [vmem:[#allocation7 + $0x18] sm:$0xf]
    %v4183 = vld [vmem:[#allocation7 + $0x1c] sm:$0xf]
    %v4184 = vld [vmem:[#allocation7 + $0x20] sm:$0xf]
    %v4185 = vld [vmem:[#allocation7 + $0x24] sm:$0xf]
    %v4186 = vld [vmem:[#allocation7 + $0x28] sm:$0xf]
    %v4187 = vld [vmem:[#allocation7 + $0x2c] sm:$0xf]
    %v4188 = vld [vmem:[#allocation7 + $0x30] sm:$0xf]
    %v4189 = vld [vmem:[#allocation7 + $0x34] sm:$0xf]
    %v4190 = vld [vmem:[#allocation7 + $0x38] sm:$0xf]
    %v4191 = vld [vmem:[#allocation7 + $0x3c] sm:$0xf]
    %v4192 = vld [vmem:[#allocation7 + $0x40] sm:$0xf]
    %v4193 = vld [vmem:[#allocation7 + $0x44] sm:$0xf]
    %v4194 = vld [vmem:[#allocation7 + $0x48] sm:$0xf]
    %v4195 = vld [vmem:[#allocation7 + $0x4c] sm:$0xf]
    %v4196 = vld [vmem:[#allocation7 + $0x50] sm:$0xf]
    %v4197 = vld [vmem:[#allocation7 + $0x54] sm:$0xf]
    %v4198 = vld [vmem:[#allocation7 + $0x58] sm:$0xf]
    %v4199 = vld [vmem:[#allocation7 + $0x5c] sm:$0xf]
    %v4200 = vld [vmem:[#allocation7 + $0x60] sm:$0xf]
    %v4201 = vld [vmem:[#allocation7 + $0x64] sm:$0xf]
    %v4202 = vld [vmem:[#allocation7 + $0x68] sm:$0xf]
    %v4203 = vld [vmem:[#allocation7 + $0x6c] sm:$0xf]
    %v4204 = vld [vmem:[#allocation7 + $0x70] sm:$0xf]
    %v4205 = vld [vmem:[#allocation7 + $0x74] sm:$0xf]
    %v4206 = vld [vmem:[#allocation7 + $0x78] sm:$0xf]
    %v4207 = vld [vmem:[#allocation7 + $0x7c] sm:$0xf]
    %v4208 = vld [vmem:[#allocation7 + $0x80] sm:$0xf]
    %v4209 = vld [vmem:[#allocation7 + $0x84] sm:$0xf]
    %v4210 = vld [vmem:[#allocation7 + $0x88] sm:$0xf]
    %v4211 = vld [vmem:[#allocation7 + $0x8c] sm:$0xf]
    %v4212 = vld [vmem:[#allocation7 + $0x90] sm:$0xf]
    %v4213 = vld [vmem:[#allocation7 + $0x94] sm:$0xf]
    %v4214 = vld [vmem:[#allocation7 + $0x98] sm:$0xf]
    %v4215 = vld [vmem:[#allocation7 + $0x9c] sm:$0xf]
    %v4216 = vld [vmem:[#allocation7 + $0xa0] sm:$0xf]
    %v4217 = vld [vmem:[#allocation7 + $0xa4] sm:$0xf]
    %v4218 = vld [vmem:[#allocation7 + $0xa8] sm:$0xf]
    %v4219 = vld [vmem:[#allocation7 + $0xac] sm:$0xf]
    %v4220 = vld [vmem:[#allocation7 + $0xb0] sm:$0xf]
    %v4221 = vld [vmem:[#allocation7 + $0xb4] sm:$0xf]
    %v4222 = vld [vmem:[#allocation7 + $0xb8] sm:$0xf]
    %v4223 = vld [vmem:[#allocation7 + $0xbc] sm:$0xf]
    %v4224 = vld [vmem:[#allocation7 + $0xc0] sm:$0xf]
    %v4225 = vld [vmem:[#allocation7 + $0xc4] sm:$0xf]
    %v4226 = vld [vmem:[#allocation7 + $0xc8] sm:$0xf]
    %v4227 = vld [vmem:[#allocation7 + $0xcc] sm:$0xf]
    %v4228 = vld [vmem:[#allocation7 + $0xd0] sm:$0xf]
    %v4229 = vld [vmem:[#allocation7 + $0xd4] sm:$0xf]
    %v4230 = vld [vmem:[#allocation7 + $0xd8] sm:$0xf]
    %v4231 = vld [vmem:[#allocation7 + $0xdc] sm:$0xf]
    %v4232 = vld [vmem:[#allocation7 + $0xe0] sm:$0xf]
    %v4233 = vld [vmem:[#allocation7 + $0xe4] sm:$0xf]
    %v4234 = vld [vmem:[#allocation7 + $0xe8] sm:$0xf]
    %v4235 = vld [vmem:[#allocation7 + $0xec] sm:$0xf]
    %v4236 = vld [vmem:[#allocation7 + $0xf0] sm:$0xf]
    %v4237 = vld [vmem:[#allocation7 + $0xf4] sm:$0xf]
    %v4238 = vld [vmem:[#allocation7 + $0xf8] sm:$0xf]
    %v4239 = vld [vmem:[#allocation7 + $0xfc] sm:$0xf]
    %v4240 = vld [vmem:[%s8] sm:$0x1]
    %v4242 = vperm.slane %v4240, 0
    %v4308 = vunpack.c.l.b16 %v4176
    %v4309 = vunpack.c.l.b16 %v4177
    %v4310 = vunpack.c.l.b16 %v4178
    %v4311 = vunpack.c.l.b16 %v4179
    %v4312 = vunpack.c.l.b16 %v4180
    %v4313 = vunpack.c.l.b16 %v4181
    %v4314 = vunpack.c.l.b16 %v4182
    %v4315 = vunpack.c.l.b16 %v4183
    %v4316 = vunpack.c.l.b16 %v4184
    %v4317 = vunpack.c.l.b16 %v4185
    %v4318 = vunpack.c.l.b16 %v4186
    %v4319 = vunpack.c.l.b16 %v4187
    %v4320 = vunpack.c.l.b16 %v4188
    %v4321 = vunpack.c.l.b16 %v4189
    %v4322 = vunpack.c.l.b16 %v4190
    %v4323 = vunpack.c.l.b16 %v4191
    %v4324 = vunpack.c.l.b16 %v4192
    %v4325 = vunpack.c.l.b16 %v4193
    %v4326 = vunpack.c.l.b16 %v4194
    %v4327 = vunpack.c.l.b16 %v4195
    %v4328 = vunpack.c.l.b16 %v4196
    %v4329 = vunpack.c.l.b16 %v4197
    %v4330 = vunpack.c.l.b16 %v4198
    %v4331 = vunpack.c.l.b16 %v4199
    %v4332 = vunpack.c.l.b16 %v4200
    %v4333 = vunpack.c.l.b16 %v4201
    %v4334 = vunpack.c.l.b16 %v4202
    %v4335 = vunpack.c.l.b16 %v4203
    %v4336 = vunpack.c.l.b16 %v4204
    %v4337 = vunpack.c.l.b16 %v4205
    %v4338 = vunpack.c.l.b16 %v4206
    %v4339 = vunpack.c.l.b16 %v4207
    %v4340 = vunpack.c.l.b16 %v4208
    %v4341 = vunpack.c.l.b16 %v4209
    %v4342 = vunpack.c.l.b16 %v4210
    %v4343 = vunpack.c.l.b16 %v4211
    %v4344 = vunpack.c.l.b16 %v4212
    %v4345 = vunpack.c.l.b16 %v4213
    %v4346 = vunpack.c.l.b16 %v4214
    %v4347 = vunpack.c.l.b16 %v4215
    %v4348 = vunpack.c.l.b16 %v4216
    %v4349 = vunpack.c.l.b16 %v4217
    %v4350 = vunpack.c.l.b16 %v4218
    %v4351 = vunpack.c.l.b16 %v4219
    %v4352 = vunpack.c.l.b16 %v4220
    %v4353 = vunpack.c.l.b16 %v4221
    %v4354 = vunpack.c.l.b16 %v4222
    %v4355 = vunpack.c.l.b16 %v4223
    %v4356 = vunpack.c.l.b16 %v4224
    %v4357 = vunpack.c.l.b16 %v4225
    %v4358 = vunpack.c.l.b16 %v4226
    %v4359 = vunpack.c.l.b16 %v4227
    %v4360 = vunpack.c.l.b16 %v4228
    %v4361 = vunpack.c.l.b16 %v4229
    %v4362 = vunpack.c.l.b16 %v4230
    %v4363 = vunpack.c.l.b16 %v4231
    %v4364 = vunpack.c.l.b16 %v4232
    %v4365 = vunpack.c.l.b16 %v4233
    %v4366 = vunpack.c.l.b16 %v4234
    %v4367 = vunpack.c.l.b16 %v4235
    %v4368 = vunpack.c.l.b16 %v4236
    %v4369 = vunpack.c.l.b16 %v4237
    %v4370 = vunpack.c.l.b16 %v4238
    %v4371 = vunpack.c.l.b16 %v4239
    %v4372 = vpack.c.b16 %v4309, %v4308
    %v4373 = vpack.c.b16 %v4311, %v4310
    %v4374 = vpack.c.b16 %v4313, %v4312
    %v4375 = vpack.c.b16 %v4315, %v4314
    %v4376 = vpack.c.b16 %v4317, %v4316
    %v4377 = vpack.c.b16 %v4319, %v4318
    %v4378 = vpack.c.b16 %v4321, %v4320
    %v4379 = vpack.c.b16 %v4323, %v4322
    %v4380 = vpack.c.b16 %v4325, %v4324
    %v4381 = vpack.c.b16 %v4327, %v4326
    %v4382 = vpack.c.b16 %v4329, %v4328
    %v4383 = vpack.c.b16 %v4331, %v4330
    %v4384 = vpack.c.b16 %v4333, %v4332
    %v4385 = vpack.c.b16 %v4335, %v4334
    %v4386 = vpack.c.b16 %v4337, %v4336
    %v4387 = vpack.c.b16 %v4339, %v4338
    %v4388 = vpack.c.b16 %v4341, %v4340
    %v4389 = vpack.c.b16 %v4343, %v4342
    %v4390 = vpack.c.b16 %v4345, %v4344
    %v4391 = vpack.c.b16 %v4347, %v4346
    %v4392 = vpack.c.b16 %v4349, %v4348
    %v4393 = vpack.c.b16 %v4351, %v4350
    %v4394 = vpack.c.b16 %v4353, %v4352
    %v4395 = vpack.c.b16 %v4355, %v4354
    %v4396 = vpack.c.b16 %v4357, %v4356
    %v4397 = vpack.c.b16 %v4359, %v4358
    %v4398 = vpack.c.b16 %v4361, %v4360
    %v4399 = vpack.c.b16 %v4363, %v4362
    %v4400 = vpack.c.b16 %v4365, %v4364
    %v4401 = vpack.c.b16 %v4367, %v4366
    %v4402 = vpack.c.b16 %v4369, %v4368
    %v4403 = vpack.c.b16 %v4371, %v4370
    %4436 = vmatpush.bf16.msra.mxu0 %v4379
    %4437 = vmatpush.bf16.msra.mxu0 %v4378
    %4438 = vmatpush.bf16.msra.mxu0 %v4377
    %4439 = vmatpush.bf16.msra.mxu0 %v4376
    %4440 = vmatpush.bf16.msra.mxu0 %v4375
    %4441 = vmatpush.bf16.msra.mxu0 %v4374
    %4442 = vmatpush.bf16.msra.mxu0 %v4373
    %4443 = vmatpush.bf16.msra.mxu0 %v4372
    %4444 = vmatmul.bf16.gmra.mxu0 %v4172
    %v4445 = vpop.f32.mrf.mxu0
    %v4446 = vadd.f32 %v4242, %v4445
    %v4447 = vpop.f32.mrf.mxu0
    %4448 = vdwg.mxu0
    %4449 = vmatpush.bf16.msra.mxu0 %v4387
    %4450 = vmatpush.bf16.msra.mxu0 %v4386
    %4451 = vmatpush.bf16.msra.mxu0 %v4385
    %4452 = vmatpush.bf16.msra.mxu0 %v4384
    %4453 = vmatpush.bf16.msra.mxu0 %v4383
    %4454 = vmatpush.bf16.msra.mxu0 %v4382
    %4455 = vmatpush.bf16.msra.mxu0 %v4381
    %4456 = vmatpush.bf16.msra.mxu0 %v4380
    %4457 = vmatmul.bf16.gmra.mxu0 %v4173
    %v4458 = vpop.f32.mrf.mxu0
    %v4459 = vadd.f32 %v4446, %v4458
    %v4460 = vpop.f32.mrf.mxu0
    %4461 = vdwg.mxu0
    %4462 = vmatpush.bf16.msra.mxu0 %v4395
    %4463 = vmatpush.bf16.msra.mxu0 %v4394
    %4464 = vmatpush.bf16.msra.mxu0 %v4393
    %4465 = vmatpush.bf16.msra.mxu0 %v4392
    %4466 = vmatpush.bf16.msra.mxu0 %v4391
    %4467 = vmatpush.bf16.msra.mxu0 %v4390
    %4468 = vmatpush.bf16.msra.mxu0 %v4389
    %4469 = vmatpush.bf16.msra.mxu0 %v4388
    %4470 = vmatmul.bf16.gmra.mxu0 %v4174
    %v4471 = vpop.f32.mrf.mxu0
    %v4472 = vadd.f32 %v4459, %v4471
    %v4473 = vpop.f32.mrf.mxu0
    %4474 = vdwg.mxu0
    %4475 = vmatpush.bf16.msra.mxu0 %v4403
    %4476 = vmatpush.bf16.msra.mxu0 %v4402
    %4477 = vmatpush.bf16.msra.mxu0 %v4401
    %4478 = vmatpush.bf16.msra.mxu0 %v4400
    %4479 = vmatpush.bf16.msra.mxu0 %v4399
    %4480 = vmatpush.bf16.msra.mxu0 %v4398
    %4481 = vmatpush.bf16.msra.mxu0 %v4397
    %4482 = vmatpush.bf16.msra.mxu0 %v4396
    %4483 = vmatmul.bf16.gmra.mxu0 %v4175
    %v4484 = vpop.f32.mrf.mxu0
    %v4485 = vadd.f32 %v4472, %v4484
    %v4486 = vpop.f32.mrf.mxu0
    %4487 = vdwg.mxu0
    %4488 = vst [vmem:[%s9] sm:$0xff] %v4485
    // Predicated region
    $region54: #{ann_forward.1} parent=1 // pred_check
      _
    $region55: #{ann_forward.1} parent=1 // pred_check_branch
      %4490 = sbr.rel (0) target = $region57
    $region56: #{ann_forward.1} parent=1 // pred_region
      _
    $region57: #{ann_forward.1} parent=1 // pred_fallthru
      _
    // Predicated region
    $region58: #{ann_forward.1} parent=1 // pred_check
      _
    $region59: #{ann_forward.1} parent=1 // pred_check_branch
      %4492 = sbr.rel (0) target = $region61
    $region60: #{ann_forward.1} parent=1 // pred_region
      _
    $region61: #{ann_forward.1} parent=1 // pred_fallthru
      _
    %4493 = vsyncpa [#allocation3], 1
    %4494 = vsyncpa [#allocation5], 1
    %4495 = vsyncpa [#allocation8], 1

</llo_original>
